<compile_context>
chip_gen: v6e
topology: v6e:2x2x1
jax: 0.10.0
libtpu: 0.0.40
codegen_flags: <defaults>
</compile_context>

<pallas_src>
import jax
import jax.numpy as jnp
from jax import lax
from jax.experimental import pallas as pl
from jax.experimental.pallas import tpu as pltpu

EMBD_D = 384
N_HEAD = 6
HEAD_SIZE = EMBD_D // N_HEAD  # 64


def _mha_fused_kernel(x_ref, wqkv_ref, wp_ref, bp_ref, mask_ref, o_ref):
    """BB batch elements: packed QKV proj + 6-head causal attn + out proj."""
    BB, T, C = x_ref.shape
    D = N_HEAD * HEAD_SIZE

    # Flatten batch block for full-width MXU projections: (BB*T, 384) @ (384, 1152)
    # columns: [q_h0..q_h5 | k_h0..k_h5 | v_h0..v_h5]
    x = x_ref[...].reshape(BB * T, C)
    qkv = jnp.dot(x, wqkv_ref[...], preferred_element_type=jnp.float32)

    wp = wp_ref[...]                                  # (384, 384), (in, out) layout
    neg_mask = mask_ref[...]                          # (T, T): 0 on lower tri, -inf above
    bias = jnp.broadcast_to(bp_ref[...], (T, D))      # (T, 384), hoisted out of loops

    scale = HEAD_SIZE ** -0.5                         # 0.125, exact power of two

    for b in range(BB):
        r0 = b * T
        acc = bias
        for h in range(N_HEAD):
            qh = qkv[r0:r0 + T, h * HEAD_SIZE:(h + 1) * HEAD_SIZE] * scale
            kh = qkv[r0:r0 + T, D + h * HEAD_SIZE:D + (h + 1) * HEAD_SIZE]
            vh = qkv[r0:r0 + T, 2 * D + h * HEAD_SIZE:2 * D + (h + 1) * HEAD_SIZE]

            # q @ k.T via trans-B contraction (no in-kernel transpose of K).
            logits = lax.dot_general(qh, kh, (((1,), (1,)), ((), ())),
                                     preferred_element_type=jnp.float32)  # (T, T)

            # Exact PyTorch semantics: tril(qk) then masked_fill_(==0, -inf).
            #   where(logits!=0, logits, -inf) + {0 | -inf}  ==
            #   where(causal & logits!=0, logits, -inf)
            masked = jnp.where(logits != 0.0, logits, -jnp.inf) + neg_mask

            m = jnp.max(masked, axis=-1, keepdims=True)
            e = jnp.exp(masked - m)
            s = jnp.sum(e, axis=-1, keepdims=True)
            inv = pl.reciprocal(s)                     # exact; (T,1) instead of (T,T) divide
            # TODO(synk): attention dropout is identity in eval mode.

            pv = jnp.dot(e, vh, preferred_element_type=jnp.float32)       # (T, 64)
            # Fold head h straight into the output projection (no concat):
            acc = acc + jnp.dot(pv * inv,
                                wp[h * HEAD_SIZE:(h + 1) * HEAD_SIZE, :],
                                preferred_element_type=jnp.float32)       # (T, 384)

        o_ref[b] = acc                                 # lane-dense 384-wide store
    # TODO(synk): outer dropout is identity in eval mode.


def prepare_mha_params(wq, wk, wv, wp, bp):
    """One-time weight prep (call once, reuse across forward calls).

    wq/wk/wv: (n_head, head_size, C) torch (out, in) layout; wp: (C, C); bp: (1, C).
    Returns (wqkv_t (C, 3C), wp_t (C, C), bp) pre-transposed to (in, out) layout.
    """
    w_all = jnp.concatenate(
        [wq.reshape(N_HEAD * HEAD_SIZE, EMBD_D),
         wk.reshape(N_HEAD * HEAD_SIZE, EMBD_D),
         wv.reshape(N_HEAD * HEAD_SIZE, EMBD_D)], axis=0)      # (1152, 384)
    return w_all.T, wp.T, bp


def _pick_batch_block(B, T, target_rows=256):
    """Batch elements per grid step: aim for ~256 MXU rows, keep >=2 steps if B>=2."""
    bb = max(1, min(B, target_rows // max(T, 1)))
    if B >= 2:
        bb = max(1, min(bb, B // 2))   # keep both v7x TensorCores fed
    while B % bb:                      # bb must divide B
        bb -= 1
    return bb


def mha_forward(x, wqkv_t, wp_t, bp):
    """x: (B, T, C) float32; weights from prepare_mha_params."""
    B, T, C = x.shape
    assert C == EMBD_D
    BB = _pick_batch_block(B, T)

    # Additive causal mask with the reference's masked_fill semantics baked in.
    tri = jnp.tril(jnp.ones((T, T), jnp.float32))
    neg_mask = jnp.where(tri != 0.0, 0.0, -jnp.inf).astype(jnp.float32)

    out = pl.pallas_call(
        _mha_fused_kernel,
        out_shape=jax.ShapeDtypeStruct((B, T, EMBD_D), jnp.float32),
        grid_spec=pltpu.PrefetchScalarGridSpec(
            num_scalar_prefetch=0,
            grid=(B // BB,),
            in_specs=[
                pl.BlockSpec((BB, T, C), lambda i: (i, 0, 0)),
                # Constant index maps: weights/mask DMA'd once, stay VMEM-resident.
                pl.BlockSpec((C, 3 * EMBD_D), lambda i: (0, 0)),
                pl.BlockSpec((EMBD_D, EMBD_D), lambda i: (0, 0)),
                pl.BlockSpec((1, EMBD_D), lambda i: (0, 0)),
                pl.BlockSpec((T, T), lambda i: (0, 0)),
            ],
            out_specs=pl.BlockSpec((BB, T, EMBD_D), lambda i: (i, 0, 0)),
        ),
        compiler_params=pltpu.CompilerParams(
            dimension_semantics=("parallel",),
            vmem_limit_bytes=32 * 1024 * 1024),
    )(x, wqkv_t, wp_t, bp, neg_mask)
    return out


def multi_head_attention(x, wq, wk, wv, wp, bp):
    """Convenience wrapper (prep + forward). Prefer prepare_mha_params once."""
    wqkv_t, wp_t, bp = prepare_mha_params(wq, wk, wv, wp, bp)
    return mha_forward(x, wqkv_t, wp_t, bp)


def _reference(x, wq, wk, wv, wp, bp):
    """Pure-JAX port of the PyTorch module (including its mask semantics)."""
    outs = []
    scale = HEAD_SIZE ** -0.5
    for h in range(N_HEAD):
        q = x @ wq[h].T
        k = x @ wk[h].T
        v = x @ wv[h].T
        qk = q @ jnp.swapaxes(k, -2, -1) * scale
        z = jnp.tril(qk)
        z = jnp.where(z == 0.0, -jnp.inf, z)
        s = jax.nn.softmax(z, axis=-1)
        outs.append(s @ v)
    m = jnp.concatenate(outs, axis=-1)
    return m @ wp.T + bp[0]


if __name__ == "__main__":
    B, T = 2, 8
    key = jax.random.PRNGKey(0)
    kx, kq, kk, kv, kp, kb = jax.random.split(key, 6)

    # Deterministic param init (PyTorch Linear default: U(-1/sqrt(fan_in), ...))
    bound_h = 1.0 / (EMBD_D ** 0.5)
    wq = jax.random.uniform(kq, (N_HEAD, HEAD_SIZE, EMBD_D), jnp.float32,
                            -bound_h, bound_h)
    wk = jax.random.uniform(kk, (N_HEAD, HEAD_SIZE, EMBD_D), jnp.float32,
                            -bound_h, bound_h)
    wv = jax.random.uniform(kv, (N_HEAD, HEAD_SIZE, EMBD_D), jnp.float32,
                            -bound_h, bound_h)
    bound_p = 1.0 / ((HEAD_SIZE * N_HEAD) ** 0.5)
    wp = jax.random.uniform(kp, (EMBD_D, EMBD_D), jnp.float32, -bound_p, bound_p)
    bp = jax.random.uniform(kb, (1, EMBD_D), jnp.float32, -bound_p, bound_p)

    x = jax.random.normal(kx, (B, T, EMBD_D), jnp.float32)

    # Weight prep once, forward with prepped params.
    wqkv_t, wp_t, bp_p = prepare_mha_params(wq, wk, wv, wp, bp)
    out = mha_forward(x, wqkv_t, wp_t, bp_p)
    out = jax.block_until_ready(out)

    ref = _reference(x, wq, wk, wv, wp, bp)
    assert out.shape == (B, T, EMBD_D)
    assert jnp.allclose(out, ref, atol=1e-4, rtol=1e-4)

    print("KERNEL_OK")
</pallas_src>

<mosaic_0001>
module attributes {stable_mosaic.version = 11 : i64} {
  func.func @_mha_fused_kernel(%arg0: i32, %arg1: memref<1x8x384xf32, #tpu.memory_space<vmem>>, %arg2: memref<384x1152xf32, #tpu.memory_space<vmem>>, %arg3: memref<384x384xf32, #tpu.memory_space<vmem>>, %arg4: memref<1x384xf32, #tpu.memory_space<vmem>>, %arg5: memref<8x8xf32, #tpu.memory_space<vmem>>, %arg6: memref<1x8x384xf32, #tpu.memory_space<vmem>>) attributes {dimension_semantics = [#tpu.dimension_semantics<parallel>], iteration_bounds = array<i64: 2>, scalar_prefetch = 0 : i64, scratch_operands = 0 : i64, tpu.core_type = #tpu.core_type<tc>, window_params = [{transform_indices = @transform_0, window_bounds = array<i64: 1, 8, 384>}, {pipeline_mode = #tpu.pipeline_mode<synchronous>, transform_indices = @transform_1, window_bounds = array<i64: 384, 1152>}, {pipeline_mode = #tpu.pipeline_mode<synchronous>, transform_indices = @transform_2, window_bounds = array<i64: 384, 384>}, {pipeline_mode = #tpu.pipeline_mode<synchronous>, transform_indices = @transform_3, window_bounds = array<i64: 1, 384>}, {pipeline_mode = #tpu.pipeline_mode<synchronous>, transform_indices = @transform_4, window_bounds = array<i64: 8, 8>}, {transform_indices = @transform_5, window_bounds = array<i64: 1, 8, 384>}]} {
    %c0 = arith.constant 0 : index
    %c0_0 = arith.constant 0 : index
    %c0_1 = arith.constant 0 : index
    %0 = vector.load %arg1[%c0, %c0_0, %c0_1] : memref<1x8x384xf32, #tpu.memory_space<vmem>>, vector<1x8x384xf32>
    %1 = vector.shape_cast %0 : vector<1x8x384xf32> to vector<8x384xf32>
    %c0_2 = arith.constant 0 : index
    %c0_3 = arith.constant 0 : index
    %2 = vector.load %arg2[%c0_2, %c0_3] : memref<384x1152xf32, #tpu.memory_space<vmem>>, vector<384x1152xf32>
    %cst = arith.constant dense<0.000000e+00> : vector<8x1152xf32>
    %3 = tpu.matmul %1, %2, %cst {dimension_numbers = #tpu.dot_dimension_numbers<[1], [0], [0], [1], [0, 0, 1, 1], [], []>} : vector<8x384xf32>, vector<384x1152xf32>, vector<8x1152xf32> -> vector<8x1152xf32>
    %c0_4 = arith.constant 0 : index
    %c0_5 = arith.constant 0 : index
    %4 = vector.load %arg3[%c0_4, %c0_5] : memref<384x384xf32, #tpu.memory_space<vmem>>, vector<384x384xf32>
    %c0_6 = arith.constant 0 : index
    %c0_7 = arith.constant 0 : index
    %5 = vector.load %arg5[%c0_6, %c0_7] : memref<8x8xf32, #tpu.memory_space<vmem>>, vector<8x8xf32>
    %c0_8 = arith.constant 0 : index
    %c0_9 = arith.constant 0 : index
    %6 = vector.load %arg4[%c0_8, %c0_9] : memref<1x384xf32, #tpu.memory_space<vmem>>, vector<1x384xf32>
    %7 = vector.shape_cast %6 : vector<1x384xf32> to vector<1x384xf32>
    %8 = vector.broadcast %7 : vector<1x384xf32> to vector<8x384xf32>
    %9 = vector.extract_strided_slice %3 {offsets = [0, 0], sizes = [8, 64], strides = [1, 1]} : vector<8x1152xf32> to vector<8x64xf32>
    %cst_10 = arith.constant 1.250000e-01 : f32
    %10 = vector.broadcast %cst_10 : f32 to vector<8x64xf32>
    %11 = arith.mulf %9, %10 : vector<8x64xf32>
    %12 = vector.extract_strided_slice %3 {offsets = [0, 384], sizes = [8, 64], strides = [1, 1]} : vector<8x1152xf32> to vector<8x64xf32>
    %13 = vector.extract_strided_slice %3 {offsets = [0, 768], sizes = [8, 64], strides = [1, 1]} : vector<8x1152xf32> to vector<8x64xf32>
    %cst_11 = arith.constant dense<0.000000e+00> : vector<8x8xf32>
    %14 = tpu.matmul %11, %12, %cst_11 {dimension_numbers = #tpu.dot_dimension_numbers<[1], [1], [0], [0], [0, 0, 1, 0], [], []>} : vector<8x64xf32>, vector<8x64xf32>, vector<8x8xf32> -> vector<8x8xf32>
    %cst_12 = arith.constant 0.000000e+00 : f32
    %15 = vector.broadcast %cst_12 : f32 to vector<8x8xf32>
    %16 = arith.cmpf one, %14, %15 : vector<8x8xf32>
    %cst_13 = arith.constant 0xFF800000 : f32
    %17 = vector.broadcast %cst_13 : f32 to vector<8x8xf32>
    %18 = arith.select %16, %14, %17 : vector<8x8xi1>, vector<8x8xf32>
    %19 = arith.addf %18, %5 : vector<8x8xf32>
    %cst_14 = arith.constant dense<0xFF800000> : vector<8xf32>
    %20 = vector.multi_reduction <maximumf>, %19, %cst_14 [1] : vector<8x8xf32> to vector<8xf32>
    %21 = vector.shape_cast %20 : vector<8xf32> to vector<8x1xf32>
    %22 = vector.broadcast %21 : vector<8x1xf32> to vector<8x8xf32>
    %23 = arith.subf %19, %22 : vector<8x8xf32>
    %24 = math.exp %23 : vector<8x8xf32>
    %cst_15 = arith.constant dense<0.000000e+00> : vector<8xf32>
    %25 = vector.multi_reduction <add>, %24, %cst_15 [1] : vector<8x8xf32> to vector<8xf32>
    %26 = vector.shape_cast %25 : vector<8xf32> to vector<8x1xf32>
    %27 = tpu.reciprocal %26 : vector<8x1xf32> -> vector<8x1xf32>
    %cst_16 = arith.constant dense<0.000000e+00> : vector<8x64xf32>
    %28 = tpu.matmul %24, %13, %cst_16 {dimension_numbers = #tpu.dot_dimension_numbers<[1], [0], [0], [1], [0, 0, 1, 1], [], []>} : vector<8x8xf32>, vector<8x64xf32>, vector<8x64xf32> -> vector<8x64xf32>
    %29 = vector.broadcast %27 : vector<8x1xf32> to vector<8x64xf32>
    %30 = arith.mulf %28, %29 : vector<8x64xf32>
    %31 = vector.extract_strided_slice %4 {offsets = [0, 0], sizes = [64, 384], strides = [1, 1]} : vector<384x384xf32> to vector<64x384xf32>
    %cst_17 = arith.constant dense<0.000000e+00> : vector<8x384xf32>
    %32 = tpu.matmul %30, %31, %cst_17 {dimension_numbers = #tpu.dot_dimension_numbers<[1], [0], [0], [1], [0, 0, 1, 1], [], []>} : vector<8x64xf32>, vector<64x384xf32>, vector<8x384xf32> -> vector<8x384xf32>
    %33 = arith.addf %8, %32 : vector<8x384xf32>
    %34 = vector.extract_strided_slice %3 {offsets = [0, 64], sizes = [8, 64], strides = [1, 1]} : vector<8x1152xf32> to vector<8x64xf32>
    %cst_18 = arith.constant 1.250000e-01 : f32
    %35 = vector.broadcast %cst_18 : f32 to vector<8x64xf32>
    %36 = arith.mulf %34, %35 : vector<8x64xf32>
    %37 = vector.extract_strided_slice %3 {offsets = [0, 448], sizes = [8, 64], strides = [1, 1]} : vector<8x1152xf32> to vector<8x64xf32>
    %38 = vector.extract_strided_slice %3 {offsets = [0, 832], sizes = [8, 64], strides = [1, 1]} : vector<8x1152xf32> to vector<8x64xf32>
    %cst_19 = arith.constant dense<0.000000e+00> : vector<8x8xf32>
    %39 = tpu.matmul %36, %37, %cst_19 {dimension_numbers = #tpu.dot_dimension_numbers<[1], [1], [0], [0], [0, 0, 1, 0], [], []>} : vector<8x64xf32>, vector<8x64xf32>, vector<8x8xf32> -> vector<8x8xf32>
    %cst_20 = arith.constant 0.000000e+00 : f32
    %40 = vector.broadcast %cst_20 : f32 to vector<8x8xf32>
    %41 = arith.cmpf one, %39, %40 : vector<8x8xf32>
    %cst_21 = arith.constant 0xFF800000 : f32
    %42 = vector.broadcast %cst_21 : f32 to vector<8x8xf32>
    %43 = arith.select %41, %39, %42 : vector<8x8xi1>, vector<8x8xf32>
    %44 = arith.addf %43, %5 : vector<8x8xf32>
    %cst_22 = arith.constant dense<0xFF800000> : vector<8xf32>
    %45 = vector.multi_reduction <maximumf>, %44, %cst_22 [1] : vector<8x8xf32> to vector<8xf32>
    %46 = vector.shape_cast %45 : vector<8xf32> to vector<8x1xf32>
    %47 = vector.broadcast %46 : vector<8x1xf32> to vector<8x8xf32>
    %48 = arith.subf %44, %47 : vector<8x8xf32>
    %49 = math.exp %48 : vector<8x8xf32>
    %cst_23 = arith.constant dense<0.000000e+00> : vector<8xf32>
    %50 = vector.multi_reduction <add>, %49, %cst_23 [1] : vector<8x8xf32> to vector<8xf32>
    %51 = vector.shape_cast %50 : vector<8xf32> to vector<8x1xf32>
    %52 = tpu.reciprocal %51 : vector<8x1xf32> -> vector<8x1xf32>
    %cst_24 = arith.constant dense<0.000000e+00> : vector<8x64xf32>
    %53 = tpu.matmul %49, %38, %cst_24 {dimension_numbers = #tpu.dot_dimension_numbers<[1], [0], [0], [1], [0, 0, 1, 1], [], []>} : vector<8x8xf32>, vector<8x64xf32>, vector<8x64xf32> -> vector<8x64xf32>
    %54 = vector.broadcast %52 : vector<8x1xf32> to vector<8x64xf32>
    %55 = arith.mulf %53, %54 : vector<8x64xf32>
    %56 = vector.extract_strided_slice %4 {offsets = [64, 0], sizes = [64, 384], strides = [1, 1]} : vector<384x384xf32> to vector<64x384xf32>
    %cst_25 = arith.constant dense<0.000000e+00> : vector<8x384xf32>
    %57 = tpu.matmul %55, %56, %cst_25 {dimension_numbers = #tpu.dot_dimension_numbers<[1], [0], [0], [1], [0, 0, 1, 1], [], []>} : vector<8x64xf32>, vector<64x384xf32>, vector<8x384xf32> -> vector<8x384xf32>
    %58 = arith.addf %33, %57 : vector<8x384xf32>
    %59 = vector.extract_strided_slice %3 {offsets = [0, 128], sizes = [8, 64], strides = [1, 1]} : vector<8x1152xf32> to vector<8x64xf32>
    %cst_26 = arith.constant 1.250000e-01 : f32
    %60 = vector.broadcast %cst_26 : f32 to vector<8x64xf32>
    %61 = arith.mulf %59, %60 : vector<8x64xf32>
    %62 = vector.extract_strided_slice %3 {offsets = [0, 512], sizes = [8, 64], strides = [1, 1]} : vector<8x1152xf32> to vector<8x64xf32>
    %63 = vector.extract_strided_slice %3 {offsets = [0, 896], sizes = [8, 64], strides = [1, 1]} : vector<8x1152xf32> to vector<8x64xf32>
    %cst_27 = arith.constant dense<0.000000e+00> : vector<8x8xf32>
    %64 = tpu.matmul %61, %62, %cst_27 {dimension_numbers = #tpu.dot_dimension_numbers<[1], [1], [0], [0], [0, 0, 1, 0], [], []>} : vector<8x64xf32>, vector<8x64xf32>, vector<8x8xf32> -> vector<8x8xf32>
    %cst_28 = arith.constant 0.000000e+00 : f32
    %65 = vector.broadcast %cst_28 : f32 to vector<8x8xf32>
    %66 = arith.cmpf one, %64, %65 : vector<8x8xf32>
    %cst_29 = arith.constant 0xFF800000 : f32
    %67 = vector.broadcast %cst_29 : f32 to vector<8x8xf32>
    %68 = arith.select %66, %64, %67 : vector<8x8xi1>, vector<8x8xf32>
    %69 = arith.addf %68, %5 : vector<8x8xf32>
    %cst_30 = arith.constant dense<0xFF800000> : vector<8xf32>
    %70 = vector.multi_reduction <maximumf>, %69, %cst_30 [1] : vector<8x8xf32> to vector<8xf32>
    %71 = vector.shape_cast %70 : vector<8xf32> to vector<8x1xf32>
    %72 = vector.broadcast %71 : vector<8x1xf32> to vector<8x8xf32>
    %73 = arith.subf %69, %72 : vector<8x8xf32>
    %74 = math.exp %73 : vector<8x8xf32>
    %cst_31 = arith.constant dense<0.000000e+00> : vector<8xf32>
    %75 = vector.multi_reduction <add>, %74, %cst_31 [1] : vector<8x8xf32> to vector<8xf32>
    %76 = vector.shape_cast %75 : vector<8xf32> to vector<8x1xf32>
    %77 = tpu.reciprocal %76 : vector<8x1xf32> -> vector<8x1xf32>
    %cst_32 = arith.constant dense<0.000000e+00> : vector<8x64xf32>
    %78 = tpu.matmul %74, %63, %cst_32 {dimension_numbers = #tpu.dot_dimension_numbers<[1], [0], [0], [1], [0, 0, 1, 1], [], []>} : vector<8x8xf32>, vector<8x64xf32>, vector<8x64xf32> -> vector<8x64xf32>
    %79 = vector.broadcast %77 : vector<8x1xf32> to vector<8x64xf32>
    %80 = arith.mulf %78, %79 : vector<8x64xf32>
    %81 = vector.extract_strided_slice %4 {offsets = [128, 0], sizes = [64, 384], strides = [1, 1]} : vector<384x384xf32> to vector<64x384xf32>
    %cst_33 = arith.constant dense<0.000000e+00> : vector<8x384xf32>
    %82 = tpu.matmul %80, %81, %cst_33 {dimension_numbers = #tpu.dot_dimension_numbers<[1], [0], [0], [1], [0, 0, 1, 1], [], []>} : vector<8x64xf32>, vector<64x384xf32>, vector<8x384xf32> -> vector<8x384xf32>
    %83 = arith.addf %58, %82 : vector<8x384xf32>
    %84 = vector.extract_strided_slice %3 {offsets = [0, 192], sizes = [8, 64], strides = [1, 1]} : vector<8x1152xf32> to vector<8x64xf32>
    %cst_34 = arith.constant 1.250000e-01 : f32
    %85 = vector.broadcast %cst_34 : f32 to vector<8x64xf32>
    %86 = arith.mulf %84, %85 : vector<8x64xf32>
    %87 = vector.extract_strided_slice %3 {offsets = [0, 576], sizes = [8, 64], strides = [1, 1]} : vector<8x1152xf32> to vector<8x64xf32>
    %88 = vector.extract_strided_slice %3 {offsets = [0, 960], sizes = [8, 64], strides = [1, 1]} : vector<8x1152xf32> to vector<8x64xf32>
    %cst_35 = arith.constant dense<0.000000e+00> : vector<8x8xf32>
    %89 = tpu.matmul %86, %87, %cst_35 {dimension_numbers = #tpu.dot_dimension_numbers<[1], [1], [0], [0], [0, 0, 1, 0], [], []>} : vector<8x64xf32>, vector<8x64xf32>, vector<8x8xf32> -> vector<8x8xf32>
    %cst_36 = arith.constant 0.000000e+00 : f32
    %90 = vector.broadcast %cst_36 : f32 to vector<8x8xf32>
    %91 = arith.cmpf one, %89, %90 : vector<8x8xf32>
    %cst_37 = arith.constant 0xFF800000 : f32
    %92 = vector.broadcast %cst_37 : f32 to vector<8x8xf32>
    %93 = arith.select %91, %89, %92 : vector<8x8xi1>, vector<8x8xf32>
    %94 = arith.addf %93, %5 : vector<8x8xf32>
    %cst_38 = arith.constant dense<0xFF800000> : vector<8xf32>
    %95 = vector.multi_reduction <maximumf>, %94, %cst_38 [1] : vector<8x8xf32> to vector<8xf32>
    %96 = vector.shape_cast %95 : vector<8xf32> to vector<8x1xf32>
    %97 = vector.broadcast %96 : vector<8x1xf32> to vector<8x8xf32>
    %98 = arith.subf %94, %97 : vector<8x8xf32>
    %99 = math.exp %98 : vector<8x8xf32>
    %cst_39 = arith.constant dense<0.000000e+00> : vector<8xf32>
    %100 = vector.multi_reduction <add>, %99, %cst_39 [1] : vector<8x8xf32> to vector<8xf32>
    %101 = vector.shape_cast %100 : vector<8xf32> to vector<8x1xf32>
    %102 = tpu.reciprocal %101 : vector<8x1xf32> -> vector<8x1xf32>
    %cst_40 = arith.constant dense<0.000000e+00> : vector<8x64xf32>
    %103 = tpu.matmul %99, %88, %cst_40 {dimension_numbers = #tpu.dot_dimension_numbers<[1], [0], [0], [1], [0, 0, 1, 1], [], []>} : vector<8x8xf32>, vector<8x64xf32>, vector<8x64xf32> -> vector<8x64xf32>
    %104 = vector.broadcast %102 : vector<8x1xf32> to vector<8x64xf32>
    %105 = arith.mulf %103, %104 : vector<8x64xf32>
    %106 = vector.extract_strided_slice %4 {offsets = [192, 0], sizes = [64, 384], strides = [1, 1]} : vector<384x384xf32> to vector<64x384xf32>
    %cst_41 = arith.constant dense<0.000000e+00> : vector<8x384xf32>
    %107 = tpu.matmul %105, %106, %cst_41 {dimension_numbers = #tpu.dot_dimension_numbers<[1], [0], [0], [1], [0, 0, 1, 1], [], []>} : vector<8x64xf32>, vector<64x384xf32>, vector<8x384xf32> -> vector<8x384xf32>
    %108 = arith.addf %83, %107 : vector<8x384xf32>
    %109 = vector.extract_strided_slice %3 {offsets = [0, 256], sizes = [8, 64], strides = [1, 1]} : vector<8x1152xf32> to vector<8x64xf32>
    %cst_42 = arith.constant 1.250000e-01 : f32
    %110 = vector.broadcast %cst_42 : f32 to vector<8x64xf32>
    %111 = arith.mulf %109, %110 : vector<8x64xf32>
    %112 = vector.extract_strided_slice %3 {offsets = [0, 640], sizes = [8, 64], strides = [1, 1]} : vector<8x1152xf32> to vector<8x64xf32>
    %113 = vector.extract_strided_slice %3 {offsets = [0, 1024], sizes = [8, 64], strides = [1, 1]} : vector<8x1152xf32> to vector<8x64xf32>
    %cst_43 = arith.constant dense<0.000000e+00> : vector<8x8xf32>
    %114 = tpu.matmul %111, %112, %cst_43 {dimension_numbers = #tpu.dot_dimension_numbers<[1], [1], [0], [0], [0, 0, 1, 0], [], []>} : vector<8x64xf32>, vector<8x64xf32>, vector<8x8xf32> -> vector<8x8xf32>
    %cst_44 = arith.constant 0.000000e+00 : f32
    %115 = vector.broadcast %cst_44 : f32 to vector<8x8xf32>
    %116 = arith.cmpf one, %114, %115 : vector<8x8xf32>
    %cst_45 = arith.constant 0xFF800000 : f32
    %117 = vector.broadcast %cst_45 : f32 to vector<8x8xf32>
    %118 = arith.select %116, %114, %117 : vector<8x8xi1>, vector<8x8xf32>
    %119 = arith.addf %118, %5 : vector<8x8xf32>
    %cst_46 = arith.constant dense<0xFF800000> : vector<8xf32>
    %120 = vector.multi_reduction <maximumf>, %119, %cst_46 [1] : vector<8x8xf32> to vector<8xf32>
    %121 = vector.shape_cast %120 : vector<8xf32> to vector<8x1xf32>
    %122 = vector.broadcast %121 : vector<8x1xf32> to vector<8x8xf32>
    %123 = arith.subf %119, %122 : vector<8x8xf32>
    %124 = math.exp %123 : vector<8x8xf32>
    %cst_47 = arith.constant dense<0.000000e+00> : vector<8xf32>
    %125 = vector.multi_reduction <add>, %124, %cst_47 [1] : vector<8x8xf32> to vector<8xf32>
    %126 = vector.shape_cast %125 : vector<8xf32> to vector<8x1xf32>
    %127 = tpu.reciprocal %126 : vector<8x1xf32> -> vector<8x1xf32>
    %cst_48 = arith.constant dense<0.000000e+00> : vector<8x64xf32>
    %128 = tpu.matmul %124, %113, %cst_48 {dimension_numbers = #tpu.dot_dimension_numbers<[1], [0], [0], [1], [0, 0, 1, 1], [], []>} : vector<8x8xf32>, vector<8x64xf32>, vector<8x64xf32> -> vector<8x64xf32>
    %129 = vector.broadcast %127 : vector<8x1xf32> to vector<8x64xf32>
    %130 = arith.mulf %128, %129 : vector<8x64xf32>
    %131 = vector.extract_strided_slice %4 {offsets = [256, 0], sizes = [64, 384], strides = [1, 1]} : vector<384x384xf32> to vector<64x384xf32>
    %cst_49 = arith.constant dense<0.000000e+00> : vector<8x384xf32>
    %132 = tpu.matmul %130, %131, %cst_49 {dimension_numbers = #tpu.dot_dimension_numbers<[1], [0], [0], [1], [0, 0, 1, 1], [], []>} : vector<8x64xf32>, vector<64x384xf32>, vector<8x384xf32> -> vector<8x384xf32>
    %133 = arith.addf %108, %132 : vector<8x384xf32>
    %134 = vector.extract_strided_slice %3 {offsets = [0, 320], sizes = [8, 64], strides = [1, 1]} : vector<8x1152xf32> to vector<8x64xf32>
    %cst_50 = arith.constant 1.250000e-01 : f32
    %135 = vector.broadcast %cst_50 : f32 to vector<8x64xf32>
    %136 = arith.mulf %134, %135 : vector<8x64xf32>
    %137 = vector.extract_strided_slice %3 {offsets = [0, 704], sizes = [8, 64], strides = [1, 1]} : vector<8x1152xf32> to vector<8x64xf32>
    %138 = vector.extract_strided_slice %3 {offsets = [0, 1088], sizes = [8, 64], strides = [1, 1]} : vector<8x1152xf32> to vector<8x64xf32>
    %cst_51 = arith.constant dense<0.000000e+00> : vector<8x8xf32>
    %139 = tpu.matmul %136, %137, %cst_51 {dimension_numbers = #tpu.dot_dimension_numbers<[1], [1], [0], [0], [0, 0, 1, 0], [], []>} : vector<8x64xf32>, vector<8x64xf32>, vector<8x8xf32> -> vector<8x8xf32>
    %cst_52 = arith.constant 0.000000e+00 : f32
    %140 = vector.broadcast %cst_52 : f32 to vector<8x8xf32>
    %141 = arith.cmpf one, %139, %140 : vector<8x8xf32>
    %cst_53 = arith.constant 0xFF800000 : f32
    %142 = vector.broadcast %cst_53 : f32 to vector<8x8xf32>
    %143 = arith.select %141, %139, %142 : vector<8x8xi1>, vector<8x8xf32>
    %144 = arith.addf %143, %5 : vector<8x8xf32>
    %cst_54 = arith.constant dense<0xFF800000> : vector<8xf32>
    %145 = vector.multi_reduction <maximumf>, %144, %cst_54 [1] : vector<8x8xf32> to vector<8xf32>
    %146 = vector.shape_cast %145 : vector<8xf32> to vector<8x1xf32>
    %147 = vector.broadcast %146 : vector<8x1xf32> to vector<8x8xf32>
    %148 = arith.subf %144, %147 : vector<8x8xf32>
    %149 = math.exp %148 : vector<8x8xf32>
    %cst_55 = arith.constant dense<0.000000e+00> : vector<8xf32>
    %150 = vector.multi_reduction <add>, %149, %cst_55 [1] : vector<8x8xf32> to vector<8xf32>
    %151 = vector.shape_cast %150 : vector<8xf32> to vector<8x1xf32>
    %152 = tpu.reciprocal %151 : vector<8x1xf32> -> vector<8x1xf32>
    %cst_56 = arith.constant dense<0.000000e+00> : vector<8x64xf32>
    %153 = tpu.matmul %149, %138, %cst_56 {dimension_numbers = #tpu.dot_dimension_numbers<[1], [0], [0], [1], [0, 0, 1, 1], [], []>} : vector<8x8xf32>, vector<8x64xf32>, vector<8x64xf32> -> vector<8x64xf32>
    %154 = vector.broadcast %152 : vector<8x1xf32> to vector<8x64xf32>
    %155 = arith.mulf %153, %154 : vector<8x64xf32>
    %156 = vector.extract_strided_slice %4 {offsets = [320, 0], sizes = [64, 384], strides = [1, 1]} : vector<384x384xf32> to vector<64x384xf32>
    %cst_57 = arith.constant dense<0.000000e+00> : vector<8x384xf32>
    %157 = tpu.matmul %155, %156, %cst_57 {dimension_numbers = #tpu.dot_dimension_numbers<[1], [0], [0], [1], [0, 0, 1, 1], [], []>} : vector<8x64xf32>, vector<64x384xf32>, vector<8x384xf32> -> vector<8x384xf32>
    %158 = arith.addf %133, %157 : vector<8x384xf32>
    %c0_58 = arith.constant 0 : index
    %c0_59 = arith.constant 0 : index
    %c0_60 = arith.constant 0 : index
    %159 = vector.load %arg6[%c0_58, %c0_59, %c0_60] : memref<1x8x384xf32, #tpu.memory_space<vmem>>, vector<1x8x384xf32>
    %160 = vector.shape_cast %159 : vector<1x8x384xf32> to vector<8x384xf32>
    %161 = vector.shape_cast %158 : vector<8x384xf32> to vector<1x8x384xf32>
    tpu.vector_store %arg6[%c0_58, %c0_59, %c0_60], %161 {strides = array<i32>} : memref<1x8x384xf32, #tpu.memory_space<vmem>>, vector<1x8x384xf32>,
    return
  }
  func.func @transform_0(%arg0: i32) -> (i32, i32, i32) {
    %c0_i32 = arith.constant 0 : i32
    %c0_i32_0 = arith.constant 0 : i32
    %c0_i32_1 = arith.constant 0 : i32
    return %arg0, %c0_i32, %c0_i32_0 : i32, i32, i32
  }
  func.func @transform_1(%arg0: i32) -> (i32, i32) {
    %c0_i32 = arith.constant 0 : i32
    %c0_i32_0 = arith.constant 0 : i32
    %c0_i32_1 = arith.constant 0 : i32
    return %c0_i32, %c0_i32_0 : i32, i32
  }
  func.func @transform_2(%arg0: i32) -> (i32, i32) {
    %c0_i32 = arith.constant 0 : i32
    %c0_i32_0 = arith.constant 0 : i32
    %c0_i32_1 = arith.constant 0 : i32
    return %c0_i32, %c0_i32_0 : i32, i32
  }
  func.func @transform_3(%arg0: i32) -> (i32, i32) {
    %c0_i32 = arith.constant 0 : i32
    %c0_i32_0 = arith.constant 0 : i32
    %c0_i32_1 = arith.constant 0 : i32
    return %c0_i32, %c0_i32_0 : i32, i32
  }
  func.func @transform_4(%arg0: i32) -> (i32, i32) {
    %c0_i32 = arith.constant 0 : i32
    %c0_i32_0 = arith.constant 0 : i32
    %c0_i32_1 = arith.constant 0 : i32
    return %c0_i32, %c0_i32_0 : i32, i32
  }
  func.func @transform_5(%arg0: i32) -> (i32, i32, i32) {
    %c0_i32 = arith.constant 0 : i32
    %c0_i32_0 = arith.constant 0 : i32
    %c0_i32_1 = arith.constant 0 : i32
    return %arg0, %c0_i32, %c0_i32_0 : i32, i32, i32
  }
}

</mosaic_0001>

<llo_original>
// kernel: tpu_custom_call.1
$region0: #{tpu_custom_call.1}
  #allocation0 [shape = 'u32[]', space=smem, size = 0x4, offset = 0x4, fixed_abs, tag = 'smem constant byte address 0x4 - core index']
  #allocation1 [shape = 'u32[144,128]{1,0:T(1,128)}', space=vmem, size = 0x12000, scoped, tag = 'internal scratch']
  %s0 = inlined_call_operand.hbm [shape: f32[2,8,384], index: 0, kind: input, shape index: {}]
  %s1 = inlined_call_operand.hbm [shape: f32[384,1152], index: 1, kind: input, shape index: {}]
  %s2 = inlined_call_operand.hbm [shape: f32[384,384], index: 2, kind: input, shape index: {}]
  %s3 = inlined_call_operand.hbm [shape: f32[1,384], index: 3, kind: input, shape index: {}]
  %s4 = inlined_call_operand.hbm [shape: f32[8,8], index: 4, kind: input, shape index: {}]
  %s5 = inlined_call_operand.hbm [shape: f32[2,8,384], index: 5, kind: output, shape index: {}]
  %s6 = sld [smem:[#allocation0]]
  $region73: #{tpu_custom_call.1} parent=0
    _
  %s8 = ssub.s32 1, %s6
  %s9 = scalar_select 0, %s8, %s6
  $region1: #{tpu_custom_call.1} parent=0
    #allocation2 [shape = 'u8[24576]{0}', space=vmem, size = 0x6000, scoped, tag = 'input window, operand 0']
    #allocation3 [shape = 's32[2]{0}', space=sflag, size = 0x8, scoped, tag = 'scoped memory for tpu_custom_call.1']
    #allocation4 [shape = 's32[2]{0}', space=sflag, size = 0x8, scoped, tag = 'scoped memory for tpu_custom_call.1']
    #allocation5 [shape = 'u8[1769472]{0}', space=vmem, size = 0x1b0000, scoped, tag = 'input window, operand 1, single buffered']
    #allocation6 [shape = 's32[1]{0}', space=sflag, size = 0x4, scoped, tag = 'scoped memory for tpu_custom_call.1']
    #allocation7 [shape = 'u8[589824]{0}', space=vmem, size = 0x90000, scoped, tag = 'input window, operand 2, single buffered']
    #allocation8 [shape = 'u8[1536]{0}', space=vmem, size = 0x800, scoped, tag = 'input window, operand 3, single buffered']
    #allocation9 [shape = 's32[1]{0}', space=sflag, size = 0x4, scoped, tag = 'scoped memory for tpu_custom_call.1']
    #allocation10 [shape = 'u8[4096]{0}', space=vmem, size = 0x1000, scoped, tag = 'input window, operand 4, single buffered']
    #allocation11 [shape = 'u8[24576]{0}', space=vmem, size = 0x6000, scoped, tag = 'output window, operand 0']
    %10 = vsyncpa [#allocation3], 0
    %s11 = scalar_lea.sflag [#allocation3], 1
    %12 = vsyncpa %s11, 0
    %13 = vsyncpa [#allocation6], 0
    %14 = vsyncpa [#allocation9], 0
    %15 = vsyncpa [#allocation4], 0
    %s16 = scalar_lea.sflag [#allocation4], 1
    %17 = vsyncpa %s16, 0
    loop: start=0, step=1, limit=4
    $region2: #{tpu_custom_call.1} parent=1 // loop_pre_header
      _
    $region3: #{tpu_custom_call.1} parent=1 // loop_header
      %s19 = sphi 0, %s23
      %p20 = scmp.ge.s32.totalorder %s19, 4
      %s29 = sphi 0, %s31
      %s32 = sphi 0, %s29
      %s33 = sphi 0, %s32
      %s49 = sphi 0, %s33
      %s53 = sphi 0, %s53
      %s55 = sphi 0, %s53
      %s56 = sphi 0, %s55
      %s70 = sphi 0, %s56
      %s74 = sphi 0, %s74
      %s76 = sphi 0, %s74
      %s77 = sphi 0, %s76
      %s91 = sphi 0, %s77
      %s95 = sphi 0, %s95
      %s97 = sphi 0, %s95
      %s98 = sphi 0, %s97
      %s112 = sphi 0, %s98
      %s116 = sphi 0, %s116
      %s118 = sphi 0, %s116
      %s119 = sphi 0, %s118
      %s133 = sphi 0, %s119
      %s139 = sphi 0, %s141
      %s142 = sphi 0, %s139
      %s143 = sphi 0, %s142
      %s159 = sphi 0, %s143
    $region4: #{tpu_custom_call.1} parent=1 // loop_header_branch
      %22 = sbr.rel (%p20) target = $region8
    $region5: #{tpu_custom_call.1} parent=1 // loop_body
      %s24 = ssub.s32 %s19, 1
      %s25 = ssub.s32 %s19, 2
      %s26 = sadd.s32 %s19, 1
      %s27 = ssub.s32 %s19, %s26
      %p28 = scmp.eq.s32.totalorder %s27, 0
      %s30 = sadd.s32 %s29, 1
      %s31 = scalar_select %p28, %s29, %s30
      %p34 = pneg %p28
      %p35 = scmp.eq.s32.totalorder %s19, 1
      %p36 = por %p34, %p35
      %p37 = scmp.ne.s32.totalorder %s29, %s32
      %p38 = scmp.eq.s32.totalorder %s19, 0
      %p39 = por %p37, %p38
      %p40 = scmp.ne.s32.totalorder %s29, %s32
      %p41 = scmp.eq.s32.totalorder %s24, 1
      %p42 = por %p40, %p41
      %p43 = scmp.ne.s32.totalorder %s32, %s33
      %p44 = scmp.eq.s32.totalorder %s24, 0
      %p45 = por %p43, %p44
      %p46 = scmp.ne.s32.totalorder %s32, %s33
      %p47 = scmp.eq.s32.totalorder %s25, 1
      %p48 = por %p46, %p47
      %p50 = scmp.ne.s32.totalorder %s33, %s49
      %p51 = scmp.eq.s32.totalorder %s25, 0
      %p52 = por %p50, %p51
      %s54 = sadd.s32 %s53, 1
      %p57 = scmp.eq.s32.totalorder %s19, 1
      %p58 = scmp.ne.s32.totalorder %s53, %s55
      %p59 = scmp.eq.s32.totalorder %s19, 0
      %p60 = por %p58, %p59
      %p61 = scmp.ne.s32.totalorder %s53, %s55
      %p62 = scmp.eq.s32.totalorder %s24, 1
      %p63 = por %p61, %p62
      %p64 = scmp.ne.s32.totalorder %s55, %s56
      %p65 = scmp.eq.s32.totalorder %s24, 0
      %p66 = por %p64, %p65
      %p67 = scmp.ne.s32.totalorder %s55, %s56
      %p68 = scmp.eq.s32.totalorder %s25, 1
      %p69 = por %p67, %p68
      %p71 = scmp.ne.s32.totalorder %s56, %s70
      %p72 = scmp.eq.s32.totalorder %s25, 0
      %p73 = por %p71, %p72
      %s75 = sadd.s32 %s74, 1
      %p78 = scmp.eq.s32.totalorder %s19, 1
      %p79 = scmp.ne.s32.totalorder %s74, %s76
      %p80 = scmp.eq.s32.totalorder %s19, 0
      %p81 = por %p79, %p80
      %p82 = scmp.ne.s32.totalorder %s74, %s76
      %p83 = scmp.eq.s32.totalorder %s24, 1
      %p84 = por %p82, %p83
      %p85 = scmp.ne.s32.totalorder %s76, %s77
      %p86 = scmp.eq.s32.totalorder %s24, 0
      %p87 = por %p85, %p86
      %p88 = scmp.ne.s32.totalorder %s76, %s77
      %p89 = scmp.eq.s32.totalorder %s25, 1
      %p90 = por %p88, %p89
      %p92 = scmp.ne.s32.totalorder %s77, %s91
      %p93 = scmp.eq.s32.totalorder %s25, 0
      %p94 = por %p92, %p93
      %s96 = sadd.s32 %s95, 1
      %p99 = scmp.eq.s32.totalorder %s19, 1
      %p100 = scmp.ne.s32.totalorder %s95, %s97
      %p101 = scmp.eq.s32.totalorder %s19, 0
      %p102 = por %p100, %p101
      %p103 = scmp.ne.s32.totalorder %s95, %s97
      %p104 = scmp.eq.s32.totalorder %s24, 1
      %p105 = por %p103, %p104
      %p106 = scmp.ne.s32.totalorder %s97, %s98
      %p107 = scmp.eq.s32.totalorder %s24, 0
      %p108 = por %p106, %p107
      %p109 = scmp.ne.s32.totalorder %s97, %s98
      %p110 = scmp.eq.s32.totalorder %s25, 1
      %p111 = por %p109, %p110
      %p113 = scmp.ne.s32.totalorder %s98, %s112
      %p114 = scmp.eq.s32.totalorder %s25, 0
      %p115 = por %p113, %p114
      %s117 = sadd.s32 %s116, 1
      %p120 = scmp.eq.s32.totalorder %s19, 1
      %p121 = scmp.ne.s32.totalorder %s116, %s118
      %p122 = scmp.eq.s32.totalorder %s19, 0
      %p123 = por %p121, %p122
      %p124 = scmp.ne.s32.totalorder %s116, %s118
      %p125 = scmp.eq.s32.totalorder %s24, 1
      %p126 = por %p124, %p125
      %p127 = scmp.ne.s32.totalorder %s118, %s119
      %p128 = scmp.eq.s32.totalorder %s24, 0
      %p129 = por %p127, %p128
      %p130 = scmp.ne.s32.totalorder %s118, %s119
      %p131 = scmp.eq.s32.totalorder %s25, 1
      %p132 = por %p130, %p131
      %p134 = scmp.ne.s32.totalorder %s119, %s133
      %p135 = scmp.eq.s32.totalorder %s25, 0
      %p136 = por %p134, %p135
      %s137 = ssub.s32 %s19, %s26
      %p138 = scmp.eq.s32.totalorder %s137, 0
      %s140 = sadd.s32 %s139, 1
      %s141 = scalar_select %p138, %s139, %s140
      %p144 = pneg %p138
      %p145 = scmp.eq.s32.totalorder %s19, 1
      %p146 = por %p144, %p145
      %p147 = scmp.ne.s32.totalorder %s139, %s142
      %p148 = scmp.eq.s32.totalorder %s19, 0
      %p149 = por %p147, %p148
      %p150 = scmp.ne.s32.totalorder %s139, %s142
      %p151 = scmp.eq.s32.totalorder %s24, 1
      %p152 = por %p150, %p151
      %p153 = scmp.ne.s32.totalorder %s142, %s143
      %p154 = scmp.eq.s32.totalorder %s24, 0
      %p155 = por %p153, %p154
      %p156 = scmp.ne.s32.totalorder %s142, %s143
      %p157 = scmp.eq.s32.totalorder %s25, 1
      %p158 = por %p156, %p157
      %p160 = scmp.ne.s32.totalorder %s143, %s159
      %p161 = scmp.eq.s32.totalorder %s25, 0
      %p162 = por %p160, %p161
      %p163 = scmp.le.s32.totalorder 1, %s19
      %p164 = scmp.lt.s32.totalorder %s19, 3
      %p165 = pnand %p163, %p164
      %p166 = pneg %p165
      // Predicated region
      $region9: #{tpu_custom_call.1} parent=5 // pred_check
        _
      $region10: #{tpu_custom_call.1} parent=5 // pred_check_branch
        %168 = sbr.rel (%p165) target = $region12
      $region11: #{tpu_custom_call.1} parent=5 // pred_region
        %s169 = ssub.s32 %s19, 1
        // Predicated region
        $region13: #{tpu_custom_call.1} parent=11 // pred_check
          %p170 = pneg %p66
        $region14: #{tpu_custom_call.1} parent=11 // pred_check_branch
          %172 = sbr.rel (%p170) target = $region16
        $region15: #{tpu_custom_call.1} parent=11 // pred_region
          %s174 = ssub.s32 55296, 55296
          %175 = vsyncadd [#allocation6], %s174
          %s176 = sshll.u32 [#allocation5], 4
          %s177 = int_to_ptr.vmem [resolvable:$true] %s176
          %182 = dma.hbm_to_vmem [thread:$0]  %s1, 55296, %s177, [#allocation6], 1152, 1152, 72
        $region16: #{tpu_custom_call.1} parent=11 // pred_fallthru
          _
        // Predicated region
        $region17: #{tpu_custom_call.1} parent=11 // pred_check
          %p183 = pneg %p87
        $region18: #{tpu_custom_call.1} parent=11 // pred_check_branch
          %185 = sbr.rel (%p183) target = $region20
        $region19: #{tpu_custom_call.1} parent=11 // pred_region
          %s187 = ssub.s32 18432, 18432
          %188 = vsyncadd [#allocation6], %s187
          %s189 = sshll.u32 [#allocation7], 4
          %s190 = int_to_ptr.vmem [resolvable:$true] %s189
          %195 = dma.hbm_to_vmem [thread:$0]  %s2, 18432, %s190, [#allocation6], 384, 384, 24
        $region20: #{tpu_custom_call.1} parent=11 // pred_fallthru
          _
        // Predicated region
        $region21: #{tpu_custom_call.1} parent=11 // pred_check
          %p196 = pneg %p108
        $region22: #{tpu_custom_call.1} parent=11 // pred_check_branch
          %198 = sbr.rel (%p196) target = $region24
        $region23: #{tpu_custom_call.1} parent=11 // pred_region
          %s200 = ssub.s32 48, 48
          %201 = vsyncadd [#allocation9], %s200
          %s203 = sshll.u32 [#allocation8], 4
          %s204 = int_to_ptr.vmem [resolvable:$true] %s203
          %206 = dma.hbm_to_vmem [thread:$0]  %s3, 48, %s204, [#allocation9]
        $region24: #{tpu_custom_call.1} parent=11 // pred_fallthru
          _
        // Predicated region
        $region25: #{tpu_custom_call.1} parent=11 // pred_check
          %p207 = pneg %p129
        $region26: #{tpu_custom_call.1} parent=11 // pred_check_branch
          %209 = sbr.rel (%p207) target = $region28
        $region27: #{tpu_custom_call.1} parent=11 // pred_region
          %s211 = ssub.s32 128, 128
          %212 = vsyncadd [#allocation9], %s211
          %s214 = sshll.u32 [#allocation10], 4
          %s215 = int_to_ptr.vmem [resolvable:$true] %s214
          %217 = dma.hbm_to_vmem [thread:$0]  %s4, 128, %s215, [#allocation9]
        $region28: #{tpu_custom_call.1} parent=11 // pred_fallthru
          _
      $region12: #{tpu_custom_call.1} parent=5 // pred_fallthru
        _
      %p218 = scmp.lt.s32.totalorder %s19, 2
      // Predicated region
      $region29: #{tpu_custom_call.1} parent=5 // pred_check
        %p219 = pneg %p218
      $region30: #{tpu_custom_call.1} parent=5 // pred_check_branch
        %221 = sbr.rel (%p219) target = $region32
      $region31: #{tpu_custom_call.1} parent=5 // pred_region
        // Predicated region
        $region33: #{tpu_custom_call.1} parent=31 // pred_check
          %p222 = pneg %p39
        $region34: #{tpu_custom_call.1} parent=31 // pred_check_branch
          %224 = sbr.rel (%p222) target = $region36
        $region35: #{tpu_custom_call.1} parent=31 // pred_region
          %s225 = sand.u32 %s29, 1
          %s226 = scalar_lea.sflag [#allocation3], %s225
          %s227 = sand.u32 %s29, 1
          %s228 = smul.addr %s227, 24
          %s229 = scalar_lea.vmem [#allocation2], %s228
          %s231 = ssub.s32 384, 384
          %232 = vsyncadd %s226, %s231
          %s233 = smul.addr %s19, 3
          %s234 = smul.addr %s233, 128
          %s235 = scalar_lea.hbm %s0, %s234
          %s237 = sshll.u32 %s229, 4
          %s238 = int_to_ptr.vmem [resolvable:$true] %s237
          %240 = dma.hbm_to_vmem [thread:$0]  %s235, 384, %s238, %s226
        $region36: #{tpu_custom_call.1} parent=31 // pred_fallthru
          _
      $region32: #{tpu_custom_call.1} parent=5 // pred_fallthru
        _
      %p241 = scmp.le.s32.totalorder 1, %s19
      %p242 = scmp.lt.s32.totalorder %s19, 3
      %p243 = pnand %p241, %p242
      %p244 = pneg %p243
      // Predicated region
      $region37: #{tpu_custom_call.1} parent=5 // pred_check
        _
      $region38: #{tpu_custom_call.1} parent=5 // pred_check_branch
        %246 = sbr.rel (%p243) target = $region40
      $region39: #{tpu_custom_call.1} parent=5 // pred_region
        %s247 = ssub.s32 %s19, 1
        %s248 = sand.u32 %s32, 1
        %s249 = scalar_lea.sflag [#allocation3], %s248
        %s250 = sand.u32 %s32, 1
        %s251 = smul.addr %s250, 24
        %s252 = scalar_lea.vmem [#allocation2], %s251
        // Predicated region
        $region41: #{tpu_custom_call.1} parent=39 // pred_check
          %p253 = pneg %p45
        $region42: #{tpu_custom_call.1} parent=39 // pred_check_branch
          %255 = sbr.rel (%p253) target = $region44
        $region43: #{tpu_custom_call.1} parent=39 // pred_region
          %256 = dma.done %s249, 384
        $region44: #{tpu_custom_call.1} parent=39 // pred_fallthru
          _
        // Predicated region
        $region45: #{tpu_custom_call.1} parent=39 // pred_check
          %p257 = pneg %p66
        $region46: #{tpu_custom_call.1} parent=39 // pred_check_branch
          %259 = sbr.rel (%p257) target = $region48
        $region47: #{tpu_custom_call.1} parent=39 // pred_region
          %260 = dma.done [#allocation6], 55296
        $region48: #{tpu_custom_call.1} parent=39 // pred_fallthru
          _
        // Predicated region
        $region49: #{tpu_custom_call.1} parent=39 // pred_check
          %p261 = pneg %p87
        $region50: #{tpu_custom_call.1} parent=39 // pred_check_branch
          %263 = sbr.rel (%p261) target = $region52
        $region51: #{tpu_custom_call.1} parent=39 // pred_region
          %264 = dma.done [#allocation6], 18432
        $region52: #{tpu_custom_call.1} parent=39 // pred_fallthru
          _
        // Predicated region
        $region53: #{tpu_custom_call.1} parent=39 // pred_check
          %p265 = pneg %p108
        $region54: #{tpu_custom_call.1} parent=39 // pred_check_branch
          %267 = sbr.rel (%p265) target = $region56
        $region55: #{tpu_custom_call.1} parent=39 // pred_region
          %268 = dma.done [#allocation9], 48
        $region56: #{tpu_custom_call.1} parent=39 // pred_fallthru
          _
        // Predicated region
        $region57: #{tpu_custom_call.1} parent=39 // pred_check
          %p269 = pneg %p129
        $region58: #{tpu_custom_call.1} parent=39 // pred_check_branch
          %271 = sbr.rel (%p269) target = $region60
        $region59: #{tpu_custom_call.1} parent=39 // pred_region
          %272 = dma.done [#allocation9], 128
        $region60: #{tpu_custom_call.1} parent=39 // pred_fallthru
          _
        %s273 = sand.u32 %s32, 1
        %s274 = scalar_lea.sflag [#allocation3], %s273
        %s275 = sand.u32 %s32, 1
        %s276 = smul.addr %s275, 24
        %s277 = scalar_lea.vmem [#allocation2], %s276
        %p278 = pneg %p45
        %p279 = pneg %p42
        %p280 = pneg %p66
        %p281 = pneg %p63
        %p282 = pneg %p87
        %p283 = pneg %p84
        %p284 = pneg %p108
        %p285 = pneg %p105
        %p286 = pneg %p129
        %p287 = pneg %p126
        %p288 = pneg %p155
        %p289 = pneg %p152
        %s290 = sand.u32 %s142, 1
        %s291 = scalar_lea.sflag [#allocation4], %s290
        %s292 = sand.u32 %s142, 1
        %s293 = smul.addr %s292, 24
        %s294 = scalar_lea.vmem [#allocation11], %s293
        %v295 = vld [vmem:[%s252] sm:$0xff]
        %v296 = vld [vmem:[%s252 + $0x8] sm:$0xff]
        %v297 = vld [vmem:[%s252 + $0x10] sm:$0xff]
        %v298 = vld [vmem:[#allocation5] sm:$0xff]
        %v299 = vld [vmem:[#allocation5 + $0x8] sm:$0xff]
        %v300 = vld [vmem:[#allocation5 + $0x10] sm:$0xff]
        %v301 = vld [vmem:[#allocation5 + $0x18] sm:$0xff]
        %v302 = vld [vmem:[#allocation5 + $0x20] sm:$0xff]
        %v303 = vld [vmem:[#allocation5 + $0x28] sm:$0xff]
        %v304 = vld [vmem:[#allocation5 + $0x30] sm:$0xff]
        %v305 = vld [vmem:[#allocation5 + $0x38] sm:$0xff]
        %v306 = vld [vmem:[#allocation5 + $0x40] sm:$0xff]
        %v307 = vld [vmem:[#allocation5 + $0x48] sm:$0xff]
        %v308 = vld [vmem:[#allocation5 + $0x50] sm:$0xff]
        %v309 = vld [vmem:[#allocation5 + $0x58] sm:$0xff]
        %v310 = vld [vmem:[#allocation5 + $0x60] sm:$0xff]
        %v311 = vld [vmem:[#allocation5 + $0x68] sm:$0xff]
        %v312 = vld [vmem:[#allocation5 + $0x70] sm:$0xff]
        %v313 = vld [vmem:[#allocation5 + $0x78] sm:$0xff]
        %v314 = vld [vmem:[#allocation5 + $0x80] sm:$0xff]
        %v315 = vld [vmem:[#allocation5 + $0x88] sm:$0xff]
        %v316 = vld [vmem:[#allocation5 + $0x90] sm:$0xff]
        %v317 = vld [vmem:[#allocation5 + $0x98] sm:$0xff]
        %v318 = vld [vmem:[#allocation5 + $0xa0] sm:$0xff]
        %v319 = vld [vmem:[#allocation5 + $0xa8] sm:$0xff]
        %v320 = vld [vmem:[#allocation5 + $0xb0] sm:$0xff]
        %v321 = vld [vmem:[#allocation5 + $0xb8] sm:$0xff]
        %v322 = vld [vmem:[#allocation5 + $0xc0] sm:$0xff]
        %v323 = vld [vmem:[#allocation5 + $0xc8] sm:$0xff]
        %v324 = vld [vmem:[#allocation5 + $0xd0] sm:$0xff]
        %v325 = vld [vmem:[#allocation5 + $0xd8] sm:$0xff]
        %v326 = vld [vmem:[#allocation5 + $0xe0] sm:$0xff]
        %v327 = vld [vmem:[#allocation5 + $0xe8] sm:$0xff]
        %v328 = vld [vmem:[#allocation5 + $0xf0] sm:$0xff]
        %v329 = vld [vmem:[#allocation5 + $0xf8] sm:$0xff]
        %v330 = vld [vmem:[#allocation5 + $0x100] sm:$0xff]
        %v331 = vld [vmem:[#allocation5 + $0x108] sm:$0xff]
        %v332 = vld [vmem:[#allocation5 + $0x110] sm:$0xff]
        %v333 = vld [vmem:[#allocation5 + $0x118] sm:$0xff]
        %v334 = vld [vmem:[#allocation5 + $0x120] sm:$0xff]
        %v335 = vld [vmem:[#allocation5 + $0x128] sm:$0xff]
        %v336 = vld [vmem:[#allocation5 + $0x130] sm:$0xff]
        %v337 = vld [vmem:[#allocation5 + $0x138] sm:$0xff]
        %v338 = vld [vmem:[#allocation5 + $0x140] sm:$0xff]
        %v339 = vld [vmem:[#allocation5 + $0x148] sm:$0xff]
        %v340 = vld [vmem:[#allocation5 + $0x150] sm:$0xff]
        %v341 = vld [vmem:[#allocation5 + $0x158] sm:$0xff]
        %v342 = vld [vmem:[#allocation5 + $0x160] sm:$0xff]
        %v343 = vld [vmem:[#allocation5 + $0x168] sm:$0xff]
        %v344 = vld [vmem:[#allocation5 + $0x170] sm:$0xff]
        %v345 = vld [vmem:[#allocation5 + $0x178] sm:$0xff]
        %v346 = vld [vmem:[#allocation5 + $0x180] sm:$0xff]
        %v347 = vld [vmem:[#allocation5 + $0x188] sm:$0xff]
        %v348 = vld [vmem:[#allocation5 + $0x190] sm:$0xff]
        %v349 = vld [vmem:[#allocation5 + $0x198] sm:$0xff]
        %v350 = vld [vmem:[#allocation5 + $0x1a0] sm:$0xff]
        %v351 = vld [vmem:[#allocation5 + $0x1a8] sm:$0xff]
        %v352 = vld [vmem:[#allocation5 + $0x1b0] sm:$0xff]
        %v353 = vld [vmem:[#allocation5 + $0x1b8] sm:$0xff]
        %v354 = vld [vmem:[#allocation5 + $0x1c0] sm:$0xff]
        %v355 = vld [vmem:[#allocation5 + $0x1c8] sm:$0xff]
        %v356 = vld [vmem:[#allocation5 + $0x1d0] sm:$0xff]
        %v357 = vld [vmem:[#allocation5 + $0x1d8] sm:$0xff]
        %v358 = vld [vmem:[#allocation5 + $0x1e0] sm:$0xff]
        %v359 = vld [vmem:[#allocation5 + $0x1e8] sm:$0xff]
        %v360 = vld [vmem:[#allocation5 + $0x1f0] sm:$0xff]
        %v361 = vld [vmem:[#allocation5 + $0x1f8] sm:$0xff]
        %v362 = vld [vmem:[#allocation5 + $0x200] sm:$0xff]
        %v363 = vld [vmem:[#allocation5 + $0x208] sm:$0xff]
        %v364 = vld [vmem:[#allocation5 + $0x210] sm:$0xff]
        %v365 = vld [vmem:[#allocation5 + $0x218] sm:$0xff]
        %v366 = vld [vmem:[#allocation5 + $0x220] sm:$0xff]
        %v367 = vld [vmem:[#allocation5 + $0x228] sm:$0xff]
        %v368 = vld [vmem:[#allocation5 + $0x230] sm:$0xff]
        %v369 = vld [vmem:[#allocation5 + $0x238] sm:$0xff]
        %v370 = vld [vmem:[#allocation5 + $0x240] sm:$0xff]
        %v371 = vld [vmem:[#allocation5 + $0x248] sm:$0xff]
        %v372 = vld [vmem:[#allocation5 + $0x250] sm:$0xff]
        %v373 = vld [vmem:[#allocation5 + $0x258] sm:$0xff]
        %v374 = vld [vmem:[#allocation5 + $0x260] sm:$0xff]
        %v375 = vld [vmem:[#allocation5 + $0x268] sm:$0xff]
        %v376 = vld [vmem:[#allocation5 + $0x270] sm:$0xff]
        %v377 = vld [vmem:[#allocation5 + $0x278] sm:$0xff]
        %v378 = vld [vmem:[#allocation5 + $0x280] sm:$0xff]
        %v379 = vld [vmem:[#allocation5 + $0x288] sm:$0xff]
        %v380 = vld [vmem:[#allocation5 + $0x290] sm:$0xff]
        %v381 = vld [vmem:[#allocation5 + $0x298] sm:$0xff]
        %v382 = vld [vmem:[#allocation5 + $0x2a0] sm:$0xff]
        %v383 = vld [vmem:[#allocation5 + $0x2a8] sm:$0xff]
        %v384 = vld [vmem:[#allocation5 + $0x2b0] sm:$0xff]
        %v385 = vld [vmem:[#allocation5 + $0x2b8] sm:$0xff]
        %v386 = vld [vmem:[#allocation5 + $0x2c0] sm:$0xff]
        %v387 = vld [vmem:[#allocation5 + $0x2c8] sm:$0xff]
        %v388 = vld [vmem:[#allocation5 + $0x2d0] sm:$0xff]
        %v389 = vld [vmem:[#allocation5 + $0x2d8] sm:$0xff]
        %v390 = vld [vmem:[#allocation5 + $0x2e0] sm:$0xff]
        %v391 = vld [vmem:[#allocation5 + $0x2e8] sm:$0xff]
        %v392 = vld [vmem:[#allocation5 + $0x2f0] sm:$0xff]
        %v393 = vld [vmem:[#allocation5 + $0x2f8] sm:$0xff]
        %v394 = vld [vmem:[#allocation5 + $0x300] sm:$0xff]
        %v395 = vld [vmem:[#allocation5 + $0x308] sm:$0xff]
        %v396 = vld [vmem:[#allocation5 + $0x310] sm:$0xff]
        %v397 = vld [vmem:[#allocation5 + $0x318] sm:$0xff]
        %v398 = vld [vmem:[#allocation5 + $0x320] sm:$0xff]
        %v399 = vld [vmem:[#allocation5 + $0x328] sm:$0xff]
        %v400 = vld [vmem:[#allocation5 + $0x330] sm:$0xff]
        %v401 = vld [vmem:[#allocation5 + $0x338] sm:$0xff]
        %v402 = vld [vmem:[#allocation5 + $0x340] sm:$0xff]
        %v403 = vld [vmem:[#allocation5 + $0x348] sm:$0xff]
        %v404 = vld [vmem:[#allocation5 + $0x350] sm:$0xff]
        %v405 = vld [vmem:[#allocation5 + $0x358] sm:$0xff]
        %v406 = vld [vmem:[#allocation5 + $0x360] sm:$0xff]
        %v407 = vld [vmem:[#allocation5 + $0x368] sm:$0xff]
        %v408 = vld [vmem:[#allocation5 + $0x370] sm:$0xff]
        %v409 = vld [vmem:[#allocation5 + $0x378] sm:$0xff]
        %v410 = vld [vmem:[#allocation5 + $0x380] sm:$0xff]
        %v411 = vld [vmem:[#allocation5 + $0x388] sm:$0xff]
        %v412 = vld [vmem:[#allocation5 + $0x390] sm:$0xff]
        %v413 = vld [vmem:[#allocation5 + $0x398] sm:$0xff]
        %v414 = vld [vmem:[#allocation5 + $0x3a0] sm:$0xff]
        %v415 = vld [vmem:[#allocation5 + $0x3a8] sm:$0xff]
        %v416 = vld [vmem:[#allocation5 + $0x3b0] sm:$0xff]
        %v417 = vld [vmem:[#allocation5 + $0x3b8] sm:$0xff]
        %v418 = vld [vmem:[#allocation5 + $0x3c0] sm:$0xff]
        %v419 = vld [vmem:[#allocation5 + $0x3c8] sm:$0xff]
        %v420 = vld [vmem:[#allocation5 + $0x3d0] sm:$0xff]
        %v421 = vld [vmem:[#allocation5 + $0x3d8] sm:$0xff]
        %v422 = vld [vmem:[#allocation5 + $0x3e0] sm:$0xff]
        %v423 = vld [vmem:[#allocation5 + $0x3e8] sm:$0xff]
        %v424 = vld [vmem:[#allocation5 + $0x3f0] sm:$0xff]
        %v425 = vld [vmem:[#allocation5 + $0x3f8] sm:$0xff]
        %v426 = vld [vmem:[#allocation5 + $0x400] sm:$0xff]
        %v427 = vld [vmem:[#allocation5 + $0x408] sm:$0xff]
        %v428 = vld [vmem:[#allocation5 + $0x410] sm:$0xff]
        %v429 = vld [vmem:[#allocation5 + $0x418] sm:$0xff]
        %v430 = vld [vmem:[#allocation5 + $0x420] sm:$0xff]
        %v431 = vld [vmem:[#allocation5 + $0x428] sm:$0xff]
        %v432 = vld [vmem:[#allocation5 + $0x430] sm:$0xff]
        %v433 = vld [vmem:[#allocation5 + $0x438] sm:$0xff]
        %v434 = vld [vmem:[#allocation5 + $0x440] sm:$0xff]
        %v435 = vld [vmem:[#allocation5 + $0x448] sm:$0xff]
        %v436 = vld [vmem:[#allocation5 + $0x450] sm:$0xff]
        %v437 = vld [vmem:[#allocation5 + $0x458] sm:$0xff]
        %v438 = vld [vmem:[#allocation5 + $0x460] sm:$0xff]
        %v439 = vld [vmem:[#allocation5 + $0x468] sm:$0xff]
        %v440 = vld [vmem:[#allocation5 + $0x470] sm:$0xff]
        %v441 = vld [vmem:[#allocation5 + $0x478] sm:$0xff]
        %v442 = vld [vmem:[#allocation5 + $0x480] sm:$0xff]
        %v443 = vld [vmem:[#allocation5 + $0x488] sm:$0xff]
        %v444 = vld [vmem:[#allocation5 + $0x490] sm:$0xff]
        %v445 = vld [vmem:[#allocation5 + $0x498] sm:$0xff]
        %v446 = vld [vmem:[#allocation5 + $0x4a0] sm:$0xff]
        %v447 = vld [vmem:[#allocation5 + $0x4a8] sm:$0xff]
        %v448 = vld [vmem:[#allocation5 + $0x4b0] sm:$0xff]
        %v449 = vld [vmem:[#allocation5 + $0x4b8] sm:$0xff]
        %v450 = vld [vmem:[#allocation5 + $0x4c0] sm:$0xff]
        %v451 = vld [vmem:[#allocation5 + $0x4c8] sm:$0xff]
        %v452 = vld [vmem:[#allocation5 + $0x4d0] sm:$0xff]
        %v453 = vld [vmem:[#allocation5 + $0x4d8] sm:$0xff]
        %v454 = vld [vmem:[#allocation5 + $0x4e0] sm:$0xff]
        %v455 = vld [vmem:[#allocation5 + $0x4e8] sm:$0xff]
        %v456 = vld [vmem:[#allocation5 + $0x4f0] sm:$0xff]
        %v457 = vld [vmem:[#allocation5 + $0x4f8] sm:$0xff]
        %v458 = vld [vmem:[#allocation5 + $0x500] sm:$0xff]
        %v459 = vld [vmem:[#allocation5 + $0x508] sm:$0xff]
        %v460 = vld [vmem:[#allocation5 + $0x510] sm:$0xff]
        %v461 = vld [vmem:[#allocation5 + $0x518] sm:$0xff]
        %v462 = vld [vmem:[#allocation5 + $0x520] sm:$0xff]
        %v463 = vld [vmem:[#allocation5 + $0x528] sm:$0xff]
        %v464 = vld [vmem:[#allocation5 + $0x530] sm:$0xff]
        %v465 = vld [vmem:[#allocation5 + $0x538] sm:$0xff]
        %v466 = vld [vmem:[#allocation5 + $0x540] sm:$0xff]
        %v467 = vld [vmem:[#allocation5 + $0x548] sm:$0xff]
        %v468 = vld [vmem:[#allocation5 + $0x550] sm:$0xff]
        %v469 = vld [vmem:[#allocation5 + $0x558] sm:$0xff]
        %v470 = vld [vmem:[#allocation5 + $0x560] sm:$0xff]
        %v471 = vld [vmem:[#allocation5 + $0x568] sm:$0xff]
        %v472 = vld [vmem:[#allocation5 + $0x570] sm:$0xff]
        %v473 = vld [vmem:[#allocation5 + $0x578] sm:$0xff]
        %v474 = vld [vmem:[#allocation5 + $0x580] sm:$0xff]
        %v475 = vld [vmem:[#allocation5 + $0x588] sm:$0xff]
        %v476 = vld [vmem:[#allocation5 + $0x590] sm:$0xff]
        %v477 = vld [vmem:[#allocation5 + $0x598] sm:$0xff]
        %v478 = vld [vmem:[#allocation5 + $0x5a0] sm:$0xff]
        %v479 = vld [vmem:[#allocation5 + $0x5a8] sm:$0xff]
        %v480 = vld [vmem:[#allocation5 + $0x5b0] sm:$0xff]
        %v481 = vld [vmem:[#allocation5 + $0x5b8] sm:$0xff]
        %v482 = vld [vmem:[#allocation5 + $0x5c0] sm:$0xff]
        %v483 = vld [vmem:[#allocation5 + $0x5c8] sm:$0xff]
        %v484 = vld [vmem:[#allocation5 + $0x5d0] sm:$0xff]
        %v485 = vld [vmem:[#allocation5 + $0x5d8] sm:$0xff]
        %v486 = vld [vmem:[#allocation5 + $0x5e0] sm:$0xff]
        %v487 = vld [vmem:[#allocation5 + $0x5e8] sm:$0xff]
        %v488 = vld [vmem:[#allocation5 + $0x5f0] sm:$0xff]
        %v489 = vld [vmem:[#allocation5 + $0x5f8] sm:$0xff]
        %v490 = vld [vmem:[#allocation5 + $0x600] sm:$0xff]
        %v491 = vld [vmem:[#allocation5 + $0x608] sm:$0xff]
        %v492 = vld [vmem:[#allocation5 + $0x610] sm:$0xff]
        %v493 = vld [vmem:[#allocation5 + $0x618] sm:$0xff]
        %v494 = vld [vmem:[#allocation5 + $0x620] sm:$0xff]
        %v495 = vld [vmem:[#allocation5 + $0x628] sm:$0xff]
        %v496 = vld [vmem:[#allocation5 + $0x630] sm:$0xff]
        %v497 = vld [vmem:[#allocation5 + $0x638] sm:$0xff]
        %v498 = vld [vmem:[#allocation5 + $0x640] sm:$0xff]
        %v499 = vld [vmem:[#allocation5 + $0x648] sm:$0xff]
        %v500 = vld [vmem:[#allocation5 + $0x650] sm:$0xff]
        %v501 = vld [vmem:[#allocation5 + $0x658] sm:$0xff]
        %v502 = vld [vmem:[#allocation5 + $0x660] sm:$0xff]
        %v503 = vld [vmem:[#allocation5 + $0x668] sm:$0xff]
        %v504 = vld [vmem:[#allocation5 + $0x670] sm:$0xff]
        %v505 = vld [vmem:[#allocation5 + $0x678] sm:$0xff]
        %v506 = vld [vmem:[#allocation5 + $0x680] sm:$0xff]
        %v507 = vld [vmem:[#allocation5 + $0x688] sm:$0xff]
        %v508 = vld [vmem:[#allocation5 + $0x690] sm:$0xff]
        %v509 = vld [vmem:[#allocation5 + $0x698] sm:$0xff]
        %v510 = vld [vmem:[#allocation5 + $0x6a0] sm:$0xff]
        %v511 = vld [vmem:[#allocation5 + $0x6a8] sm:$0xff]
        %v512 = vld [vmem:[#allocation5 + $0x6b0] sm:$0xff]
        %v513 = vld [vmem:[#allocation5 + $0x6b8] sm:$0xff]
        %v514 = vld [vmem:[#allocation5 + $0x6c0] sm:$0xff]
        %v515 = vld [vmem:[#allocation5 + $0x6c8] sm:$0xff]
        %v516 = vld [vmem:[#allocation5 + $0x6d0] sm:$0xff]
        %v517 = vld [vmem:[#allocation5 + $0x6d8] sm:$0xff]
        %v518 = vld [vmem:[#allocation5 + $0x6e0] sm:$0xff]
        %v519 = vld [vmem:[#allocation5 + $0x6e8] sm:$0xff]
        %v520 = vld [vmem:[#allocation5 + $0x6f0] sm:$0xff]
        %v521 = vld [vmem:[#allocation5 + $0x6f8] sm:$0xff]
        %v522 = vld [vmem:[#allocation5 + $0x700] sm:$0xff]
        %v523 = vld [vmem:[#allocation5 + $0x708] sm:$0xff]
        %v524 = vld [vmem:[#allocation5 + $0x710] sm:$0xff]
        %v525 = vld [vmem:[#allocation5 + $0x718] sm:$0xff]
        %v526 = vld [vmem:[#allocation5 + $0x720] sm:$0xff]
        %v527 = vld [vmem:[#allocation5 + $0x728] sm:$0xff]
        %v528 = vld [vmem:[#allocation5 + $0x730] sm:$0xff]
        %v529 = vld [vmem:[#allocation5 + $0x738] sm:$0xff]
        %v530 = vld [vmem:[#allocation5 + $0x740] sm:$0xff]
        %v531 = vld [vmem:[#allocation5 + $0x748] sm:$0xff]
        %v532 = vld [vmem:[#allocation5 + $0x750] sm:$0xff]
        %v533 = vld [vmem:[#allocation5 + $0x758] sm:$0xff]
        %v534 = vld [vmem:[#allocation5 + $0x760] sm:$0xff]
        %v535 = vld [vmem:[#allocation5 + $0x768] sm:$0xff]
        %v536 = vld [vmem:[#allocation5 + $0x770] sm:$0xff]
        %v537 = vld [vmem:[#allocation5 + $0x778] sm:$0xff]
        %v538 = vld [vmem:[#allocation5 + $0x780] sm:$0xff]
        %v539 = vld [vmem:[#allocation5 + $0x788] sm:$0xff]
        %v540 = vld [vmem:[#allocation5 + $0x790] sm:$0xff]
        %v541 = vld [vmem:[#allocation5 + $0x798] sm:$0xff]
        %v542 = vld [vmem:[#allocation5 + $0x7a0] sm:$0xff]
        %v543 = vld [vmem:[#allocation5 + $0x7a8] sm:$0xff]
        %v544 = vld [vmem:[#allocation5 + $0x7b0] sm:$0xff]
        %v545 = vld [vmem:[#allocation5 + $0x7b8] sm:$0xff]
        %v546 = vld [vmem:[#allocation5 + $0x7c0] sm:$0xff]
        %v547 = vld [vmem:[#allocation5 + $0x7c8] sm:$0xff]
        %v548 = vld [vmem:[#allocation5 + $0x7d0] sm:$0xff]
        %v549 = vld [vmem:[#allocation5 + $0x7d8] sm:$0xff]
        %v550 = vld [vmem:[#allocation5 + $0x7e0] sm:$0xff]
        %v551 = vld [vmem:[#allocation5 + $0x7e8] sm:$0xff]
        %v552 = vld [vmem:[#allocation5 + $0x7f0] sm:$0xff]
        %v553 = vld [vmem:[#allocation5 + $0x7f8] sm:$0xff]
        %v554 = vld [vmem:[#allocation5 + $0x800] sm:$0xff]
        %v555 = vld [vmem:[#allocation5 + $0x808] sm:$0xff]
        %v556 = vld [vmem:[#allocation5 + $0x810] sm:$0xff]
        %v557 = vld [vmem:[#allocation5 + $0x818] sm:$0xff]
        %v558 = vld [vmem:[#allocation5 + $0x820] sm:$0xff]
        %v559 = vld [vmem:[#allocation5 + $0x828] sm:$0xff]
        %v560 = vld [vmem:[#allocation5 + $0x830] sm:$0xff]
        %v561 = vld [vmem:[#allocation5 + $0x838] sm:$0xff]
        %v562 = vld [vmem:[#allocation5 + $0x840] sm:$0xff]
        %v563 = vld [vmem:[#allocation5 + $0x848] sm:$0xff]
        %v564 = vld [vmem:[#allocation5 + $0x850] sm:$0xff]
        %v565 = vld [vmem:[#allocation5 + $0x858] sm:$0xff]
        %v566 = vld [vmem:[#allocation5 + $0x860] sm:$0xff]
        %v567 = vld [vmem:[#allocation5 + $0x868] sm:$0xff]
        %v568 = vld [vmem:[#allocation5 + $0x870] sm:$0xff]
        %v569 = vld [vmem:[#allocation5 + $0x878] sm:$0xff]
        %v570 = vld [vmem:[#allocation5 + $0x880] sm:$0xff]
        %v571 = vld [vmem:[#allocation5 + $0x888] sm:$0xff]
        %v572 = vld [vmem:[#allocation5 + $0x890] sm:$0xff]
        %v573 = vld [vmem:[#allocation5 + $0x898] sm:$0xff]
        %v574 = vld [vmem:[#allocation5 + $0x8a0] sm:$0xff]
        %v575 = vld [vmem:[#allocation5 + $0x8a8] sm:$0xff]
        %v576 = vld [vmem:[#allocation5 + $0x8b0] sm:$0xff]
        %v577 = vld [vmem:[#allocation5 + $0x8b8] sm:$0xff]
        %v578 = vld [vmem:[#allocation5 + $0x8c0] sm:$0xff]
        %v579 = vld [vmem:[#allocation5 + $0x8c8] sm:$0xff]
        %v580 = vld [vmem:[#allocation5 + $0x8d0] sm:$0xff]
        %v581 = vld [vmem:[#allocation5 + $0x8d8] sm:$0xff]
        %v582 = vld [vmem:[#allocation5 + $0x8e0] sm:$0xff]
        %v583 = vld [vmem:[#allocation5 + $0x8e8] sm:$0xff]
        %v584 = vld [vmem:[#allocation5 + $0x8f0] sm:$0xff]
        %v585 = vld [vmem:[#allocation5 + $0x8f8] sm:$0xff]
        %v586 = vld [vmem:[#allocation5 + $0x900] sm:$0xff]
        %v587 = vld [vmem:[#allocation5 + $0x908] sm:$0xff]
        %v588 = vld [vmem:[#allocation5 + $0x910] sm:$0xff]
        %v589 = vld [vmem:[#allocation5 + $0x918] sm:$0xff]
        %v590 = vld [vmem:[#allocation5 + $0x920] sm:$0xff]
        %v591 = vld [vmem:[#allocation5 + $0x928] sm:$0xff]
        %v592 = vld [vmem:[#allocation5 + $0x930] sm:$0xff]
        %v593 = vld [vmem:[#allocation5 + $0x938] sm:$0xff]
        %v594 = vld [vmem:[#allocation5 + $0x940] sm:$0xff]
        %v595 = vld [vmem:[#allocation5 + $0x948] sm:$0xff]
        %v596 = vld [vmem:[#allocation5 + $0x950] sm:$0xff]
        %v597 = vld [vmem:[#allocation5 + $0x958] sm:$0xff]
        %v598 = vld [vmem:[#allocation5 + $0x960] sm:$0xff]
        %v599 = vld [vmem:[#allocation5 + $0x968] sm:$0xff]
        %v600 = vld [vmem:[#allocation5 + $0x970] sm:$0xff]
        %v601 = vld [vmem:[#allocation5 + $0x978] sm:$0xff]
        %v602 = vld [vmem:[#allocation5 + $0x980] sm:$0xff]
        %v603 = vld [vmem:[#allocation5 + $0x988] sm:$0xff]
        %v604 = vld [vmem:[#allocation5 + $0x990] sm:$0xff]
        %v605 = vld [vmem:[#allocation5 + $0x998] sm:$0xff]
        %v606 = vld [vmem:[#allocation5 + $0x9a0] sm:$0xff]
        %v607 = vld [vmem:[#allocation5 + $0x9a8] sm:$0xff]
        %v608 = vld [vmem:[#allocation5 + $0x9b0] sm:$0xff]
        %v609 = vld [vmem:[#allocation5 + $0x9b8] sm:$0xff]
        %v610 = vld [vmem:[#allocation5 + $0x9c0] sm:$0xff]
        %v611 = vld [vmem:[#allocation5 + $0x9c8] sm:$0xff]
        %v612 = vld [vmem:[#allocation5 + $0x9d0] sm:$0xff]
        %v613 = vld [vmem:[#allocation5 + $0x9d8] sm:$0xff]
        %v614 = vld [vmem:[#allocation5 + $0x9e0] sm:$0xff]
        %v615 = vld [vmem:[#allocation5 + $0x9e8] sm:$0xff]
        %v616 = vld [vmem:[#allocation5 + $0x9f0] sm:$0xff]
        %v617 = vld [vmem:[#allocation5 + $0x9f8] sm:$0xff]
        %v618 = vld [vmem:[#allocation5 + $0xa00] sm:$0xff]
        %v619 = vld [vmem:[#allocation5 + $0xa08] sm:$0xff]
        %v620 = vld [vmem:[#allocation5 + $0xa10] sm:$0xff]
        %v621 = vld [vmem:[#allocation5 + $0xa18] sm:$0xff]
        %v622 = vld [vmem:[#allocation5 + $0xa20] sm:$0xff]
        %v623 = vld [vmem:[#allocation5 + $0xa28] sm:$0xff]
        %v624 = vld [vmem:[#allocation5 + $0xa30] sm:$0xff]
        %v625 = vld [vmem:[#allocation5 + $0xa38] sm:$0xff]
        %v626 = vld [vmem:[#allocation5 + $0xa40] sm:$0xff]
        %v627 = vld [vmem:[#allocation5 + $0xa48] sm:$0xff]
        %v628 = vld [vmem:[#allocation5 + $0xa50] sm:$0xff]
        %v629 = vld [vmem:[#allocation5 + $0xa58] sm:$0xff]
        %v630 = vld [vmem:[#allocation5 + $0xa60] sm:$0xff]
        %v631 = vld [vmem:[#allocation5 + $0xa68] sm:$0xff]
        %v632 = vld [vmem:[#allocation5 + $0xa70] sm:$0xff]
        %v633 = vld [vmem:[#allocation5 + $0xa78] sm:$0xff]
        %v634 = vld [vmem:[#allocation5 + $0xa80] sm:$0xff]
        %v635 = vld [vmem:[#allocation5 + $0xa88] sm:$0xff]
        %v636 = vld [vmem:[#allocation5 + $0xa90] sm:$0xff]
        %v637 = vld [vmem:[#allocation5 + $0xa98] sm:$0xff]
        %v638 = vld [vmem:[#allocation5 + $0xaa0] sm:$0xff]
        %v639 = vld [vmem:[#allocation5 + $0xaa8] sm:$0xff]
        %v640 = vld [vmem:[#allocation5 + $0xab0] sm:$0xff]
        %v641 = vld [vmem:[#allocation5 + $0xab8] sm:$0xff]
        %v642 = vld [vmem:[#allocation5 + $0xac0] sm:$0xff]
        %v643 = vld [vmem:[#allocation5 + $0xac8] sm:$0xff]
        %v644 = vld [vmem:[#allocation5 + $0xad0] sm:$0xff]
        %v645 = vld [vmem:[#allocation5 + $0xad8] sm:$0xff]
        %v646 = vld [vmem:[#allocation5 + $0xae0] sm:$0xff]
        %v647 = vld [vmem:[#allocation5 + $0xae8] sm:$0xff]
        %v648 = vld [vmem:[#allocation5 + $0xaf0] sm:$0xff]
        %v649 = vld [vmem:[#allocation5 + $0xaf8] sm:$0xff]
        %v650 = vld [vmem:[#allocation5 + $0xb00] sm:$0xff]
        %v651 = vld [vmem:[#allocation5 + $0xb08] sm:$0xff]
        %v652 = vld [vmem:[#allocation5 + $0xb10] sm:$0xff]
        %v653 = vld [vmem:[#allocation5 + $0xb18] sm:$0xff]
        %v654 = vld [vmem:[#allocation5 + $0xb20] sm:$0xff]
        %v655 = vld [vmem:[#allocation5 + $0xb28] sm:$0xff]
        %v656 = vld [vmem:[#allocation5 + $0xb30] sm:$0xff]
        %v657 = vld [vmem:[#allocation5 + $0xb38] sm:$0xff]
        %v658 = vld [vmem:[#allocation5 + $0xb40] sm:$0xff]
        %v659 = vld [vmem:[#allocation5 + $0xb48] sm:$0xff]
        %v660 = vld [vmem:[#allocation5 + $0xb50] sm:$0xff]
        %v661 = vld [vmem:[#allocation5 + $0xb58] sm:$0xff]
        %v662 = vld [vmem:[#allocation5 + $0xb60] sm:$0xff]
        %v663 = vld [vmem:[#allocation5 + $0xb68] sm:$0xff]
        %v664 = vld [vmem:[#allocation5 + $0xb70] sm:$0xff]
        %v665 = vld [vmem:[#allocation5 + $0xb78] sm:$0xff]
        %v666 = vld [vmem:[#allocation5 + $0xb80] sm:$0xff]
        %v667 = vld [vmem:[#allocation5 + $0xb88] sm:$0xff]
        %v668 = vld [vmem:[#allocation5 + $0xb90] sm:$0xff]
        %v669 = vld [vmem:[#allocation5 + $0xb98] sm:$0xff]
        %v670 = vld [vmem:[#allocation5 + $0xba0] sm:$0xff]
        %v671 = vld [vmem:[#allocation5 + $0xba8] sm:$0xff]
        %v672 = vld [vmem:[#allocation5 + $0xbb0] sm:$0xff]
        %v673 = vld [vmem:[#allocation5 + $0xbb8] sm:$0xff]
        %v674 = vld [vmem:[#allocation5 + $0xbc0] sm:$0xff]
        %v675 = vld [vmem:[#allocation5 + $0xbc8] sm:$0xff]
        %v676 = vld [vmem:[#allocation5 + $0xbd0] sm:$0xff]
        %v677 = vld [vmem:[#allocation5 + $0xbd8] sm:$0xff]
        %v678 = vld [vmem:[#allocation5 + $0xbe0] sm:$0xff]
        %v679 = vld [vmem:[#allocation5 + $0xbe8] sm:$0xff]
        %v680 = vld [vmem:[#allocation5 + $0xbf0] sm:$0xff]
        %v681 = vld [vmem:[#allocation5 + $0xbf8] sm:$0xff]
        %v682 = vld [vmem:[#allocation5 + $0xc00] sm:$0xff]
        %v683 = vld [vmem:[#allocation5 + $0xc08] sm:$0xff]
        %v684 = vld [vmem:[#allocation5 + $0xc10] sm:$0xff]
        %v685 = vld [vmem:[#allocation5 + $0xc18] sm:$0xff]
        %v686 = vld [vmem:[#allocation5 + $0xc20] sm:$0xff]
        %v687 = vld [vmem:[#allocation5 + $0xc28] sm:$0xff]
        %v688 = vld [vmem:[#allocation5 + $0xc30] sm:$0xff]
        %v689 = vld [vmem:[#allocation5 + $0xc38] sm:$0xff]
        %v690 = vld [vmem:[#allocation5 + $0xc40] sm:$0xff]
        %v691 = vld [vmem:[#allocation5 + $0xc48] sm:$0xff]
        %v692 = vld [vmem:[#allocation5 + $0xc50] sm:$0xff]
        %v693 = vld [vmem:[#allocation5 + $0xc58] sm:$0xff]
        %v694 = vld [vmem:[#allocation5 + $0xc60] sm:$0xff]
        %v695 = vld [vmem:[#allocation5 + $0xc68] sm:$0xff]
        %v696 = vld [vmem:[#allocation5 + $0xc70] sm:$0xff]
        %v697 = vld [vmem:[#allocation5 + $0xc78] sm:$0xff]
        %v698 = vld [vmem:[#allocation5 + $0xc80] sm:$0xff]
        %v699 = vld [vmem:[#allocation5 + $0xc88] sm:$0xff]
        %v700 = vld [vmem:[#allocation5 + $0xc90] sm:$0xff]
        %v701 = vld [vmem:[#allocation5 + $0xc98] sm:$0xff]
        %v702 = vld [vmem:[#allocation5 + $0xca0] sm:$0xff]
        %v703 = vld [vmem:[#allocation5 + $0xca8] sm:$0xff]
        %v704 = vld [vmem:[#allocation5 + $0xcb0] sm:$0xff]
        %v705 = vld [vmem:[#allocation5 + $0xcb8] sm:$0xff]
        %v706 = vld [vmem:[#allocation5 + $0xcc0] sm:$0xff]
        %v707 = vld [vmem:[#allocation5 + $0xcc8] sm:$0xff]
        %v708 = vld [vmem:[#allocation5 + $0xcd0] sm:$0xff]
        %v709 = vld [vmem:[#allocation5 + $0xcd8] sm:$0xff]
        %v710 = vld [vmem:[#allocation5 + $0xce0] sm:$0xff]
        %v711 = vld [vmem:[#allocation5 + $0xce8] sm:$0xff]
        %v712 = vld [vmem:[#allocation5 + $0xcf0] sm:$0xff]
        %v713 = vld [vmem:[#allocation5 + $0xcf8] sm:$0xff]
        %v714 = vld [vmem:[#allocation5 + $0xd00] sm:$0xff]
        %v715 = vld [vmem:[#allocation5 + $0xd08] sm:$0xff]
        %v716 = vld [vmem:[#allocation5 + $0xd10] sm:$0xff]
        %v717 = vld [vmem:[#allocation5 + $0xd18] sm:$0xff]
        %v718 = vld [vmem:[#allocation5 + $0xd20] sm:$0xff]
        %v719 = vld [vmem:[#allocation5 + $0xd28] sm:$0xff]
        %v720 = vld [vmem:[#allocation5 + $0xd30] sm:$0xff]
        %v721 = vld [vmem:[#allocation5 + $0xd38] sm:$0xff]
        %v722 = vld [vmem:[#allocation5 + $0xd40] sm:$0xff]
        %v723 = vld [vmem:[#allocation5 + $0xd48] sm:$0xff]
        %v724 = vld [vmem:[#allocation5 + $0xd50] sm:$0xff]
        %v725 = vld [vmem:[#allocation5 + $0xd58] sm:$0xff]
        %v726 = vld [vmem:[#allocation5 + $0xd60] sm:$0xff]
        %v727 = vld [vmem:[#allocation5 + $0xd68] sm:$0xff]
        %v728 = vld [vmem:[#allocation5 + $0xd70] sm:$0xff]
        %v729 = vld [vmem:[#allocation5 + $0xd78] sm:$0xff]
        %730 = vmatprep.subr.mxu0 %v434
        %731 = vmatpush1.msra.mxu0 %v433
        %732 = vmatprep.subr.mxu0 %v425
        %733 = vmatpush1.msra.mxu0 %v424
        %734 = vmatprep.subr.mxu0 %v416
        %735 = vmatpush1.msra.mxu0 %v415
        %736 = vmatprep.subr.mxu0 %v407
        %737 = vmatpush1.msra.mxu0 %v406
        %738 = vmatprep.subr.mxu0 %v398
        %739 = vmatpush1.msra.mxu0 %v397
        %740 = vmatprep.subr.mxu0 %v389
        %741 = vmatpush1.msra.mxu0 %v388
        %742 = vmatprep.subr.mxu0 %v380
        %743 = vmatpush1.msra.mxu0 %v379
        %744 = vmatprep.subr.mxu0 %v371
        %745 = vmatpush1.msra.mxu0 %v370
        %746 = vmatprep.subr.mxu0 %v362
        %747 = vmatpush1.msra.mxu0 %v361
        %748 = vmatprep.subr.mxu0 %v353
        %749 = vmatpush1.msra.mxu0 %v352
        %750 = vmatprep.subr.mxu0 %v344
        %751 = vmatpush1.msra.mxu0 %v343
        %752 = vmatprep.subr.mxu0 %v335
        %753 = vmatpush1.msra.mxu0 %v334
        %754 = vmatprep.subr.mxu0 %v326
        %755 = vmatpush1.msra.mxu0 %v325
        %756 = vmatprep.subr.mxu0 %v317
        %757 = vmatpush1.msra.mxu0 %v316
        %758 = vmatprep.subr.mxu0 %v308
        %759 = vmatpush1.msra.mxu0 %v307
        %760 = vmatprep.subr.mxu0 %v299
        %761 = vmatpush1.msra.mxu0 %v298
        %762 = vmatprep.subr.mxu0 %v578
        %763 = vmatpush2.msra.mxu0 %v577
        %764 = vmatprep.subr.mxu0 %v569
        %765 = vmatpush2.msra.mxu0 %v568
        %766 = vmatprep.subr.mxu0 %v560
        %767 = vmatpush2.msra.mxu0 %v559
        %768 = vmatprep.subr.mxu0 %v551
        %769 = vmatpush2.msra.mxu0 %v550
        %770 = vmatprep.subr.mxu0 %v542
        %771 = vmatpush2.msra.mxu0 %v541
        %772 = vmatprep.subr.mxu0 %v533
        %773 = vmatpush2.msra.mxu0 %v532
        %774 = vmatprep.subr.mxu0 %v524
        %775 = vmatpush2.msra.mxu0 %v523
        %776 = vmatprep.subr.mxu0 %v515
        %777 = vmatpush2.msra.mxu0 %v514
        %778 = vmatprep.subr.mxu0 %v506
        %779 = vmatpush2.msra.mxu0 %v505
        %780 = vmatprep.subr.mxu0 %v497
        %781 = vmatpush2.msra.mxu0 %v496
        %782 = vmatprep.subr.mxu0 %v488
        %783 = vmatpush2.msra.mxu0 %v487
        %784 = vmatprep.subr.mxu0 %v479
        %785 = vmatpush2.msra.mxu0 %v478
        %786 = vmatprep.subr.mxu0 %v470
        %787 = vmatpush2.msra.mxu0 %v469
        %788 = vmatprep.subr.mxu0 %v461
        %789 = vmatpush2.msra.mxu0 %v460
        %790 = vmatprep.subr.mxu0 %v452
        %791 = vmatpush2.msra.mxu0 %v451
        %792 = vmatprep.subr.mxu0 %v443
        %793 = vmatpush2.msra.mxu0 %v442
        %794 = vmatprep.mubr.f32.mxu0 %v296
        %795 = vmatmul.mubr.f32.gmra.mxu0 %v295
        %v796 = vpop.f32.mrf.mxu0
        %v797 = vadd.f32 0.0, %v796
        %v798 = vpop.f32.mrf.mxu0
        %v799 = vadd.f32 0.0, %v798
        %800 = vdwg.mxu0
        %801 = vmatprep.subr.mxu0 %v722
        %802 = vmatpush1.msra.mxu0 %v721
        %803 = vmatprep.subr.mxu0 %v713
        %804 = vmatpush1.msra.mxu0 %v712
        %805 = vmatprep.subr.mxu0 %v704
        %806 = vmatpush1.msra.mxu0 %v703
        %807 = vmatprep.subr.mxu0 %v695
        %808 = vmatpush1.msra.mxu0 %v694
        %809 = vmatprep.subr.mxu0 %v686
        %810 = vmatpush1.msra.mxu0 %v685
        %811 = vmatprep.subr.mxu0 %v677
        %812 = vmatpush1.msra.mxu0 %v676
        %813 = vmatprep.subr.mxu0 %v668
        %814 = vmatpush1.msra.mxu0 %v667
        %815 = vmatprep.subr.mxu0 %v659
        %816 = vmatpush1.msra.mxu0 %v658
        %817 = vmatprep.subr.mxu0 %v650
        %818 = vmatpush1.msra.mxu0 %v649
        %819 = vmatprep.subr.mxu0 %v641
        %820 = vmatpush1.msra.mxu0 %v640
        %821 = vmatprep.subr.mxu0 %v632
        %822 = vmatpush1.msra.mxu0 %v631
        %823 = vmatprep.subr.mxu0 %v623
        %824 = vmatpush1.msra.mxu0 %v622
        %825 = vmatprep.subr.mxu0 %v614
        %826 = vmatpush1.msra.mxu0 %v613
        %827 = vmatprep.subr.mxu0 %v605
        %828 = vmatpush1.msra.mxu0 %v604
        %829 = vmatprep.subr.mxu0 %v596
        %830 = vmatpush1.msra.mxu0 %v595
        %831 = vmatprep.subr.mxu0 %v587
        %832 = vmatpush1.msra.mxu0 %v586
        %833 = vmatprep.subr.mxu0 0.0
        %834 = vmatpush2.msra.mxu0 0.0
        %835 = vmatprep.subr.mxu0 0.0
        %836 = vmatpush2.msra.mxu0 0.0
        %837 = vmatprep.subr.mxu0 0.0
        %838 = vmatpush2.msra.mxu0 0.0
        %839 = vmatprep.subr.mxu0 0.0
        %840 = vmatpush2.msra.mxu0 0.0
        %841 = vmatprep.subr.mxu0 0.0
        %842 = vmatpush2.msra.mxu0 0.0
        %843 = vmatprep.subr.mxu0 0.0
        %844 = vmatpush2.msra.mxu0 0.0
        %845 = vmatprep.subr.mxu0 0.0
        %846 = vmatpush2.msra.mxu0 0.0
        %847 = vmatprep.subr.mxu0 0.0
        %848 = vmatpush2.msra.mxu0 0.0
        %849 = vmatprep.subr.mxu0 0.0
        %850 = vmatpush2.msra.mxu0 0.0
        %851 = vmatprep.subr.mxu0 0.0
        %852 = vmatpush2.msra.mxu0 0.0
        %853 = vmatprep.subr.mxu0 0.0
        %854 = vmatpush2.msra.mxu0 0.0
        %855 = vmatprep.subr.mxu0 0.0
        %856 = vmatpush2.msra.mxu0 0.0
        %857 = vmatprep.subr.mxu0 0.0
        %858 = vmatpush2.msra.mxu0 0.0
        %859 = vmatprep.subr.mxu0 0.0
        %860 = vmatpush2.msra.mxu0 0.0
        %861 = vmatprep.subr.mxu0 0.0
        %862 = vmatpush2.msra.mxu0 0.0
        %863 = vmatprep.subr.mxu0 0.0
        %864 = vmatpush2.msra.mxu0 0.0
        %865 = vmatprep.mubr.f32.mxu0 0.0
        %866 = vmatmul.mubr.f32.gmra.mxu0 %v297
        %v867 = vpop.f32.mrf.mxu0
        %v868 = vadd.f32 %v797, %v867
        %v869 = vpop.f32.mrf.mxu0
        %v870 = vadd.f32 %v799, %v869
        %871 = vdwg.mxu0
        %872 = vmatprep.subr.mxu0 %v436
        %873 = vmatpush1.msra.mxu0 %v435
        %874 = vmatprep.subr.mxu0 %v427
        %875 = vmatpush1.msra.mxu0 %v426
        %876 = vmatprep.subr.mxu0 %v418
        %877 = vmatpush1.msra.mxu0 %v417
        %878 = vmatprep.subr.mxu0 %v409
        %879 = vmatpush1.msra.mxu0 %v408
        %880 = vmatprep.subr.mxu0 %v400
        %881 = vmatpush1.msra.mxu0 %v399
        %882 = vmatprep.subr.mxu0 %v391
        %883 = vmatpush1.msra.mxu0 %v390
        %884 = vmatprep.subr.mxu0 %v382
        %885 = vmatpush1.msra.mxu0 %v381
        %886 = vmatprep.subr.mxu0 %v373
        %887 = vmatpush1.msra.mxu0 %v372
        %888 = vmatprep.subr.mxu0 %v364
        %889 = vmatpush1.msra.mxu0 %v363
        %890 = vmatprep.subr.mxu0 %v355
        %891 = vmatpush1.msra.mxu0 %v354
        %892 = vmatprep.subr.mxu0 %v346
        %893 = vmatpush1.msra.mxu0 %v345
        %894 = vmatprep.subr.mxu0 %v337
        %895 = vmatpush1.msra.mxu0 %v336
        %896 = vmatprep.subr.mxu0 %v328
        %897 = vmatpush1.msra.mxu0 %v327
        %898 = vmatprep.subr.mxu0 %v319
        %899 = vmatpush1.msra.mxu0 %v318
        %900 = vmatprep.subr.mxu0 %v310
        %901 = vmatpush1.msra.mxu0 %v309
        %902 = vmatprep.subr.mxu0 %v301
        %903 = vmatpush1.msra.mxu0 %v300
        %904 = vmatprep.subr.mxu0 %v580
        %905 = vmatpush2.msra.mxu0 %v579
        %906 = vmatprep.subr.mxu0 %v571
        %907 = vmatpush2.msra.mxu0 %v570
        %908 = vmatprep.subr.mxu0 %v562
        %909 = vmatpush2.msra.mxu0 %v561
        %910 = vmatprep.subr.mxu0 %v553
        %911 = vmatpush2.msra.mxu0 %v552
        %912 = vmatprep.subr.mxu0 %v544
        %913 = vmatpush2.msra.mxu0 %v543
        %914 = vmatprep.subr.mxu0 %v535
        %915 = vmatpush2.msra.mxu0 %v534
        %916 = vmatprep.subr.mxu0 %v526
        %917 = vmatpush2.msra.mxu0 %v525
        %918 = vmatprep.subr.mxu0 %v517
        %919 = vmatpush2.msra.mxu0 %v516
        %920 = vmatprep.subr.mxu0 %v508
        %921 = vmatpush2.msra.mxu0 %v507
        %922 = vmatprep.subr.mxu0 %v499
        %923 = vmatpush2.msra.mxu0 %v498
        %924 = vmatprep.subr.mxu0 %v490
        %925 = vmatpush2.msra.mxu0 %v489
        %926 = vmatprep.subr.mxu0 %v481
        %927 = vmatpush2.msra.mxu0 %v480
        %928 = vmatprep.subr.mxu0 %v472
        %929 = vmatpush2.msra.mxu0 %v471
        %930 = vmatprep.subr.mxu0 %v463
        %931 = vmatpush2.msra.mxu0 %v462
        %932 = vmatprep.subr.mxu0 %v454
        %933 = vmatpush2.msra.mxu0 %v453
        %934 = vmatprep.subr.mxu0 %v445
        %935 = vmatpush2.msra.mxu0 %v444
        %936 = vmatprep.mubr.f32.mxu0 %v296
        %937 = vmatmul.mubr.f32.gmra.mxu0 %v295
        %v938 = vpop.f32.mrf.mxu0
        %v939 = vadd.f32 0.0, %v938
        %v940 = vpop.f32.mrf.mxu0
        %v941 = vadd.f32 0.0, %v940
        %942 = vdwg.mxu0
        %943 = vmatprep.subr.mxu0 %v724
        %944 = vmatpush1.msra.mxu0 %v723
        %945 = vmatprep.subr.mxu0 %v715
        %946 = vmatpush1.msra.mxu0 %v714
        %947 = vmatprep.subr.mxu0 %v706
        %948 = vmatpush1.msra.mxu0 %v705
        %949 = vmatprep.subr.mxu0 %v697
        %950 = vmatpush1.msra.mxu0 %v696
        %951 = vmatprep.subr.mxu0 %v688
        %952 = vmatpush1.msra.mxu0 %v687
        %953 = vmatprep.subr.mxu0 %v679
        %954 = vmatpush1.msra.mxu0 %v678
        %955 = vmatprep.subr.mxu0 %v670
        %956 = vmatpush1.msra.mxu0 %v669
        %957 = vmatprep.subr.mxu0 %v661
        %958 = vmatpush1.msra.mxu0 %v660
        %959 = vmatprep.subr.mxu0 %v652
        %960 = vmatpush1.msra.mxu0 %v651
        %961 = vmatprep.subr.mxu0 %v643
        %962 = vmatpush1.msra.mxu0 %v642
        %963 = vmatprep.subr.mxu0 %v634
        %964 = vmatpush1.msra.mxu0 %v633
        %965 = vmatprep.subr.mxu0 %v625
        %966 = vmatpush1.msra.mxu0 %v624
        %967 = vmatprep.subr.mxu0 %v616
        %968 = vmatpush1.msra.mxu0 %v615
        %969 = vmatprep.subr.mxu0 %v607
        %970 = vmatpush1.msra.mxu0 %v606
        %971 = vmatprep.subr.mxu0 %v598
        %972 = vmatpush1.msra.mxu0 %v597
        %973 = vmatprep.subr.mxu0 %v589
        %974 = vmatpush1.msra.mxu0 %v588
        %975 = vmatprep.subr.mxu0 0.0
        %976 = vmatpush2.msra.mxu0 0.0
        %977 = vmatprep.subr.mxu0 0.0
        %978 = vmatpush2.msra.mxu0 0.0
        %979 = vmatprep.subr.mxu0 0.0
        %980 = vmatpush2.msra.mxu0 0.0
        %981 = vmatprep.subr.mxu0 0.0
        %982 = vmatpush2.msra.mxu0 0.0
        %983 = vmatprep.subr.mxu0 0.0
        %984 = vmatpush2.msra.mxu0 0.0
        %985 = vmatprep.subr.mxu0 0.0
        %986 = vmatpush2.msra.mxu0 0.0
        %987 = vmatprep.subr.mxu0 0.0
        %988 = vmatpush2.msra.mxu0 0.0
        %989 = vmatprep.subr.mxu0 0.0
        %990 = vmatpush2.msra.mxu0 0.0
        %991 = vmatprep.subr.mxu0 0.0
        %992 = vmatpush2.msra.mxu0 0.0
        %993 = vmatprep.subr.mxu0 0.0
        %994 = vmatpush2.msra.mxu0 0.0
        %995 = vmatprep.subr.mxu0 0.0
        %996 = vmatpush2.msra.mxu0 0.0
        %997 = vmatprep.subr.mxu0 0.0
        %998 = vmatpush2.msra.mxu0 0.0
        %999 = vmatprep.subr.mxu0 0.0
        %1000 = vmatpush2.msra.mxu0 0.0
        %1001 = vmatprep.subr.mxu0 0.0
        %1002 = vmatpush2.msra.mxu0 0.0
        %1003 = vmatprep.subr.mxu0 0.0
        %1004 = vmatpush2.msra.mxu0 0.0
        %1005 = vmatprep.subr.mxu0 0.0
        %1006 = vmatpush2.msra.mxu0 0.0
        %1007 = vmatprep.mubr.f32.mxu0 0.0
        %1008 = vmatmul.mubr.f32.gmra.mxu0 %v297
        %v1009 = vpop.f32.mrf.mxu0
        %v1010 = vadd.f32 %v939, %v1009
        %v1011 = vpop.f32.mrf.mxu0
        %v1012 = vadd.f32 %v941, %v1011
        %1013 = vdwg.mxu0
        %1014 = vmatprep.subr.mxu0 %v438
        %1015 = vmatpush1.msra.mxu0 %v437
        %1016 = vmatprep.subr.mxu0 %v429
        %1017 = vmatpush1.msra.mxu0 %v428
        %1018 = vmatprep.subr.mxu0 %v420
        %1019 = vmatpush1.msra.mxu0 %v419
        %1020 = vmatprep.subr.mxu0 %v411
        %1021 = vmatpush1.msra.mxu0 %v410
        %1022 = vmatprep.subr.mxu0 %v402
        %1023 = vmatpush1.msra.mxu0 %v401
        %1024 = vmatprep.subr.mxu0 %v393
        %1025 = vmatpush1.msra.mxu0 %v392
        %1026 = vmatprep.subr.mxu0 %v384
        %1027 = vmatpush1.msra.mxu0 %v383
        %1028 = vmatprep.subr.mxu0 %v375
        %1029 = vmatpush1.msra.mxu0 %v374
        %1030 = vmatprep.subr.mxu0 %v366
        %1031 = vmatpush1.msra.mxu0 %v365
        %1032 = vmatprep.subr.mxu0 %v357
        %1033 = vmatpush1.msra.mxu0 %v356
        %1034 = vmatprep.subr.mxu0 %v348
        %1035 = vmatpush1.msra.mxu0 %v347
        %1036 = vmatprep.subr.mxu0 %v339
        %1037 = vmatpush1.msra.mxu0 %v338
        %1038 = vmatprep.subr.mxu0 %v330
        %1039 = vmatpush1.msra.mxu0 %v329
        %1040 = vmatprep.subr.mxu0 %v321
        %1041 = vmatpush1.msra.mxu0 %v320
        %1042 = vmatprep.subr.mxu0 %v312
        %1043 = vmatpush1.msra.mxu0 %v311
        %1044 = vmatprep.subr.mxu0 %v303
        %1045 = vmatpush1.msra.mxu0 %v302
        %1046 = vmatprep.subr.mxu0 %v582
        %1047 = vmatpush2.msra.mxu0 %v581
        %1048 = vmatprep.subr.mxu0 %v573
        %1049 = vmatpush2.msra.mxu0 %v572
        %1050 = vmatprep.subr.mxu0 %v564
        %1051 = vmatpush2.msra.mxu0 %v563
        %1052 = vmatprep.subr.mxu0 %v555
        %1053 = vmatpush2.msra.mxu0 %v554
        %1054 = vmatprep.subr.mxu0 %v546
        %1055 = vmatpush2.msra.mxu0 %v545
        %1056 = vmatprep.subr.mxu0 %v537
        %1057 = vmatpush2.msra.mxu0 %v536
        %1058 = vmatprep.subr.mxu0 %v528
        %1059 = vmatpush2.msra.mxu0 %v527
        %1060 = vmatprep.subr.mxu0 %v519
        %1061 = vmatpush2.msra.mxu0 %v518
        %1062 = vmatprep.subr.mxu0 %v510
        %1063 = vmatpush2.msra.mxu0 %v509
        %1064 = vmatprep.subr.mxu0 %v501
        %1065 = vmatpush2.msra.mxu0 %v500
        %1066 = vmatprep.subr.mxu0 %v492
        %1067 = vmatpush2.msra.mxu0 %v491
        %1068 = vmatprep.subr.mxu0 %v483
        %1069 = vmatpush2.msra.mxu0 %v482
        %1070 = vmatprep.subr.mxu0 %v474
        %1071 = vmatpush2.msra.mxu0 %v473
        %1072 = vmatprep.subr.mxu0 %v465
        %1073 = vmatpush2.msra.mxu0 %v464
        %1074 = vmatprep.subr.mxu0 %v456
        %1075 = vmatpush2.msra.mxu0 %v455
        %1076 = vmatprep.subr.mxu0 %v447
        %1077 = vmatpush2.msra.mxu0 %v446
        %1078 = vmatprep.mubr.f32.mxu0 %v296
        %1079 = vmatmul.mubr.f32.gmra.mxu0 %v295
        %v1080 = vpop.f32.mrf.mxu0
        %v1081 = vadd.f32 0.0, %v1080
        %v1082 = vpop.f32.mrf.mxu0
        %v1083 = vadd.f32 0.0, %v1082
        %1084 = vdwg.mxu0
        %1085 = vmatprep.subr.mxu0 %v726
        %1086 = vmatpush1.msra.mxu0 %v725
        %1087 = vmatprep.subr.mxu0 %v717
        %1088 = vmatpush1.msra.mxu0 %v716
        %1089 = vmatprep.subr.mxu0 %v708
        %1090 = vmatpush1.msra.mxu0 %v707
        %1091 = vmatprep.subr.mxu0 %v699
        %1092 = vmatpush1.msra.mxu0 %v698
        %1093 = vmatprep.subr.mxu0 %v690
        %1094 = vmatpush1.msra.mxu0 %v689
        %1095 = vmatprep.subr.mxu0 %v681
        %1096 = vmatpush1.msra.mxu0 %v680
        %1097 = vmatprep.subr.mxu0 %v672
        %1098 = vmatpush1.msra.mxu0 %v671
        %1099 = vmatprep.subr.mxu0 %v663
        %1100 = vmatpush1.msra.mxu0 %v662
        %1101 = vmatprep.subr.mxu0 %v654
        %1102 = vmatpush1.msra.mxu0 %v653
        %1103 = vmatprep.subr.mxu0 %v645
        %1104 = vmatpush1.msra.mxu0 %v644
        %1105 = vmatprep.subr.mxu0 %v636
        %1106 = vmatpush1.msra.mxu0 %v635
        %1107 = vmatprep.subr.mxu0 %v627
        %1108 = vmatpush1.msra.mxu0 %v626
        %1109 = vmatprep.subr.mxu0 %v618
        %1110 = vmatpush1.msra.mxu0 %v617
        %1111 = vmatprep.subr.mxu0 %v609
        %1112 = vmatpush1.msra.mxu0 %v608
        %1113 = vmatprep.subr.mxu0 %v600
        %1114 = vmatpush1.msra.mxu0 %v599
        %1115 = vmatprep.subr.mxu0 %v591
        %1116 = vmatpush1.msra.mxu0 %v590
        %1117 = vmatprep.subr.mxu0 0.0
        %1118 = vmatpush2.msra.mxu0 0.0
        %1119 = vmatprep.subr.mxu0 0.0
        %1120 = vmatpush2.msra.mxu0 0.0
        %1121 = vmatprep.subr.mxu0 0.0
        %1122 = vmatpush2.msra.mxu0 0.0
        %1123 = vmatprep.subr.mxu0 0.0
        %1124 = vmatpush2.msra.mxu0 0.0
        %1125 = vmatprep.subr.mxu0 0.0
        %1126 = vmatpush2.msra.mxu0 0.0
        %1127 = vmatprep.subr.mxu0 0.0
        %1128 = vmatpush2.msra.mxu0 0.0
        %1129 = vmatprep.subr.mxu0 0.0
        %1130 = vmatpush2.msra.mxu0 0.0
        %1131 = vmatprep.subr.mxu0 0.0
        %1132 = vmatpush2.msra.mxu0 0.0
        %1133 = vmatprep.subr.mxu0 0.0
        %1134 = vmatpush2.msra.mxu0 0.0
        %1135 = vmatprep.subr.mxu0 0.0
        %1136 = vmatpush2.msra.mxu0 0.0
        %1137 = vmatprep.subr.mxu0 0.0
        %1138 = vmatpush2.msra.mxu0 0.0
        %1139 = vmatprep.subr.mxu0 0.0
        %1140 = vmatpush2.msra.mxu0 0.0
        %1141 = vmatprep.subr.mxu0 0.0
        %1142 = vmatpush2.msra.mxu0 0.0
        %1143 = vmatprep.subr.mxu0 0.0
        %1144 = vmatpush2.msra.mxu0 0.0
        %1145 = vmatprep.subr.mxu0 0.0
        %1146 = vmatpush2.msra.mxu0 0.0
        %1147 = vmatprep.subr.mxu0 0.0
        %1148 = vmatpush2.msra.mxu0 0.0
        %1149 = vmatprep.mubr.f32.mxu0 0.0
        %1150 = vmatmul.mubr.f32.gmra.mxu0 %v297
        %v1151 = vpop.f32.mrf.mxu0
        %v1152 = vadd.f32 %v1081, %v1151
        %v1153 = vpop.f32.mrf.mxu0
        %v1154 = vadd.f32 %v1083, %v1153
        %1155 = vdwg.mxu0
        %1156 = vmatprep.subr.mxu0 %v440
        %1157 = vmatpush1.msra.mxu0 %v439
        %1158 = vmatprep.subr.mxu0 %v431
        %1159 = vmatpush1.msra.mxu0 %v430
        %1160 = vmatprep.subr.mxu0 %v422
        %1161 = vmatpush1.msra.mxu0 %v421
        %1162 = vmatprep.subr.mxu0 %v413
        %1163 = vmatpush1.msra.mxu0 %v412
        %1164 = vmatprep.subr.mxu0 %v404
        %1165 = vmatpush1.msra.mxu0 %v403
        %1166 = vmatprep.subr.mxu0 %v395
        %1167 = vmatpush1.msra.mxu0 %v394
        %1168 = vmatprep.subr.mxu0 %v386
        %1169 = vmatpush1.msra.mxu0 %v385
        %1170 = vmatprep.subr.mxu0 %v377
        %1171 = vmatpush1.msra.mxu0 %v376
        %1172 = vmatprep.subr.mxu0 %v368
        %1173 = vmatpush1.msra.mxu0 %v367
        %1174 = vmatprep.subr.mxu0 %v359
        %1175 = vmatpush1.msra.mxu0 %v358
        %1176 = vmatprep.subr.mxu0 %v350
        %1177 = vmatpush1.msra.mxu0 %v349
        %1178 = vmatprep.subr.mxu0 %v341
        %1179 = vmatpush1.msra.mxu0 %v340
        %1180 = vmatprep.subr.mxu0 %v332
        %1181 = vmatpush1.msra.mxu0 %v331
        %1182 = vmatprep.subr.mxu0 %v323
        %1183 = vmatpush1.msra.mxu0 %v322
        %1184 = vmatprep.subr.mxu0 %v314
        %1185 = vmatpush1.msra.mxu0 %v313
        %1186 = vmatprep.subr.mxu0 %v305
        %1187 = vmatpush1.msra.mxu0 %v304
        %1188 = vmatprep.subr.mxu0 %v584
        %1189 = vmatpush2.msra.mxu0 %v583
        %1190 = vmatprep.subr.mxu0 %v575
        %1191 = vmatpush2.msra.mxu0 %v574
        %1192 = vmatprep.subr.mxu0 %v566
        %1193 = vmatpush2.msra.mxu0 %v565
        %1194 = vmatprep.subr.mxu0 %v557
        %1195 = vmatpush2.msra.mxu0 %v556
        %1196 = vmatprep.subr.mxu0 %v548
        %1197 = vmatpush2.msra.mxu0 %v547
        %1198 = vmatprep.subr.mxu0 %v539
        %1199 = vmatpush2.msra.mxu0 %v538
        %1200 = vmatprep.subr.mxu0 %v530
        %1201 = vmatpush2.msra.mxu0 %v529
        %1202 = vmatprep.subr.mxu0 %v521
        %1203 = vmatpush2.msra.mxu0 %v520
        %1204 = vmatprep.subr.mxu0 %v512
        %1205 = vmatpush2.msra.mxu0 %v511
        %1206 = vmatprep.subr.mxu0 %v503
        %1207 = vmatpush2.msra.mxu0 %v502
        %1208 = vmatprep.subr.mxu0 %v494
        %1209 = vmatpush2.msra.mxu0 %v493
        %1210 = vmatprep.subr.mxu0 %v485
        %1211 = vmatpush2.msra.mxu0 %v484
        %1212 = vmatprep.subr.mxu0 %v476
        %1213 = vmatpush2.msra.mxu0 %v475
        %1214 = vmatprep.subr.mxu0 %v467
        %1215 = vmatpush2.msra.mxu0 %v466
        %1216 = vmatprep.subr.mxu0 %v458
        %1217 = vmatpush2.msra.mxu0 %v457
        %1218 = vmatprep.subr.mxu0 %v449
        %1219 = vmatpush2.msra.mxu0 %v448
        %1220 = vmatprep.mubr.f32.mxu0 %v296
        %1221 = vmatmul.mubr.f32.gmra.mxu0 %v295
        %v1222 = vpop.f32.mrf.mxu0
        %v1223 = vadd.f32 0.0, %v1222
        %v1224 = vpop.f32.mrf.mxu0
        %v1225 = vadd.f32 0.0, %v1224
        %1226 = vdwg.mxu0
        %1227 = vmatprep.subr.mxu0 %v728
        %1228 = vmatpush1.msra.mxu0 %v727
        %1229 = vmatprep.subr.mxu0 %v719
        %1230 = vmatpush1.msra.mxu0 %v718
        %1231 = vmatprep.subr.mxu0 %v710
        %1232 = vmatpush1.msra.mxu0 %v709
        %1233 = vmatprep.subr.mxu0 %v701
        %1234 = vmatpush1.msra.mxu0 %v700
        %1235 = vmatprep.subr.mxu0 %v692
        %1236 = vmatpush1.msra.mxu0 %v691
        %1237 = vmatprep.subr.mxu0 %v683
        %1238 = vmatpush1.msra.mxu0 %v682
        %1239 = vmatprep.subr.mxu0 %v674
        %1240 = vmatpush1.msra.mxu0 %v673
        %1241 = vmatprep.subr.mxu0 %v665
        %1242 = vmatpush1.msra.mxu0 %v664
        %1243 = vmatprep.subr.mxu0 %v656
        %1244 = vmatpush1.msra.mxu0 %v655
        %1245 = vmatprep.subr.mxu0 %v647
        %1246 = vmatpush1.msra.mxu0 %v646
        %1247 = vmatprep.subr.mxu0 %v638
        %1248 = vmatpush1.msra.mxu0 %v637
        %1249 = vmatprep.subr.mxu0 %v629
        %1250 = vmatpush1.msra.mxu0 %v628
        %1251 = vmatprep.subr.mxu0 %v620
        %1252 = vmatpush1.msra.mxu0 %v619
        %1253 = vmatprep.subr.mxu0 %v611
        %1254 = vmatpush1.msra.mxu0 %v610
        %1255 = vmatprep.subr.mxu0 %v602
        %1256 = vmatpush1.msra.mxu0 %v601
        %1257 = vmatprep.subr.mxu0 %v593
        %1258 = vmatpush1.msra.mxu0 %v592
        %1259 = vmatprep.subr.mxu0 0.0
        %1260 = vmatpush2.msra.mxu0 0.0
        %1261 = vmatprep.subr.mxu0 0.0
        %1262 = vmatpush2.msra.mxu0 0.0
        %1263 = vmatprep.subr.mxu0 0.0
        %1264 = vmatpush2.msra.mxu0 0.0
        %1265 = vmatprep.subr.mxu0 0.0
        %1266 = vmatpush2.msra.mxu0 0.0
        %1267 = vmatprep.subr.mxu0 0.0
        %1268 = vmatpush2.msra.mxu0 0.0
        %1269 = vmatprep.subr.mxu0 0.0
        %1270 = vmatpush2.msra.mxu0 0.0
        %1271 = vmatprep.subr.mxu0 0.0
        %1272 = vmatpush2.msra.mxu0 0.0
        %1273 = vmatprep.subr.mxu0 0.0
        %1274 = vmatpush2.msra.mxu0 0.0
        %1275 = vmatprep.subr.mxu0 0.0
        %1276 = vmatpush2.msra.mxu0 0.0
        %1277 = vmatprep.subr.mxu0 0.0
        %1278 = vmatpush2.msra.mxu0 0.0
        %1279 = vmatprep.subr.mxu0 0.0
        %1280 = vmatpush2.msra.mxu0 0.0
        %1281 = vmatprep.subr.mxu0 0.0
        %1282 = vmatpush2.msra.mxu0 0.0
        %1283 = vmatprep.subr.mxu0 0.0
        %1284 = vmatpush2.msra.mxu0 0.0
        %1285 = vmatprep.subr.mxu0 0.0
        %1286 = vmatpush2.msra.mxu0 0.0
        %1287 = vmatprep.subr.mxu0 0.0
        %1288 = vmatpush2.msra.mxu0 0.0
        %1289 = vmatprep.subr.mxu0 0.0
        %1290 = vmatpush2.msra.mxu0 0.0
        %1291 = vmatprep.mubr.f32.mxu0 0.0
        %1292 = vmatmul.mubr.f32.gmra.mxu0 %v297
        %v1293 = vpop.f32.mrf.mxu0
        %v1294 = vadd.f32 %v1223, %v1293
        %v1295 = vpop.f32.mrf.mxu0
        %v1296 = vadd.f32 %v1225, %v1295
        %1297 = vdwg.mxu0
        %1298 = vmatprep.subr.mxu0 0.0
        %1299 = vmatpush1.msra.mxu0 %v441
        %1300 = vmatprep.subr.mxu0 0.0
        %1301 = vmatpush1.msra.mxu0 %v432
        %1302 = vmatprep.subr.mxu0 0.0
        %1303 = vmatpush1.msra.mxu0 %v423
        %1304 = vmatprep.subr.mxu0 0.0
        %1305 = vmatpush1.msra.mxu0 %v414
        %1306 = vmatprep.subr.mxu0 0.0
        %1307 = vmatpush1.msra.mxu0 %v405
        %1308 = vmatprep.subr.mxu0 0.0
        %1309 = vmatpush1.msra.mxu0 %v396
        %1310 = vmatprep.subr.mxu0 0.0
        %1311 = vmatpush1.msra.mxu0 %v387
        %1312 = vmatprep.subr.mxu0 0.0
        %1313 = vmatpush1.msra.mxu0 %v378
        %1314 = vmatprep.subr.mxu0 0.0
        %1315 = vmatpush1.msra.mxu0 %v369
        %1316 = vmatprep.subr.mxu0 0.0
        %1317 = vmatpush1.msra.mxu0 %v360
        %1318 = vmatprep.subr.mxu0 0.0
        %1319 = vmatpush1.msra.mxu0 %v351
        %1320 = vmatprep.subr.mxu0 0.0
        %1321 = vmatpush1.msra.mxu0 %v342
        %1322 = vmatprep.subr.mxu0 0.0
        %1323 = vmatpush1.msra.mxu0 %v333
        %1324 = vmatprep.subr.mxu0 0.0
        %1325 = vmatpush1.msra.mxu0 %v324
        %1326 = vmatprep.subr.mxu0 0.0
        %1327 = vmatpush1.msra.mxu0 %v315
        %1328 = vmatprep.subr.mxu0 0.0
        %1329 = vmatpush1.msra.mxu0 %v306
        %1330 = vmatprep.subr.mxu0 0.0
        %1331 = vmatpush2.msra.mxu0 %v585
        %1332 = vmatprep.subr.mxu0 0.0
        %1333 = vmatpush2.msra.mxu0 %v576
        %1334 = vmatprep.subr.mxu0 0.0
        %1335 = vmatpush2.msra.mxu0 %v567
        %1336 = vmatprep.subr.mxu0 0.0
        %1337 = vmatpush2.msra.mxu0 %v558
        %1338 = vmatprep.subr.mxu0 0.0
        %1339 = vmatpush2.msra.mxu0 %v549
        %1340 = vmatprep.subr.mxu0 0.0
        %1341 = vmatpush2.msra.mxu0 %v540
        %1342 = vmatprep.subr.mxu0 0.0
        %1343 = vmatpush2.msra.mxu0 %v531
        %1344 = vmatprep.subr.mxu0 0.0
        %1345 = vmatpush2.msra.mxu0 %v522
        %1346 = vmatprep.subr.mxu0 0.0
        %1347 = vmatpush2.msra.mxu0 %v513
        %1348 = vmatprep.subr.mxu0 0.0
        %1349 = vmatpush2.msra.mxu0 %v504
        %1350 = vmatprep.subr.mxu0 0.0
        %1351 = vmatpush2.msra.mxu0 %v495
        %1352 = vmatprep.subr.mxu0 0.0
        %1353 = vmatpush2.msra.mxu0 %v486
        %1354 = vmatprep.subr.mxu0 0.0
        %1355 = vmatpush2.msra.mxu0 %v477
        %1356 = vmatprep.subr.mxu0 0.0
        %1357 = vmatpush2.msra.mxu0 %v468
        %1358 = vmatprep.subr.mxu0 0.0
        %1359 = vmatpush2.msra.mxu0 %v459
        %1360 = vmatprep.subr.mxu0 0.0
        %1361 = vmatpush2.msra.mxu0 %v450
        %1362 = vmatprep.mubr.f32.mxu0 %v296
        %1363 = vmatmul.mubr.f32.gmra.mxu0 %v295
        %v1364 = vpop.f32.mrf.mxu0
        %v1365 = vadd.f32 0.0, %v1364
        %v1366 = vpop.f32.mrf.mxu0
        %1367 = vdwg.mxu0
        %1368 = vmatprep.subr.mxu0 0.0
        %1369 = vmatpush1.msra.mxu0 %v729
        %1370 = vmatprep.subr.mxu0 0.0
        %1371 = vmatpush1.msra.mxu0 %v720
        %1372 = vmatprep.subr.mxu0 0.0
        %1373 = vmatpush1.msra.mxu0 %v711
        %1374 = vmatprep.subr.mxu0 0.0
        %1375 = vmatpush1.msra.mxu0 %v702
        %1376 = vmatprep.subr.mxu0 0.0
        %1377 = vmatpush1.msra.mxu0 %v693
        %1378 = vmatprep.subr.mxu0 0.0
        %1379 = vmatpush1.msra.mxu0 %v684
        %1380 = vmatprep.subr.mxu0 0.0
        %1381 = vmatpush1.msra.mxu0 %v675
        %1382 = vmatprep.subr.mxu0 0.0
        %1383 = vmatpush1.msra.mxu0 %v666
        %1384 = vmatprep.subr.mxu0 0.0
        %1385 = vmatpush1.msra.mxu0 %v657
        %1386 = vmatprep.subr.mxu0 0.0
        %1387 = vmatpush1.msra.mxu0 %v648
        %1388 = vmatprep.subr.mxu0 0.0
        %1389 = vmatpush1.msra.mxu0 %v639
        %1390 = vmatprep.subr.mxu0 0.0
        %1391 = vmatpush1.msra.mxu0 %v630
        %1392 = vmatprep.subr.mxu0 0.0
        %1393 = vmatpush1.msra.mxu0 %v621
        %1394 = vmatprep.subr.mxu0 0.0
        %1395 = vmatpush1.msra.mxu0 %v612
        %1396 = vmatprep.subr.mxu0 0.0
        %1397 = vmatpush1.msra.mxu0 %v603
        %1398 = vmatprep.subr.mxu0 0.0
        %1399 = vmatpush1.msra.mxu0 %v594
        %1400 = vmatprep.subr.mxu0 0.0
        %1401 = vmatpush2.msra.mxu0 0.0
        %1402 = vmatprep.subr.mxu0 0.0
        %1403 = vmatpush2.msra.mxu0 0.0
        %1404 = vmatprep.subr.mxu0 0.0
        %1405 = vmatpush2.msra.mxu0 0.0
        %1406 = vmatprep.subr.mxu0 0.0
        %1407 = vmatpush2.msra.mxu0 0.0
        %1408 = vmatprep.subr.mxu0 0.0
        %1409 = vmatpush2.msra.mxu0 0.0
        %1410 = vmatprep.subr.mxu0 0.0
        %1411 = vmatpush2.msra.mxu0 0.0
        %1412 = vmatprep.subr.mxu0 0.0
        %1413 = vmatpush2.msra.mxu0 0.0
        %1414 = vmatprep.subr.mxu0 0.0
        %1415 = vmatpush2.msra.mxu0 0.0
        %1416 = vmatprep.subr.mxu0 0.0
        %1417 = vmatpush2.msra.mxu0 0.0
        %1418 = vmatprep.subr.mxu0 0.0
        %1419 = vmatpush2.msra.mxu0 0.0
        %1420 = vmatprep.subr.mxu0 0.0
        %1421 = vmatpush2.msra.mxu0 0.0
        %1422 = vmatprep.subr.mxu0 0.0
        %1423 = vmatpush2.msra.mxu0 0.0
        %1424 = vmatprep.subr.mxu0 0.0
        %1425 = vmatpush2.msra.mxu0 0.0
        %1426 = vmatprep.subr.mxu0 0.0
        %1427 = vmatpush2.msra.mxu0 0.0
        %1428 = vmatprep.subr.mxu0 0.0
        %1429 = vmatpush2.msra.mxu0 0.0
        %1430 = vmatprep.subr.mxu0 0.0
        %1431 = vmatpush2.msra.mxu0 0.0
        %1432 = vmatprep.mubr.f32.mxu0 0.0
        %1433 = vmatmul.mubr.f32.gmra.mxu0 %v297
        %v1434 = vpop.f32.mrf.mxu0
        %v1435 = vadd.f32 %v1365, %v1434
        %v1436 = vpop.f32.mrf.mxu0
        %1437 = vdwg.mxu0
        %v1438 = vld [vmem:[#allocation7] sm:$0xff]
        %v1439 = vld [vmem:[#allocation7 + $0x8] sm:$0xff]
        %v1440 = vld [vmem:[#allocation7 + $0x10] sm:$0xff]
        %v1441 = vld [vmem:[#allocation7 + $0x18] sm:$0xff]
        %v1442 = vld [vmem:[#allocation7 + $0x20] sm:$0xff]
        %v1443 = vld [vmem:[#allocation7 + $0x28] sm:$0xff]
        %v1444 = vld [vmem:[#allocation7 + $0x30] sm:$0xff]
        %v1445 = vld [vmem:[#allocation7 + $0x38] sm:$0xff]
        %v1446 = vld [vmem:[#allocation7 + $0x40] sm:$0xff]
        %v1447 = vld [vmem:[#allocation7 + $0x48] sm:$0xff]
        %v1448 = vld [vmem:[#allocation7 + $0x50] sm:$0xff]
        %v1449 = vld [vmem:[#allocation7 + $0x58] sm:$0xff]
        %v1450 = vld [vmem:[#allocation7 + $0x60] sm:$0xff]
        %v1451 = vld [vmem:[#allocation7 + $0x68] sm:$0xff]
        %v1452 = vld [vmem:[#allocation7 + $0x70] sm:$0xff]
        %v1453 = vld [vmem:[#allocation7 + $0x78] sm:$0xff]
        %v1454 = vld [vmem:[#allocation7 + $0x80] sm:$0xff]
        %v1455 = vld [vmem:[#allocation7 + $0x88] sm:$0xff]
        %v1456 = vld [vmem:[#allocation7 + $0x90] sm:$0xff]
        %v1457 = vld [vmem:[#allocation7 + $0x98] sm:$0xff]
        %v1458 = vld [vmem:[#allocation7 + $0xa0] sm:$0xff]
        %v1459 = vld [vmem:[#allocation7 + $0xa8] sm:$0xff]
        %v1460 = vld [vmem:[#allocation7 + $0xb0] sm:$0xff]
        %v1461 = vld [vmem:[#allocation7 + $0xb8] sm:$0xff]
        %v1462 = vld [vmem:[#allocation7 + $0xc0] sm:$0xff]
        %v1463 = vld [vmem:[#allocation7 + $0xc8] sm:$0xff]
        %v1464 = vld [vmem:[#allocation7 + $0xd0] sm:$0xff]
        %v1465 = vld [vmem:[#allocation7 + $0xd8] sm:$0xff]
        %v1466 = vld [vmem:[#allocation7 + $0xe0] sm:$0xff]
        %v1467 = vld [vmem:[#allocation7 + $0xe8] sm:$0xff]
        %v1468 = vld [vmem:[#allocation7 + $0xf0] sm:$0xff]
        %v1469 = vld [vmem:[#allocation7 + $0xf8] sm:$0xff]
        %v1470 = vld [vmem:[#allocation7 + $0x100] sm:$0xff]
        %v1471 = vld [vmem:[#allocation7 + $0x108] sm:$0xff]
        %v1472 = vld [vmem:[#allocation7 + $0x110] sm:$0xff]
        %v1473 = vld [vmem:[#allocation7 + $0x118] sm:$0xff]
        %v1474 = vld [vmem:[#allocation7 + $0x120] sm:$0xff]
        %v1475 = vld [vmem:[#allocation7 + $0x128] sm:$0xff]
        %v1476 = vld [vmem:[#allocation7 + $0x130] sm:$0xff]
        %v1477 = vld [vmem:[#allocation7 + $0x138] sm:$0xff]
        %v1478 = vld [vmem:[#allocation7 + $0x140] sm:$0xff]
        %v1479 = vld [vmem:[#allocation7 + $0x148] sm:$0xff]
        %v1480 = vld [vmem:[#allocation7 + $0x150] sm:$0xff]
        %v1481 = vld [vmem:[#allocation7 + $0x158] sm:$0xff]
        %v1482 = vld [vmem:[#allocation7 + $0x160] sm:$0xff]
        %v1483 = vld [vmem:[#allocation7 + $0x168] sm:$0xff]
        %v1484 = vld [vmem:[#allocation7 + $0x170] sm:$0xff]
        %v1485 = vld [vmem:[#allocation7 + $0x178] sm:$0xff]
        %v1486 = vld [vmem:[#allocation7 + $0x180] sm:$0xff]
        %v1487 = vld [vmem:[#allocation7 + $0x188] sm:$0xff]
        %v1488 = vld [vmem:[#allocation7 + $0x190] sm:$0xff]
        %v1489 = vld [vmem:[#allocation7 + $0x198] sm:$0xff]
        %v1490 = vld [vmem:[#allocation7 + $0x1a0] sm:$0xff]
        %v1491 = vld [vmem:[#allocation7 + $0x1a8] sm:$0xff]
        %v1492 = vld [vmem:[#allocation7 + $0x1b0] sm:$0xff]
        %v1493 = vld [vmem:[#allocation7 + $0x1b8] sm:$0xff]
        %v1494 = vld [vmem:[#allocation7 + $0x1c0] sm:$0xff]
        %v1495 = vld [vmem:[#allocation7 + $0x1c8] sm:$0xff]
        %v1496 = vld [vmem:[#allocation7 + $0x1d0] sm:$0xff]
        %v1497 = vld [vmem:[#allocation7 + $0x1d8] sm:$0xff]
        %v1498 = vld [vmem:[#allocation7 + $0x1e0] sm:$0xff]
        %v1499 = vld [vmem:[#allocation7 + $0x1e8] sm:$0xff]
        %v1500 = vld [vmem:[#allocation7 + $0x1f0] sm:$0xff]
        %v1501 = vld [vmem:[#allocation7 + $0x1f8] sm:$0xff]
        %v1502 = vld [vmem:[#allocation7 + $0x200] sm:$0xff]
        %v1503 = vld [vmem:[#allocation7 + $0x208] sm:$0xff]
        %v1504 = vld [vmem:[#allocation7 + $0x210] sm:$0xff]
        %v1505 = vld [vmem:[#allocation7 + $0x218] sm:$0xff]
        %v1506 = vld [vmem:[#allocation7 + $0x220] sm:$0xff]
        %v1507 = vld [vmem:[#allocation7 + $0x228] sm:$0xff]
        %v1508 = vld [vmem:[#allocation7 + $0x230] sm:$0xff]
        %v1509 = vld [vmem:[#allocation7 + $0x238] sm:$0xff]
        %v1510 = vld [vmem:[#allocation7 + $0x240] sm:$0xff]
        %v1511 = vld [vmem:[#allocation7 + $0x248] sm:$0xff]
        %v1512 = vld [vmem:[#allocation7 + $0x250] sm:$0xff]
        %v1513 = vld [vmem:[#allocation7 + $0x258] sm:$0xff]
        %v1514 = vld [vmem:[#allocation7 + $0x260] sm:$0xff]
        %v1515 = vld [vmem:[#allocation7 + $0x268] sm:$0xff]
        %v1516 = vld [vmem:[#allocation7 + $0x270] sm:$0xff]
        %v1517 = vld [vmem:[#allocation7 + $0x278] sm:$0xff]
        %v1518 = vld [vmem:[#allocation7 + $0x280] sm:$0xff]
        %v1519 = vld [vmem:[#allocation7 + $0x288] sm:$0xff]
        %v1520 = vld [vmem:[#allocation7 + $0x290] sm:$0xff]
        %v1521 = vld [vmem:[#allocation7 + $0x298] sm:$0xff]
        %v1522 = vld [vmem:[#allocation7 + $0x2a0] sm:$0xff]
        %v1523 = vld [vmem:[#allocation7 + $0x2a8] sm:$0xff]
        %v1524 = vld [vmem:[#allocation7 + $0x2b0] sm:$0xff]
        %v1525 = vld [vmem:[#allocation7 + $0x2b8] sm:$0xff]
        %v1526 = vld [vmem:[#allocation7 + $0x2c0] sm:$0xff]
        %v1527 = vld [vmem:[#allocation7 + $0x2c8] sm:$0xff]
        %v1528 = vld [vmem:[#allocation7 + $0x2d0] sm:$0xff]
        %v1529 = vld [vmem:[#allocation7 + $0x2d8] sm:$0xff]
        %v1530 = vld [vmem:[#allocation7 + $0x2e0] sm:$0xff]
        %v1531 = vld [vmem:[#allocation7 + $0x2e8] sm:$0xff]
        %v1532 = vld [vmem:[#allocation7 + $0x2f0] sm:$0xff]
        %v1533 = vld [vmem:[#allocation7 + $0x2f8] sm:$0xff]
        %v1534 = vld [vmem:[#allocation7 + $0x300] sm:$0xff]
        %v1535 = vld [vmem:[#allocation7 + $0x308] sm:$0xff]
        %v1536 = vld [vmem:[#allocation7 + $0x310] sm:$0xff]
        %v1537 = vld [vmem:[#allocation7 + $0x318] sm:$0xff]
        %v1538 = vld [vmem:[#allocation7 + $0x320] sm:$0xff]
        %v1539 = vld [vmem:[#allocation7 + $0x328] sm:$0xff]
        %v1540 = vld [vmem:[#allocation7 + $0x330] sm:$0xff]
        %v1541 = vld [vmem:[#allocation7 + $0x338] sm:$0xff]
        %v1542 = vld [vmem:[#allocation7 + $0x340] sm:$0xff]
        %v1543 = vld [vmem:[#allocation7 + $0x348] sm:$0xff]
        %v1544 = vld [vmem:[#allocation7 + $0x350] sm:$0xff]
        %v1545 = vld [vmem:[#allocation7 + $0x358] sm:$0xff]
        %v1546 = vld [vmem:[#allocation7 + $0x360] sm:$0xff]
        %v1547 = vld [vmem:[#allocation7 + $0x368] sm:$0xff]
        %v1548 = vld [vmem:[#allocation7 + $0x370] sm:$0xff]
        %v1549 = vld [vmem:[#allocation7 + $0x378] sm:$0xff]
        %v1550 = vld [vmem:[#allocation7 + $0x380] sm:$0xff]
        %v1551 = vld [vmem:[#allocation7 + $0x388] sm:$0xff]
        %v1552 = vld [vmem:[#allocation7 + $0x390] sm:$0xff]
        %v1553 = vld [vmem:[#allocation7 + $0x398] sm:$0xff]
        %v1554 = vld [vmem:[#allocation7 + $0x3a0] sm:$0xff]
        %v1555 = vld [vmem:[#allocation7 + $0x3a8] sm:$0xff]
        %v1556 = vld [vmem:[#allocation7 + $0x3b0] sm:$0xff]
        %v1557 = vld [vmem:[#allocation7 + $0x3b8] sm:$0xff]
        %v1558 = vld [vmem:[#allocation7 + $0x3c0] sm:$0xff]
        %v1559 = vld [vmem:[#allocation7 + $0x3c8] sm:$0xff]
        %v1560 = vld [vmem:[#allocation7 + $0x3d0] sm:$0xff]
        %v1561 = vld [vmem:[#allocation7 + $0x3d8] sm:$0xff]
        %v1562 = vld [vmem:[#allocation7 + $0x3e0] sm:$0xff]
        %v1563 = vld [vmem:[#allocation7 + $0x3e8] sm:$0xff]
        %v1564 = vld [vmem:[#allocation7 + $0x3f0] sm:$0xff]
        %v1565 = vld [vmem:[#allocation7 + $0x3f8] sm:$0xff]
        %v1566 = vld [vmem:[#allocation7 + $0x400] sm:$0xff]
        %v1567 = vld [vmem:[#allocation7 + $0x408] sm:$0xff]
        %v1568 = vld [vmem:[#allocation7 + $0x410] sm:$0xff]
        %v1569 = vld [vmem:[#allocation7 + $0x418] sm:$0xff]
        %v1570 = vld [vmem:[#allocation7 + $0x420] sm:$0xff]
        %v1571 = vld [vmem:[#allocation7 + $0x428] sm:$0xff]
        %v1572 = vld [vmem:[#allocation7 + $0x430] sm:$0xff]
        %v1573 = vld [vmem:[#allocation7 + $0x438] sm:$0xff]
        %v1574 = vld [vmem:[#allocation7 + $0x440] sm:$0xff]
        %v1575 = vld [vmem:[#allocation7 + $0x448] sm:$0xff]
        %v1576 = vld [vmem:[#allocation7 + $0x450] sm:$0xff]
        %v1577 = vld [vmem:[#allocation7 + $0x458] sm:$0xff]
        %v1578 = vld [vmem:[#allocation7 + $0x460] sm:$0xff]
        %v1579 = vld [vmem:[#allocation7 + $0x468] sm:$0xff]
        %v1580 = vld [vmem:[#allocation7 + $0x470] sm:$0xff]
        %v1581 = vld [vmem:[#allocation7 + $0x478] sm:$0xff]
        %v1582 = vld [vmem:[#allocation10] sm:$0xff]
        %v1583 = vld [vmem:[#allocation8] sm:$0x7]
        %v1585 = vlaneseq
        %v1586 = vshrl.u32 %v1585, 7
        %v1587 = vsub.s32 0, %v1586
        %v1588 = vrot.slane %v1583, %v1587
        %v1589 = vlaneseq
        %v1590 = vshrl.u32 %v1589, 7
        %v1591 = vsub.s32 1, %v1590
        %v1592 = vrot.slane %v1583, %v1591
        %v1593 = vlaneseq
        %v1594 = vshrl.u32 %v1593, 7
        %v1595 = vsub.s32 2, %v1594
        %v1596 = vrot.slane %v1583, %v1595
        %v1600 = vmul.f32 %v868, 0.125
        %vm1601 = vcmask 523264
        %v1603 = vsel %vm1601, %v1600, 0
        %v1606 = vsel %vm1601, %v1012, 0
        %1608 = vmatprep.subr.mxu0 0.0
        %1609 = vmatpush1.xpose.msra.mxu0 0.0
        %1610 = vmatprep.subr.mxu0 0.0
        %1611 = vmatpush1.xpose.msra.mxu0 0.0
        %1612 = vmatprep.subr.mxu0 0.0
        %1613 = vmatpush1.xpose.msra.mxu0 0.0
        %1614 = vmatprep.subr.mxu0 0.0
        %1615 = vmatpush1.xpose.msra.mxu0 0.0
        %1616 = vmatprep.subr.mxu0 0.0
        %1617 = vmatpush1.xpose.msra.mxu0 0.0
        %1618 = vmatprep.subr.mxu0 0.0
        %1619 = vmatpush1.xpose.msra.mxu0 0.0
        %1620 = vmatprep.subr.mxu0 0.0
        %1621 = vmatpush1.xpose.msra.mxu0 0.0
        %1622 = vmatprep.subr.mxu0 0.0
        %1623 = vmatpush1.xpose.msra.mxu0 0.0
        %1624 = vmatprep.subr.mxu0 0.0
        %1625 = vmatpush1.xpose.msra.mxu0 0.0
        %1626 = vmatprep.subr.mxu0 0.0
        %1627 = vmatpush1.xpose.msra.mxu0 0.0
        %1628 = vmatprep.subr.mxu0 0.0
        %1629 = vmatpush1.xpose.msra.mxu0 0.0
        %1630 = vmatprep.subr.mxu0 0.0
        %1631 = vmatpush1.xpose.msra.mxu0 0.0
        %1632 = vmatprep.subr.mxu0 0.0
        %1633 = vmatpush1.xpose.msra.mxu0 0.0
        %1634 = vmatprep.subr.mxu0 0.0
        %1635 = vmatpush1.xpose.msra.mxu0 0.0
        %1636 = vmatprep.subr.mxu0 0.0
        %1637 = vmatpush1.xpose.msra.mxu0 0.0
        %1638 = vmatprep.subr.mxu0 0.0
        %1639 = vmatpush1.xpose.msra.mxu0 %v1606
        %1640 = vmatprep.subr.mxu0 0.0
        %1641 = vmatpush2.xpose.msra.mxu0 0.0
        %1642 = vmatprep.subr.mxu0 0.0
        %1643 = vmatpush2.xpose.msra.mxu0 0.0
        %1644 = vmatprep.subr.mxu0 0.0
        %1645 = vmatpush2.xpose.msra.mxu0 0.0
        %1646 = vmatprep.subr.mxu0 0.0
        %1647 = vmatpush2.xpose.msra.mxu0 0.0
        %1648 = vmatprep.subr.mxu0 0.0
        %1649 = vmatpush2.xpose.msra.mxu0 0.0
        %1650 = vmatprep.subr.mxu0 0.0
        %1651 = vmatpush2.xpose.msra.mxu0 0.0
        %1652 = vmatprep.subr.mxu0 0.0
        %1653 = vmatpush2.xpose.msra.mxu0 0.0
        %1654 = vmatprep.subr.mxu0 0.0
        %1655 = vmatpush2.xpose.msra.mxu0 0.0
        %1656 = vmatprep.subr.mxu0 0.0
        %1657 = vmatpush2.xpose.msra.mxu0 0.0
        %1658 = vmatprep.subr.mxu0 0.0
        %1659 = vmatpush2.xpose.msra.mxu0 0.0
        %1660 = vmatprep.subr.mxu0 0.0
        %1661 = vmatpush2.xpose.msra.mxu0 0.0
        %1662 = vmatprep.subr.mxu0 0.0
        %1663 = vmatpush2.xpose.msra.mxu0 0.0
        %1664 = vmatprep.subr.mxu0 0.0
        %1665 = vmatpush2.xpose.msra.mxu0 0.0
        %1666 = vmatprep.subr.mxu0 0.0
        %1667 = vmatpush2.xpose.msra.mxu0 0.0
        %1668 = vmatprep.subr.mxu0 0.0
        %1669 = vmatpush2.xpose.msra.mxu0 0.0
        %1670 = vmatprep.subr.mxu0 0.0
        %1671 = vmatpush2.xpose.msra.mxu0 0.0
        %1672 = vmatprep.mubr.f32.mxu0 0.0
        %1673 = vmatmul.mubr.f32.gmra.mxu0 %v1603
        %v1674 = vpop.f32.mrf.mxu0
        %v1675 = vadd.f32 0.0, %v1674
        %v1676 = vpop.f32.mrf.mxu0
        %1677 = vdwg.mxu0
        %vm1678 = vcmp.ne.f32.partialorder %v1675, 0.0
        %v1679 = vsel %vm1678, %v1675, -inf
        %v1680 = vadd.f32 %v1679, %v1582
        %vm1681 = vcmask 64512
        %v1682 = vsel %vm1681, %v1680, -inf
        %1683 = vmax.xlane.f32.xlu0 %v1682
        %v1684 = vpop.xlane.xlu0 %1683
        %v1685 = vsub.f32 %v1680, %v1684
        %v1686 = vmul.f32 %v1685, 1.442695
        %v1687 = vpow.pop %v1686
        %v1688 = vsel %vm1681, %v1687, 0.0
        %1689 = vadd.xlane.f32.xlu0 %v1688
        %v1690 = vpop.xlane.xlu0 %1689
        %v1691 = vrcp.pop %v1690
        %v1693 = vsel %vm1681, %v1687, 0
        %1695 = vmatprep.subr.mxu0 0.0
        %1696 = vmatpush1.msra.mxu0 0.0
        %1697 = vmatprep.subr.mxu0 0.0
        %1698 = vmatpush1.msra.mxu0 0.0
        %1699 = vmatprep.subr.mxu0 0.0
        %1700 = vmatpush1.msra.mxu0 0.0
        %1701 = vmatprep.subr.mxu0 0.0
        %1702 = vmatpush1.msra.mxu0 0.0
        %1703 = vmatprep.subr.mxu0 0.0
        %1704 = vmatpush1.msra.mxu0 0.0
        %1705 = vmatprep.subr.mxu0 0.0
        %1706 = vmatpush1.msra.mxu0 0.0
        %1707 = vmatprep.subr.mxu0 0.0
        %1708 = vmatpush1.msra.mxu0 0.0
        %1709 = vmatprep.subr.mxu0 0.0
        %1710 = vmatpush1.msra.mxu0 0.0
        %1711 = vmatprep.subr.mxu0 0.0
        %1712 = vmatpush1.msra.mxu0 0.0
        %1713 = vmatprep.subr.mxu0 0.0
        %1714 = vmatpush1.msra.mxu0 0.0
        %1715 = vmatprep.subr.mxu0 0.0
        %1716 = vmatpush1.msra.mxu0 0.0
        %1717 = vmatprep.subr.mxu0 0.0
        %1718 = vmatpush1.msra.mxu0 0.0
        %1719 = vmatprep.subr.mxu0 0.0
        %1720 = vmatpush1.msra.mxu0 0.0
        %1721 = vmatprep.subr.mxu0 0.0
        %1722 = vmatpush1.msra.mxu0 0.0
        %1723 = vmatprep.subr.mxu0 0.0
        %1724 = vmatpush1.msra.mxu0 0.0
        %1725 = vmatprep.subr.mxu0 0.0
        %1726 = vmatpush1.msra.mxu0 %v1294
        %1727 = vmatprep.subr.mxu0 0.0
        %1728 = vmatpush2.msra.mxu0 0.0
        %1729 = vmatprep.subr.mxu0 0.0
        %1730 = vmatpush2.msra.mxu0 0.0
        %1731 = vmatprep.subr.mxu0 0.0
        %1732 = vmatpush2.msra.mxu0 0.0
        %1733 = vmatprep.subr.mxu0 0.0
        %1734 = vmatpush2.msra.mxu0 0.0
        %1735 = vmatprep.subr.mxu0 0.0
        %1736 = vmatpush2.msra.mxu0 0.0
        %1737 = vmatprep.subr.mxu0 0.0
        %1738 = vmatpush2.msra.mxu0 0.0
        %1739 = vmatprep.subr.mxu0 0.0
        %1740 = vmatpush2.msra.mxu0 0.0
        %1741 = vmatprep.subr.mxu0 0.0
        %1742 = vmatpush2.msra.mxu0 0.0
        %1743 = vmatprep.subr.mxu0 0.0
        %1744 = vmatpush2.msra.mxu0 0.0
        %1745 = vmatprep.subr.mxu0 0.0
        %1746 = vmatpush2.msra.mxu0 0.0
        %1747 = vmatprep.subr.mxu0 0.0
        %1748 = vmatpush2.msra.mxu0 0.0
        %1749 = vmatprep.subr.mxu0 0.0
        %1750 = vmatpush2.msra.mxu0 0.0
        %1751 = vmatprep.subr.mxu0 0.0
        %1752 = vmatpush2.msra.mxu0 0.0
        %1753 = vmatprep.subr.mxu0 0.0
        %1754 = vmatpush2.msra.mxu0 0.0
        %1755 = vmatprep.subr.mxu0 0.0
        %1756 = vmatpush2.msra.mxu0 0.0
        %1757 = vmatprep.subr.mxu0 0.0
        %1758 = vmatpush2.msra.mxu0 0.0
        %1759 = vmatprep.mubr.f32.mxu0 0.0
        %1760 = vmatmul.mubr.f32.gmra.mxu0 %v1693
        %v1761 = vpop.f32.mrf.mxu0
        %v1762 = vadd.f32 0.0, %v1761
        %v1763 = vpop.f32.mrf.mxu0
        %1764 = vdwg.mxu0
        %v1765 = vmul.f32 %v1762, %v1691
        %v1767 = vsel %vm1601, %v1765, 0
        %1769 = vmatprep.subr.mxu0 0.0
        %1770 = vmatpush1.msra.mxu0 0.0
        %1771 = vmatprep.subr.mxu0 0.0
        %1772 = vmatpush1.msra.mxu0 0.0
        %1773 = vmatprep.subr.mxu0 0.0
        %1774 = vmatpush1.msra.mxu0 0.0
        %1775 = vmatprep.subr.mxu0 0.0
        %1776 = vmatpush1.msra.mxu0 0.0
        %1777 = vmatprep.subr.mxu0 0.0
        %1778 = vmatpush1.msra.mxu0 0.0
        %1779 = vmatprep.subr.mxu0 0.0
        %1780 = vmatpush1.msra.mxu0 0.0
        %1781 = vmatprep.subr.mxu0 0.0
        %1782 = vmatpush1.msra.mxu0 0.0
        %1783 = vmatprep.subr.mxu0 0.0
        %1784 = vmatpush1.msra.mxu0 0.0
        %1785 = vmatprep.subr.mxu0 %v1460
        %1786 = vmatpush1.msra.mxu0 %v1459
        %1787 = vmatprep.subr.mxu0 %v1457
        %1788 = vmatpush1.msra.mxu0 %v1456
        %1789 = vmatprep.subr.mxu0 %v1454
        %1790 = vmatpush1.msra.mxu0 %v1453
        %1791 = vmatprep.subr.mxu0 %v1451
        %1792 = vmatpush1.msra.mxu0 %v1450
        %1793 = vmatprep.subr.mxu0 %v1448
        %1794 = vmatpush1.msra.mxu0 %v1447
        %1795 = vmatprep.subr.mxu0 %v1445
        %1796 = vmatpush1.msra.mxu0 %v1444
        %1797 = vmatprep.subr.mxu0 %v1442
        %1798 = vmatpush1.msra.mxu0 %v1441
        %1799 = vmatprep.subr.mxu0 %v1439
        %1800 = vmatpush1.msra.mxu0 %v1438
        %1801 = vmatprep.subr.mxu0 0.0
        %1802 = vmatpush2.msra.mxu0 0.0
        %1803 = vmatprep.subr.mxu0 0.0
        %1804 = vmatpush2.msra.mxu0 0.0
        %1805 = vmatprep.subr.mxu0 0.0
        %1806 = vmatpush2.msra.mxu0 0.0
        %1807 = vmatprep.subr.mxu0 0.0
        %1808 = vmatpush2.msra.mxu0 0.0
        %1809 = vmatprep.subr.mxu0 0.0
        %1810 = vmatpush2.msra.mxu0 0.0
        %1811 = vmatprep.subr.mxu0 0.0
        %1812 = vmatpush2.msra.mxu0 0.0
        %1813 = vmatprep.subr.mxu0 0.0
        %1814 = vmatpush2.msra.mxu0 0.0
        %1815 = vmatprep.subr.mxu0 0.0
        %1816 = vmatpush2.msra.mxu0 0.0
        %1817 = vmatprep.subr.mxu0 0.0
        %1818 = vmatpush2.msra.mxu0 0.0
        %1819 = vmatprep.subr.mxu0 0.0
        %1820 = vmatpush2.msra.mxu0 0.0
        %1821 = vmatprep.subr.mxu0 0.0
        %1822 = vmatpush2.msra.mxu0 0.0
        %1823 = vmatprep.subr.mxu0 0.0
        %1824 = vmatpush2.msra.mxu0 0.0
        %1825 = vmatprep.subr.mxu0 0.0
        %1826 = vmatpush2.msra.mxu0 0.0
        %1827 = vmatprep.subr.mxu0 0.0
        %1828 = vmatpush2.msra.mxu0 0.0
        %1829 = vmatprep.subr.mxu0 0.0
        %1830 = vmatpush2.msra.mxu0 0.0
        %1831 = vmatprep.subr.mxu0 0.0
        %1832 = vmatpush2.msra.mxu0 0.0
        %1833 = vmatprep.mubr.f32.mxu0 0.0
        %1834 = vmatmul.mubr.f32.gmra.mxu0 %v1767
        %v1835 = vpop.f32.mrf.mxu0
        %v1836 = vadd.f32 0.0, %v1835
        %v1837 = vpop.f32.mrf.mxu0
        %v1838 = vadd.f32 0.0, %v1837
        %1839 = vdwg.mxu0
        %1840 = vmatprep.subr.mxu0 0.0
        %1841 = vmatpush1.msra.mxu0 0.0
        %1842 = vmatprep.subr.mxu0 0.0
        %1843 = vmatpush1.msra.mxu0 0.0
        %1844 = vmatprep.subr.mxu0 0.0
        %1845 = vmatpush1.msra.mxu0 0.0
        %1846 = vmatprep.subr.mxu0 0.0
        %1847 = vmatpush1.msra.mxu0 0.0
        %1848 = vmatprep.subr.mxu0 0.0
        %1849 = vmatpush1.msra.mxu0 0.0
        %1850 = vmatprep.subr.mxu0 0.0
        %1851 = vmatpush1.msra.mxu0 0.0
        %1852 = vmatprep.subr.mxu0 0.0
        %1853 = vmatpush1.msra.mxu0 0.0
        %1854 = vmatprep.subr.mxu0 0.0
        %1855 = vmatpush1.msra.mxu0 0.0
        %1856 = vmatprep.subr.mxu0 0.0
        %1857 = vmatpush1.msra.mxu0 %v1461
        %1858 = vmatprep.subr.mxu0 0.0
        %1859 = vmatpush1.msra.mxu0 %v1458
        %1860 = vmatprep.subr.mxu0 0.0
        %1861 = vmatpush1.msra.mxu0 %v1455
        %1862 = vmatprep.subr.mxu0 0.0
        %1863 = vmatpush1.msra.mxu0 %v1452
        %1864 = vmatprep.subr.mxu0 0.0
        %1865 = vmatpush1.msra.mxu0 %v1449
        %1866 = vmatprep.subr.mxu0 0.0
        %1867 = vmatpush1.msra.mxu0 %v1446
        %1868 = vmatprep.subr.mxu0 0.0
        %1869 = vmatpush1.msra.mxu0 %v1443
        %1870 = vmatprep.subr.mxu0 0.0
        %1871 = vmatpush1.msra.mxu0 %v1440
        %1872 = vmatprep.subr.mxu0 0.0
        %1873 = vmatpush2.msra.mxu0 0.0
        %1874 = vmatprep.subr.mxu0 0.0
        %1875 = vmatpush2.msra.mxu0 0.0
        %1876 = vmatprep.subr.mxu0 0.0
        %1877 = vmatpush2.msra.mxu0 0.0
        %1878 = vmatprep.subr.mxu0 0.0
        %1879 = vmatpush2.msra.mxu0 0.0
        %1880 = vmatprep.subr.mxu0 0.0
        %1881 = vmatpush2.msra.mxu0 0.0
        %1882 = vmatprep.subr.mxu0 0.0
        %1883 = vmatpush2.msra.mxu0 0.0
        %1884 = vmatprep.subr.mxu0 0.0
        %1885 = vmatpush2.msra.mxu0 0.0
        %1886 = vmatprep.subr.mxu0 0.0
        %1887 = vmatpush2.msra.mxu0 0.0
        %1888 = vmatprep.subr.mxu0 0.0
        %1889 = vmatpush2.msra.mxu0 0.0
        %1890 = vmatprep.subr.mxu0 0.0
        %1891 = vmatpush2.msra.mxu0 0.0
        %1892 = vmatprep.subr.mxu0 0.0
        %1893 = vmatpush2.msra.mxu0 0.0
        %1894 = vmatprep.subr.mxu0 0.0
        %1895 = vmatpush2.msra.mxu0 0.0
        %1896 = vmatprep.subr.mxu0 0.0
        %1897 = vmatpush2.msra.mxu0 0.0
        %1898 = vmatprep.subr.mxu0 0.0
        %1899 = vmatpush2.msra.mxu0 0.0
        %1900 = vmatprep.subr.mxu0 0.0
        %1901 = vmatpush2.msra.mxu0 0.0
        %1902 = vmatprep.subr.mxu0 0.0
        %1903 = vmatpush2.msra.mxu0 0.0
        %1904 = vmatprep.mubr.f32.mxu0 0.0
        %1905 = vmatmul.mubr.f32.gmra.mxu0 %v1767
        %v1906 = vpop.f32.mrf.mxu0
        %v1907 = vadd.f32 0.0, %v1906
        %v1908 = vpop.f32.mrf.mxu0
        %1909 = vdwg.mxu0
        %v1910 = vadd.f32 %v1588, %v1836
        %v1911 = vadd.f32 %v1592, %v1838
        %v1912 = vadd.f32 %v1596, %v1907
        %1913 = vrot.lane.b32.xlu0 %v1600, 64
        %v1914 = vpop.permute.xlu0 %1913
        %1915 = vrot.lane.b32.xlu0 %v1012, 64
        %v1916 = vpop.permute.xlu0 %1915
        %v1917 = vsel %vm1601, %v1914, 0
        %v1919 = vsel %vm1601, %v1916, 0
        %1921 = vmatprep.subr.mxu0 0.0
        %1922 = vmatpush1.xpose.msra.mxu0 0.0
        %1923 = vmatprep.subr.mxu0 0.0
        %1924 = vmatpush1.xpose.msra.mxu0 0.0
        %1925 = vmatprep.subr.mxu0 0.0
        %1926 = vmatpush1.xpose.msra.mxu0 0.0
        %1927 = vmatprep.subr.mxu0 0.0
        %1928 = vmatpush1.xpose.msra.mxu0 0.0
        %1929 = vmatprep.subr.mxu0 0.0
        %1930 = vmatpush1.xpose.msra.mxu0 0.0
        %1931 = vmatprep.subr.mxu0 0.0
        %1932 = vmatpush1.xpose.msra.mxu0 0.0
        %1933 = vmatprep.subr.mxu0 0.0
        %1934 = vmatpush1.xpose.msra.mxu0 0.0
        %1935 = vmatprep.subr.mxu0 0.0
        %1936 = vmatpush1.xpose.msra.mxu0 0.0
        %1937 = vmatprep.subr.mxu0 0.0
        %1938 = vmatpush1.xpose.msra.mxu0 0.0
        %1939 = vmatprep.subr.mxu0 0.0
        %1940 = vmatpush1.xpose.msra.mxu0 0.0
        %1941 = vmatprep.subr.mxu0 0.0
        %1942 = vmatpush1.xpose.msra.mxu0 0.0
        %1943 = vmatprep.subr.mxu0 0.0
        %1944 = vmatpush1.xpose.msra.mxu0 0.0
        %1945 = vmatprep.subr.mxu0 0.0
        %1946 = vmatpush1.xpose.msra.mxu0 0.0
        %1947 = vmatprep.subr.mxu0 0.0
        %1948 = vmatpush1.xpose.msra.mxu0 0.0
        %1949 = vmatprep.subr.mxu0 0.0
        %1950 = vmatpush1.xpose.msra.mxu0 0.0
        %1951 = vmatprep.subr.mxu0 0.0
        %1952 = vmatpush1.xpose.msra.mxu0 %v1919
        %1953 = vmatprep.subr.mxu0 0.0
        %1954 = vmatpush2.xpose.msra.mxu0 0.0
        %1955 = vmatprep.subr.mxu0 0.0
        %1956 = vmatpush2.xpose.msra.mxu0 0.0
        %1957 = vmatprep.subr.mxu0 0.0
        %1958 = vmatpush2.xpose.msra.mxu0 0.0
        %1959 = vmatprep.subr.mxu0 0.0
        %1960 = vmatpush2.xpose.msra.mxu0 0.0
        %1961 = vmatprep.subr.mxu0 0.0
        %1962 = vmatpush2.xpose.msra.mxu0 0.0
        %1963 = vmatprep.subr.mxu0 0.0
        %1964 = vmatpush2.xpose.msra.mxu0 0.0
        %1965 = vmatprep.subr.mxu0 0.0
        %1966 = vmatpush2.xpose.msra.mxu0 0.0
        %1967 = vmatprep.subr.mxu0 0.0
        %1968 = vmatpush2.xpose.msra.mxu0 0.0
        %1969 = vmatprep.subr.mxu0 0.0
        %1970 = vmatpush2.xpose.msra.mxu0 0.0
        %1971 = vmatprep.subr.mxu0 0.0
        %1972 = vmatpush2.xpose.msra.mxu0 0.0
        %1973 = vmatprep.subr.mxu0 0.0
        %1974 = vmatpush2.xpose.msra.mxu0 0.0
        %1975 = vmatprep.subr.mxu0 0.0
        %1976 = vmatpush2.xpose.msra.mxu0 0.0
        %1977 = vmatprep.subr.mxu0 0.0
        %1978 = vmatpush2.xpose.msra.mxu0 0.0
        %1979 = vmatprep.subr.mxu0 0.0
        %1980 = vmatpush2.xpose.msra.mxu0 0.0
        %1981 = vmatprep.subr.mxu0 0.0
        %1982 = vmatpush2.xpose.msra.mxu0 0.0
        %1983 = vmatprep.subr.mxu0 0.0
        %1984 = vmatpush2.xpose.msra.mxu0 0.0
        %1985 = vmatprep.mubr.f32.mxu0 0.0
        %1986 = vmatmul.mubr.f32.gmra.mxu0 %v1917
        %v1987 = vpop.f32.mrf.mxu0
        %v1988 = vadd.f32 0.0, %v1987
        %v1989 = vpop.f32.mrf.mxu0
        %1990 = vdwg.mxu0
        %vm1991 = vcmp.ne.f32.partialorder %v1988, 0.0
        %v1992 = vsel %vm1991, %v1988, -inf
        %v1993 = vadd.f32 %v1992, %v1582
        %v1994 = vsel %vm1681, %v1993, -inf
        %1995 = vmax.xlane.f32.xlu0 %v1994
        %v1996 = vpop.xlane.xlu0 %1995
        %v1997 = vsub.f32 %v1993, %v1996
        %v1998 = vmul.f32 %v1997, 1.442695
        %v1999 = vpow.pop %v1998
        %v2000 = vsel %vm1681, %v1999, 0.0
        %2001 = vadd.xlane.f32.xlu0 %v2000
        %v2002 = vpop.xlane.xlu0 %2001
        %v2003 = vrcp.pop %v2002
        %2005 = vrot.lane.b32.xlu0 %v1294, 64
        %v2006 = vpop.permute.xlu0 %2005
        %v2009 = vsel %vm1681, %v1999, 0
        %2011 = vmatprep.subr.mxu0 0.0
        %2012 = vmatpush1.msra.mxu0 0.0
        %2013 = vmatprep.subr.mxu0 0.0
        %2014 = vmatpush1.msra.mxu0 0.0
        %2015 = vmatprep.subr.mxu0 0.0
        %2016 = vmatpush1.msra.mxu0 0.0
        %2017 = vmatprep.subr.mxu0 0.0
        %2018 = vmatpush1.msra.mxu0 0.0
        %2019 = vmatprep.subr.mxu0 0.0
        %2020 = vmatpush1.msra.mxu0 0.0
        %2021 = vmatprep.subr.mxu0 0.0
        %2022 = vmatpush1.msra.mxu0 0.0
        %2023 = vmatprep.subr.mxu0 0.0
        %2024 = vmatpush1.msra.mxu0 0.0
        %2025 = vmatprep.subr.mxu0 0.0
        %2026 = vmatpush1.msra.mxu0 0.0
        %2027 = vmatprep.subr.mxu0 0.0
        %2028 = vmatpush1.msra.mxu0 0.0
        %2029 = vmatprep.subr.mxu0 0.0
        %2030 = vmatpush1.msra.mxu0 0.0
        %2031 = vmatprep.subr.mxu0 0.0
        %2032 = vmatpush1.msra.mxu0 0.0
        %2033 = vmatprep.subr.mxu0 0.0
        %2034 = vmatpush1.msra.mxu0 0.0
        %2035 = vmatprep.subr.mxu0 0.0
        %2036 = vmatpush1.msra.mxu0 0.0
        %2037 = vmatprep.subr.mxu0 0.0
        %2038 = vmatpush1.msra.mxu0 0.0
        %2039 = vmatprep.subr.mxu0 0.0
        %2040 = vmatpush1.msra.mxu0 0.0
        %2041 = vmatprep.subr.mxu0 0.0
        %2042 = vmatpush1.msra.mxu0 %v2006
        %2043 = vmatprep.subr.mxu0 0.0
        %2044 = vmatpush2.msra.mxu0 0.0
        %2045 = vmatprep.subr.mxu0 0.0
        %2046 = vmatpush2.msra.mxu0 0.0
        %2047 = vmatprep.subr.mxu0 0.0
        %2048 = vmatpush2.msra.mxu0 0.0
        %2049 = vmatprep.subr.mxu0 0.0
        %2050 = vmatpush2.msra.mxu0 0.0
        %2051 = vmatprep.subr.mxu0 0.0
        %2052 = vmatpush2.msra.mxu0 0.0
        %2053 = vmatprep.subr.mxu0 0.0
        %2054 = vmatpush2.msra.mxu0 0.0
        %2055 = vmatprep.subr.mxu0 0.0
        %2056 = vmatpush2.msra.mxu0 0.0
        %2057 = vmatprep.subr.mxu0 0.0
        %2058 = vmatpush2.msra.mxu0 0.0
        %2059 = vmatprep.subr.mxu0 0.0
        %2060 = vmatpush2.msra.mxu0 0.0
        %2061 = vmatprep.subr.mxu0 0.0
        %2062 = vmatpush2.msra.mxu0 0.0
        %2063 = vmatprep.subr.mxu0 0.0
        %2064 = vmatpush2.msra.mxu0 0.0
        %2065 = vmatprep.subr.mxu0 0.0
        %2066 = vmatpush2.msra.mxu0 0.0
        %2067 = vmatprep.subr.mxu0 0.0
        %2068 = vmatpush2.msra.mxu0 0.0
        %2069 = vmatprep.subr.mxu0 0.0
        %2070 = vmatpush2.msra.mxu0 0.0
        %2071 = vmatprep.subr.mxu0 0.0
        %2072 = vmatpush2.msra.mxu0 0.0
        %2073 = vmatprep.subr.mxu0 0.0
        %2074 = vmatpush2.msra.mxu0 0.0
        %2075 = vmatprep.mubr.f32.mxu0 0.0
        %2076 = vmatmul.mubr.f32.gmra.mxu0 %v2009
        %v2077 = vpop.f32.mrf.mxu0
        %v2078 = vadd.f32 0.0, %v2077
        %v2079 = vpop.f32.mrf.mxu0
        %2080 = vdwg.mxu0
        %v2081 = vmul.f32 %v2078, %v2003
        %v2083 = vsel %vm1601, %v2081, 0
        %2085 = vmatprep.subr.mxu0 0.0
        %2086 = vmatpush1.msra.mxu0 0.0
        %2087 = vmatprep.subr.mxu0 0.0
        %2088 = vmatpush1.msra.mxu0 0.0
        %2089 = vmatprep.subr.mxu0 0.0
        %2090 = vmatpush1.msra.mxu0 0.0
        %2091 = vmatprep.subr.mxu0 0.0
        %2092 = vmatpush1.msra.mxu0 0.0
        %2093 = vmatprep.subr.mxu0 0.0
        %2094 = vmatpush1.msra.mxu0 0.0
        %2095 = vmatprep.subr.mxu0 0.0
        %2096 = vmatpush1.msra.mxu0 0.0
        %2097 = vmatprep.subr.mxu0 0.0
        %2098 = vmatpush1.msra.mxu0 0.0
        %2099 = vmatprep.subr.mxu0 0.0
        %2100 = vmatpush1.msra.mxu0 0.0
        %2101 = vmatprep.subr.mxu0 %v1484
        %2102 = vmatpush1.msra.mxu0 %v1483
        %2103 = vmatprep.subr.mxu0 %v1481
        %2104 = vmatpush1.msra.mxu0 %v1480
        %2105 = vmatprep.subr.mxu0 %v1478
        %2106 = vmatpush1.msra.mxu0 %v1477
        %2107 = vmatprep.subr.mxu0 %v1475
        %2108 = vmatpush1.msra.mxu0 %v1474
        %2109 = vmatprep.subr.mxu0 %v1472
        %2110 = vmatpush1.msra.mxu0 %v1471
        %2111 = vmatprep.subr.mxu0 %v1469
        %2112 = vmatpush1.msra.mxu0 %v1468
        %2113 = vmatprep.subr.mxu0 %v1466
        %2114 = vmatpush1.msra.mxu0 %v1465
        %2115 = vmatprep.subr.mxu0 %v1463
        %2116 = vmatpush1.msra.mxu0 %v1462
        %2117 = vmatprep.subr.mxu0 0.0
        %2118 = vmatpush2.msra.mxu0 0.0
        %2119 = vmatprep.subr.mxu0 0.0
        %2120 = vmatpush2.msra.mxu0 0.0
        %2121 = vmatprep.subr.mxu0 0.0
        %2122 = vmatpush2.msra.mxu0 0.0
        %2123 = vmatprep.subr.mxu0 0.0
        %2124 = vmatpush2.msra.mxu0 0.0
        %2125 = vmatprep.subr.mxu0 0.0
        %2126 = vmatpush2.msra.mxu0 0.0
        %2127 = vmatprep.subr.mxu0 0.0
        %2128 = vmatpush2.msra.mxu0 0.0
        %2129 = vmatprep.subr.mxu0 0.0
        %2130 = vmatpush2.msra.mxu0 0.0
        %2131 = vmatprep.subr.mxu0 0.0
        %2132 = vmatpush2.msra.mxu0 0.0
        %2133 = vmatprep.subr.mxu0 0.0
        %2134 = vmatpush2.msra.mxu0 0.0
        %2135 = vmatprep.subr.mxu0 0.0
        %2136 = vmatpush2.msra.mxu0 0.0
        %2137 = vmatprep.subr.mxu0 0.0
        %2138 = vmatpush2.msra.mxu0 0.0
        %2139 = vmatprep.subr.mxu0 0.0
        %2140 = vmatpush2.msra.mxu0 0.0
        %2141 = vmatprep.subr.mxu0 0.0
        %2142 = vmatpush2.msra.mxu0 0.0
        %2143 = vmatprep.subr.mxu0 0.0
        %2144 = vmatpush2.msra.mxu0 0.0
        %2145 = vmatprep.subr.mxu0 0.0
        %2146 = vmatpush2.msra.mxu0 0.0
        %2147 = vmatprep.subr.mxu0 0.0
        %2148 = vmatpush2.msra.mxu0 0.0
        %2149 = vmatprep.mubr.f32.mxu0 0.0
        %2150 = vmatmul.mubr.f32.gmra.mxu0 %v2083
        %v2151 = vpop.f32.mrf.mxu0
        %v2152 = vadd.f32 0.0, %v2151
        %v2153 = vpop.f32.mrf.mxu0
        %v2154 = vadd.f32 0.0, %v2153
        %2155 = vdwg.mxu0
        %2156 = vmatprep.subr.mxu0 0.0
        %2157 = vmatpush1.msra.mxu0 0.0
        %2158 = vmatprep.subr.mxu0 0.0
        %2159 = vmatpush1.msra.mxu0 0.0
        %2160 = vmatprep.subr.mxu0 0.0
        %2161 = vmatpush1.msra.mxu0 0.0
        %2162 = vmatprep.subr.mxu0 0.0
        %2163 = vmatpush1.msra.mxu0 0.0
        %2164 = vmatprep.subr.mxu0 0.0
        %2165 = vmatpush1.msra.mxu0 0.0
        %2166 = vmatprep.subr.mxu0 0.0
        %2167 = vmatpush1.msra.mxu0 0.0
        %2168 = vmatprep.subr.mxu0 0.0
        %2169 = vmatpush1.msra.mxu0 0.0
        %2170 = vmatprep.subr.mxu0 0.0
        %2171 = vmatpush1.msra.mxu0 0.0
        %2172 = vmatprep.subr.mxu0 0.0
        %2173 = vmatpush1.msra.mxu0 %v1485
        %2174 = vmatprep.subr.mxu0 0.0
        %2175 = vmatpush1.msra.mxu0 %v1482
        %2176 = vmatprep.subr.mxu0 0.0
        %2177 = vmatpush1.msra.mxu0 %v1479
        %2178 = vmatprep.subr.mxu0 0.0
        %2179 = vmatpush1.msra.mxu0 %v1476
        %2180 = vmatprep.subr.mxu0 0.0
        %2181 = vmatpush1.msra.mxu0 %v1473
        %2182 = vmatprep.subr.mxu0 0.0
        %2183 = vmatpush1.msra.mxu0 %v1470
        %2184 = vmatprep.subr.mxu0 0.0
        %2185 = vmatpush1.msra.mxu0 %v1467
        %2186 = vmatprep.subr.mxu0 0.0
        %2187 = vmatpush1.msra.mxu0 %v1464
        %2188 = vmatprep.subr.mxu0 0.0
        %2189 = vmatpush2.msra.mxu0 0.0
        %2190 = vmatprep.subr.mxu0 0.0
        %2191 = vmatpush2.msra.mxu0 0.0
        %2192 = vmatprep.subr.mxu0 0.0
        %2193 = vmatpush2.msra.mxu0 0.0
        %2194 = vmatprep.subr.mxu0 0.0
        %2195 = vmatpush2.msra.mxu0 0.0
        %2196 = vmatprep.subr.mxu0 0.0
        %2197 = vmatpush2.msra.mxu0 0.0
        %2198 = vmatprep.subr.mxu0 0.0
        %2199 = vmatpush2.msra.mxu0 0.0
        %2200 = vmatprep.subr.mxu0 0.0
        %2201 = vmatpush2.msra.mxu0 0.0
        %2202 = vmatprep.subr.mxu0 0.0
        %2203 = vmatpush2.msra.mxu0 0.0
        %2204 = vmatprep.subr.mxu0 0.0
        %2205 = vmatpush2.msra.mxu0 0.0
        %2206 = vmatprep.subr.mxu0 0.0
        %2207 = vmatpush2.msra.mxu0 0.0
        %2208 = vmatprep.subr.mxu0 0.0
        %2209 = vmatpush2.msra.mxu0 0.0
        %2210 = vmatprep.subr.mxu0 0.0
        %2211 = vmatpush2.msra.mxu0 0.0
        %2212 = vmatprep.subr.mxu0 0.0
        %2213 = vmatpush2.msra.mxu0 0.0
        %2214 = vmatprep.subr.mxu0 0.0
        %2215 = vmatpush2.msra.mxu0 0.0
        %2216 = vmatprep.subr.mxu0 0.0
        %2217 = vmatpush2.msra.mxu0 0.0
        %2218 = vmatprep.subr.mxu0 0.0
        %2219 = vmatpush2.msra.mxu0 0.0
        %2220 = vmatprep.mubr.f32.mxu0 0.0
        %2221 = vmatmul.mubr.f32.gmra.mxu0 %v2083
        %v2222 = vpop.f32.mrf.mxu0
        %v2223 = vadd.f32 0.0, %v2222
        %v2224 = vpop.f32.mrf.mxu0
        %2225 = vdwg.mxu0
        %v2226 = vadd.f32 %v1910, %v2152
        %v2227 = vadd.f32 %v1911, %v2154
        %v2228 = vadd.f32 %v1912, %v2223
        %v2229 = vmul.f32 %v870, 0.125
        %v2231 = vsel %vm1601, %v2229, 0
        %v2234 = vsel %vm1601, %v1152, 0
        %2236 = vmatprep.subr.mxu0 0.0
        %2237 = vmatpush1.xpose.msra.mxu0 0.0
        %2238 = vmatprep.subr.mxu0 0.0
        %2239 = vmatpush1.xpose.msra.mxu0 0.0
        %2240 = vmatprep.subr.mxu0 0.0
        %2241 = vmatpush1.xpose.msra.mxu0 0.0
        %2242 = vmatprep.subr.mxu0 0.0
        %2243 = vmatpush1.xpose.msra.mxu0 0.0
        %2244 = vmatprep.subr.mxu0 0.0
        %2245 = vmatpush1.xpose.msra.mxu0 0.0
        %2246 = vmatprep.subr.mxu0 0.0
        %2247 = vmatpush1.xpose.msra.mxu0 0.0
        %2248 = vmatprep.subr.mxu0 0.0
        %2249 = vmatpush1.xpose.msra.mxu0 0.0
        %2250 = vmatprep.subr.mxu0 0.0
        %2251 = vmatpush1.xpose.msra.mxu0 0.0
        %2252 = vmatprep.subr.mxu0 0.0
        %2253 = vmatpush1.xpose.msra.mxu0 0.0
        %2254 = vmatprep.subr.mxu0 0.0
        %2255 = vmatpush1.xpose.msra.mxu0 0.0
        %2256 = vmatprep.subr.mxu0 0.0
        %2257 = vmatpush1.xpose.msra.mxu0 0.0
        %2258 = vmatprep.subr.mxu0 0.0
        %2259 = vmatpush1.xpose.msra.mxu0 0.0
        %2260 = vmatprep.subr.mxu0 0.0
        %2261 = vmatpush1.xpose.msra.mxu0 0.0
        %2262 = vmatprep.subr.mxu0 0.0
        %2263 = vmatpush1.xpose.msra.mxu0 0.0
        %2264 = vmatprep.subr.mxu0 0.0
        %2265 = vmatpush1.xpose.msra.mxu0 0.0
        %2266 = vmatprep.subr.mxu0 0.0
        %2267 = vmatpush1.xpose.msra.mxu0 %v2234
        %2268 = vmatprep.subr.mxu0 0.0
        %2269 = vmatpush2.xpose.msra.mxu0 0.0
        %2270 = vmatprep.subr.mxu0 0.0
        %2271 = vmatpush2.xpose.msra.mxu0 0.0
        %2272 = vmatprep.subr.mxu0 0.0
        %2273 = vmatpush2.xpose.msra.mxu0 0.0
        %2274 = vmatprep.subr.mxu0 0.0
        %2275 = vmatpush2.xpose.msra.mxu0 0.0
        %2276 = vmatprep.subr.mxu0 0.0
        %2277 = vmatpush2.xpose.msra.mxu0 0.0
        %2278 = vmatprep.subr.mxu0 0.0
        %2279 = vmatpush2.xpose.msra.mxu0 0.0
        %2280 = vmatprep.subr.mxu0 0.0
        %2281 = vmatpush2.xpose.msra.mxu0 0.0
        %2282 = vmatprep.subr.mxu0 0.0
        %2283 = vmatpush2.xpose.msra.mxu0 0.0
        %2284 = vmatprep.subr.mxu0 0.0
        %2285 = vmatpush2.xpose.msra.mxu0 0.0
        %2286 = vmatprep.subr.mxu0 0.0
        %2287 = vmatpush2.xpose.msra.mxu0 0.0
        %2288 = vmatprep.subr.mxu0 0.0
        %2289 = vmatpush2.xpose.msra.mxu0 0.0
        %2290 = vmatprep.subr.mxu0 0.0
        %2291 = vmatpush2.xpose.msra.mxu0 0.0
        %2292 = vmatprep.subr.mxu0 0.0
        %2293 = vmatpush2.xpose.msra.mxu0 0.0
        %2294 = vmatprep.subr.mxu0 0.0
        %2295 = vmatpush2.xpose.msra.mxu0 0.0
        %2296 = vmatprep.subr.mxu0 0.0
        %2297 = vmatpush2.xpose.msra.mxu0 0.0
        %2298 = vmatprep.subr.mxu0 0.0
        %2299 = vmatpush2.xpose.msra.mxu0 0.0
        %2300 = vmatprep.mubr.f32.mxu0 0.0
        %2301 = vmatmul.mubr.f32.gmra.mxu0 %v2231
        %v2302 = vpop.f32.mrf.mxu0
        %v2303 = vadd.f32 0.0, %v2302
        %v2304 = vpop.f32.mrf.mxu0
        %2305 = vdwg.mxu0
        %vm2306 = vcmp.ne.f32.partialorder %v2303, 0.0
        %v2307 = vsel %vm2306, %v2303, -inf
        %v2308 = vadd.f32 %v2307, %v1582
        %v2309 = vsel %vm1681, %v2308, -inf
        %2310 = vmax.xlane.f32.xlu0 %v2309
        %v2311 = vpop.xlane.xlu0 %2310
        %v2312 = vsub.f32 %v2308, %v2311
        %v2313 = vmul.f32 %v2312, 1.442695
        %v2314 = vpow.pop %v2313
        %v2315 = vsel %vm1681, %v2314, 0.0
        %2316 = vadd.xlane.f32.xlu0 %v2315
        %v2317 = vpop.xlane.xlu0 %2316
        %v2318 = vrcp.pop %v2317
        %v2320 = vsel %vm1681, %v2314, 0
        %2322 = vmatprep.subr.mxu0 0.0
        %2323 = vmatpush1.msra.mxu0 0.0
        %2324 = vmatprep.subr.mxu0 0.0
        %2325 = vmatpush1.msra.mxu0 0.0
        %2326 = vmatprep.subr.mxu0 0.0
        %2327 = vmatpush1.msra.mxu0 0.0
        %2328 = vmatprep.subr.mxu0 0.0
        %2329 = vmatpush1.msra.mxu0 0.0
        %2330 = vmatprep.subr.mxu0 0.0
        %2331 = vmatpush1.msra.mxu0 0.0
        %2332 = vmatprep.subr.mxu0 0.0
        %2333 = vmatpush1.msra.mxu0 0.0
        %2334 = vmatprep.subr.mxu0 0.0
        %2335 = vmatpush1.msra.mxu0 0.0
        %2336 = vmatprep.subr.mxu0 0.0
        %2337 = vmatpush1.msra.mxu0 0.0
        %2338 = vmatprep.subr.mxu0 0.0
        %2339 = vmatpush1.msra.mxu0 0.0
        %2340 = vmatprep.subr.mxu0 0.0
        %2341 = vmatpush1.msra.mxu0 0.0
        %2342 = vmatprep.subr.mxu0 0.0
        %2343 = vmatpush1.msra.mxu0 0.0
        %2344 = vmatprep.subr.mxu0 0.0
        %2345 = vmatpush1.msra.mxu0 0.0
        %2346 = vmatprep.subr.mxu0 0.0
        %2347 = vmatpush1.msra.mxu0 0.0
        %2348 = vmatprep.subr.mxu0 0.0
        %2349 = vmatpush1.msra.mxu0 0.0
        %2350 = vmatprep.subr.mxu0 0.0
        %2351 = vmatpush1.msra.mxu0 0.0
        %2352 = vmatprep.subr.mxu0 0.0
        %2353 = vmatpush1.msra.mxu0 %v1296
        %2354 = vmatprep.subr.mxu0 0.0
        %2355 = vmatpush2.msra.mxu0 0.0
        %2356 = vmatprep.subr.mxu0 0.0
        %2357 = vmatpush2.msra.mxu0 0.0
        %2358 = vmatprep.subr.mxu0 0.0
        %2359 = vmatpush2.msra.mxu0 0.0
        %2360 = vmatprep.subr.mxu0 0.0
        %2361 = vmatpush2.msra.mxu0 0.0
        %2362 = vmatprep.subr.mxu0 0.0
        %2363 = vmatpush2.msra.mxu0 0.0
        %2364 = vmatprep.subr.mxu0 0.0
        %2365 = vmatpush2.msra.mxu0 0.0
        %2366 = vmatprep.subr.mxu0 0.0
        %2367 = vmatpush2.msra.mxu0 0.0
        %2368 = vmatprep.subr.mxu0 0.0
        %2369 = vmatpush2.msra.mxu0 0.0
        %2370 = vmatprep.subr.mxu0 0.0
        %2371 = vmatpush2.msra.mxu0 0.0
        %2372 = vmatprep.subr.mxu0 0.0
        %2373 = vmatpush2.msra.mxu0 0.0
        %2374 = vmatprep.subr.mxu0 0.0
        %2375 = vmatpush2.msra.mxu0 0.0
        %2376 = vmatprep.subr.mxu0 0.0
        %2377 = vmatpush2.msra.mxu0 0.0
        %2378 = vmatprep.subr.mxu0 0.0
        %2379 = vmatpush2.msra.mxu0 0.0
        %2380 = vmatprep.subr.mxu0 0.0
        %2381 = vmatpush2.msra.mxu0 0.0
        %2382 = vmatprep.subr.mxu0 0.0
        %2383 = vmatpush2.msra.mxu0 0.0
        %2384 = vmatprep.subr.mxu0 0.0
        %2385 = vmatpush2.msra.mxu0 0.0
        %2386 = vmatprep.mubr.f32.mxu0 0.0
        %2387 = vmatmul.mubr.f32.gmra.mxu0 %v2320
        %v2388 = vpop.f32.mrf.mxu0
        %v2389 = vadd.f32 0.0, %v2388
        %v2390 = vpop.f32.mrf.mxu0
        %2391 = vdwg.mxu0
        %v2392 = vmul.f32 %v2389, %v2318
        %v2394 = vsel %vm1601, %v2392, 0
        %2396 = vmatprep.subr.mxu0 0.0
        %2397 = vmatpush1.msra.mxu0 0.0
        %2398 = vmatprep.subr.mxu0 0.0
        %2399 = vmatpush1.msra.mxu0 0.0
        %2400 = vmatprep.subr.mxu0 0.0
        %2401 = vmatpush1.msra.mxu0 0.0
        %2402 = vmatprep.subr.mxu0 0.0
        %2403 = vmatpush1.msra.mxu0 0.0
        %2404 = vmatprep.subr.mxu0 0.0
        %2405 = vmatpush1.msra.mxu0 0.0
        %2406 = vmatprep.subr.mxu0 0.0
        %2407 = vmatpush1.msra.mxu0 0.0
        %2408 = vmatprep.subr.mxu0 0.0
        %2409 = vmatpush1.msra.mxu0 0.0
        %2410 = vmatprep.subr.mxu0 0.0
        %2411 = vmatpush1.msra.mxu0 0.0
        %2412 = vmatprep.subr.mxu0 %v1508
        %2413 = vmatpush1.msra.mxu0 %v1507
        %2414 = vmatprep.subr.mxu0 %v1505
        %2415 = vmatpush1.msra.mxu0 %v1504
        %2416 = vmatprep.subr.mxu0 %v1502
        %2417 = vmatpush1.msra.mxu0 %v1501
        %2418 = vmatprep.subr.mxu0 %v1499
        %2419 = vmatpush1.msra.mxu0 %v1498
        %2420 = vmatprep.subr.mxu0 %v1496
        %2421 = vmatpush1.msra.mxu0 %v1495
        %2422 = vmatprep.subr.mxu0 %v1493
        %2423 = vmatpush1.msra.mxu0 %v1492
        %2424 = vmatprep.subr.mxu0 %v1490
        %2425 = vmatpush1.msra.mxu0 %v1489
        %2426 = vmatprep.subr.mxu0 %v1487
        %2427 = vmatpush1.msra.mxu0 %v1486
        %2428 = vmatprep.subr.mxu0 0.0
        %2429 = vmatpush2.msra.mxu0 0.0
        %2430 = vmatprep.subr.mxu0 0.0
        %2431 = vmatpush2.msra.mxu0 0.0
        %2432 = vmatprep.subr.mxu0 0.0
        %2433 = vmatpush2.msra.mxu0 0.0
        %2434 = vmatprep.subr.mxu0 0.0
        %2435 = vmatpush2.msra.mxu0 0.0
        %2436 = vmatprep.subr.mxu0 0.0
        %2437 = vmatpush2.msra.mxu0 0.0
        %2438 = vmatprep.subr.mxu0 0.0
        %2439 = vmatpush2.msra.mxu0 0.0
        %2440 = vmatprep.subr.mxu0 0.0
        %2441 = vmatpush2.msra.mxu0 0.0
        %2442 = vmatprep.subr.mxu0 0.0
        %2443 = vmatpush2.msra.mxu0 0.0
        %2444 = vmatprep.subr.mxu0 0.0
        %2445 = vmatpush2.msra.mxu0 0.0
        %2446 = vmatprep.subr.mxu0 0.0
        %2447 = vmatpush2.msra.mxu0 0.0
        %2448 = vmatprep.subr.mxu0 0.0
        %2449 = vmatpush2.msra.mxu0 0.0
        %2450 = vmatprep.subr.mxu0 0.0
        %2451 = vmatpush2.msra.mxu0 0.0
        %2452 = vmatprep.subr.mxu0 0.0
        %2453 = vmatpush2.msra.mxu0 0.0
        %2454 = vmatprep.subr.mxu0 0.0
        %2455 = vmatpush2.msra.mxu0 0.0
        %2456 = vmatprep.subr.mxu0 0.0
        %2457 = vmatpush2.msra.mxu0 0.0
        %2458 = vmatprep.subr.mxu0 0.0
        %2459 = vmatpush2.msra.mxu0 0.0
        %2460 = vmatprep.mubr.f32.mxu0 0.0
        %2461 = vmatmul.mubr.f32.gmra.mxu0 %v2394
        %v2462 = vpop.f32.mrf.mxu0
        %v2463 = vadd.f32 0.0, %v2462
        %v2464 = vpop.f32.mrf.mxu0
        %v2465 = vadd.f32 0.0, %v2464
        %2466 = vdwg.mxu0
        %2467 = vmatprep.subr.mxu0 0.0
        %2468 = vmatpush1.msra.mxu0 0.0
        %2469 = vmatprep.subr.mxu0 0.0
        %2470 = vmatpush1.msra.mxu0 0.0
        %2471 = vmatprep.subr.mxu0 0.0
        %2472 = vmatpush1.msra.mxu0 0.0
        %2473 = vmatprep.subr.mxu0 0.0
        %2474 = vmatpush1.msra.mxu0 0.0
        %2475 = vmatprep.subr.mxu0 0.0
        %2476 = vmatpush1.msra.mxu0 0.0
        %2477 = vmatprep.subr.mxu0 0.0
        %2478 = vmatpush1.msra.mxu0 0.0
        %2479 = vmatprep.subr.mxu0 0.0
        %2480 = vmatpush1.msra.mxu0 0.0
        %2481 = vmatprep.subr.mxu0 0.0
        %2482 = vmatpush1.msra.mxu0 0.0
        %2483 = vmatprep.subr.mxu0 0.0
        %2484 = vmatpush1.msra.mxu0 %v1509
        %2485 = vmatprep.subr.mxu0 0.0
        %2486 = vmatpush1.msra.mxu0 %v1506
        %2487 = vmatprep.subr.mxu0 0.0
        %2488 = vmatpush1.msra.mxu0 %v1503
        %2489 = vmatprep.subr.mxu0 0.0
        %2490 = vmatpush1.msra.mxu0 %v1500
        %2491 = vmatprep.subr.mxu0 0.0
        %2492 = vmatpush1.msra.mxu0 %v1497
        %2493 = vmatprep.subr.mxu0 0.0
        %2494 = vmatpush1.msra.mxu0 %v1494
        %2495 = vmatprep.subr.mxu0 0.0
        %2496 = vmatpush1.msra.mxu0 %v1491
        %2497 = vmatprep.subr.mxu0 0.0
        %2498 = vmatpush1.msra.mxu0 %v1488
        %2499 = vmatprep.subr.mxu0 0.0
        %2500 = vmatpush2.msra.mxu0 0.0
        %2501 = vmatprep.subr.mxu0 0.0
        %2502 = vmatpush2.msra.mxu0 0.0
        %2503 = vmatprep.subr.mxu0 0.0
        %2504 = vmatpush2.msra.mxu0 0.0
        %2505 = vmatprep.subr.mxu0 0.0
        %2506 = vmatpush2.msra.mxu0 0.0
        %2507 = vmatprep.subr.mxu0 0.0
        %2508 = vmatpush2.msra.mxu0 0.0
        %2509 = vmatprep.subr.mxu0 0.0
        %2510 = vmatpush2.msra.mxu0 0.0
        %2511 = vmatprep.subr.mxu0 0.0
        %2512 = vmatpush2.msra.mxu0 0.0
        %2513 = vmatprep.subr.mxu0 0.0
        %2514 = vmatpush2.msra.mxu0 0.0
        %2515 = vmatprep.subr.mxu0 0.0
        %2516 = vmatpush2.msra.mxu0 0.0
        %2517 = vmatprep.subr.mxu0 0.0
        %2518 = vmatpush2.msra.mxu0 0.0
        %2519 = vmatprep.subr.mxu0 0.0
        %2520 = vmatpush2.msra.mxu0 0.0
        %2521 = vmatprep.subr.mxu0 0.0
        %2522 = vmatpush2.msra.mxu0 0.0
        %2523 = vmatprep.subr.mxu0 0.0
        %2524 = vmatpush2.msra.mxu0 0.0
        %2525 = vmatprep.subr.mxu0 0.0
        %2526 = vmatpush2.msra.mxu0 0.0
        %2527 = vmatprep.subr.mxu0 0.0
        %2528 = vmatpush2.msra.mxu0 0.0
        %2529 = vmatprep.subr.mxu0 0.0
        %2530 = vmatpush2.msra.mxu0 0.0
        %2531 = vmatprep.mubr.f32.mxu0 0.0
        %2532 = vmatmul.mubr.f32.gmra.mxu0 %v2394
        %v2533 = vpop.f32.mrf.mxu0
        %v2534 = vadd.f32 0.0, %v2533
        %v2535 = vpop.f32.mrf.mxu0
        %2536 = vdwg.mxu0
        %v2537 = vadd.f32 %v2226, %v2463
        %v2538 = vadd.f32 %v2227, %v2465
        %v2539 = vadd.f32 %v2228, %v2534
        %2540 = vrot.lane.b32.xlu0 %v2229, 64
        %v2541 = vpop.permute.xlu0 %2540
        %2542 = vrot.lane.b32.xlu0 %v1152, 64
        %v2543 = vpop.permute.xlu0 %2542
        %v2544 = vsel %vm1601, %v2541, 0
        %v2546 = vsel %vm1601, %v2543, 0
        %2548 = vmatprep.subr.mxu0 0.0
        %2549 = vmatpush1.xpose.msra.mxu0 0.0
        %2550 = vmatprep.subr.mxu0 0.0
        %2551 = vmatpush1.xpose.msra.mxu0 0.0
        %2552 = vmatprep.subr.mxu0 0.0
        %2553 = vmatpush1.xpose.msra.mxu0 0.0
        %2554 = vmatprep.subr.mxu0 0.0
        %2555 = vmatpush1.xpose.msra.mxu0 0.0
        %2556 = vmatprep.subr.mxu0 0.0
        %2557 = vmatpush1.xpose.msra.mxu0 0.0
        %2558 = vmatprep.subr.mxu0 0.0
        %2559 = vmatpush1.xpose.msra.mxu0 0.0
        %2560 = vmatprep.subr.mxu0 0.0
        %2561 = vmatpush1.xpose.msra.mxu0 0.0
        %2562 = vmatprep.subr.mxu0 0.0
        %2563 = vmatpush1.xpose.msra.mxu0 0.0
        %2564 = vmatprep.subr.mxu0 0.0
        %2565 = vmatpush1.xpose.msra.mxu0 0.0
        %2566 = vmatprep.subr.mxu0 0.0
        %2567 = vmatpush1.xpose.msra.mxu0 0.0
        %2568 = vmatprep.subr.mxu0 0.0
        %2569 = vmatpush1.xpose.msra.mxu0 0.0
        %2570 = vmatprep.subr.mxu0 0.0
        %2571 = vmatpush1.xpose.msra.mxu0 0.0
        %2572 = vmatprep.subr.mxu0 0.0
        %2573 = vmatpush1.xpose.msra.mxu0 0.0
        %2574 = vmatprep.subr.mxu0 0.0
        %2575 = vmatpush1.xpose.msra.mxu0 0.0
        %2576 = vmatprep.subr.mxu0 0.0
        %2577 = vmatpush1.xpose.msra.mxu0 0.0
        %2578 = vmatprep.subr.mxu0 0.0
        %2579 = vmatpush1.xpose.msra.mxu0 %v2546
        %2580 = vmatprep.subr.mxu0 0.0
        %2581 = vmatpush2.xpose.msra.mxu0 0.0
        %2582 = vmatprep.subr.mxu0 0.0
        %2583 = vmatpush2.xpose.msra.mxu0 0.0
        %2584 = vmatprep.subr.mxu0 0.0
        %2585 = vmatpush2.xpose.msra.mxu0 0.0
        %2586 = vmatprep.subr.mxu0 0.0
        %2587 = vmatpush2.xpose.msra.mxu0 0.0
        %2588 = vmatprep.subr.mxu0 0.0
        %2589 = vmatpush2.xpose.msra.mxu0 0.0
        %2590 = vmatprep.subr.mxu0 0.0
        %2591 = vmatpush2.xpose.msra.mxu0 0.0
        %2592 = vmatprep.subr.mxu0 0.0
        %2593 = vmatpush2.xpose.msra.mxu0 0.0
        %2594 = vmatprep.subr.mxu0 0.0
        %2595 = vmatpush2.xpose.msra.mxu0 0.0
        %2596 = vmatprep.subr.mxu0 0.0
        %2597 = vmatpush2.xpose.msra.mxu0 0.0
        %2598 = vmatprep.subr.mxu0 0.0
        %2599 = vmatpush2.xpose.msra.mxu0 0.0
        %2600 = vmatprep.subr.mxu0 0.0
        %2601 = vmatpush2.xpose.msra.mxu0 0.0
        %2602 = vmatprep.subr.mxu0 0.0
        %2603 = vmatpush2.xpose.msra.mxu0 0.0
        %2604 = vmatprep.subr.mxu0 0.0
        %2605 = vmatpush2.xpose.msra.mxu0 0.0
        %2606 = vmatprep.subr.mxu0 0.0
        %2607 = vmatpush2.xpose.msra.mxu0 0.0
        %2608 = vmatprep.subr.mxu0 0.0
        %2609 = vmatpush2.xpose.msra.mxu0 0.0
        %2610 = vmatprep.subr.mxu0 0.0
        %2611 = vmatpush2.xpose.msra.mxu0 0.0
        %2612 = vmatprep.mubr.f32.mxu0 0.0
        %2613 = vmatmul.mubr.f32.gmra.mxu0 %v2544
        %v2614 = vpop.f32.mrf.mxu0
        %v2615 = vadd.f32 0.0, %v2614
        %v2616 = vpop.f32.mrf.mxu0
        %2617 = vdwg.mxu0
        %vm2618 = vcmp.ne.f32.partialorder %v2615, 0.0
        %v2619 = vsel %vm2618, %v2615, -inf
        %v2620 = vadd.f32 %v2619, %v1582
        %v2621 = vsel %vm1681, %v2620, -inf
        %2622 = vmax.xlane.f32.xlu0 %v2621
        %v2623 = vpop.xlane.xlu0 %2622
        %v2624 = vsub.f32 %v2620, %v2623
        %v2625 = vmul.f32 %v2624, 1.442695
        %v2626 = vpow.pop %v2625
        %v2627 = vsel %vm1681, %v2626, 0.0
        %2628 = vadd.xlane.f32.xlu0 %v2627
        %v2629 = vpop.xlane.xlu0 %2628
        %v2630 = vrcp.pop %v2629
        %2632 = vrot.lane.b32.xlu0 %v1296, 64
        %v2633 = vpop.permute.xlu0 %2632
        %v2636 = vsel %vm1681, %v2626, 0
        %2638 = vmatprep.subr.mxu0 0.0
        %2639 = vmatpush1.msra.mxu0 0.0
        %2640 = vmatprep.subr.mxu0 0.0
        %2641 = vmatpush1.msra.mxu0 0.0
        %2642 = vmatprep.subr.mxu0 0.0
        %2643 = vmatpush1.msra.mxu0 0.0
        %2644 = vmatprep.subr.mxu0 0.0
        %2645 = vmatpush1.msra.mxu0 0.0
        %2646 = vmatprep.subr.mxu0 0.0
        %2647 = vmatpush1.msra.mxu0 0.0
        %2648 = vmatprep.subr.mxu0 0.0
        %2649 = vmatpush1.msra.mxu0 0.0
        %2650 = vmatprep.subr.mxu0 0.0
        %2651 = vmatpush1.msra.mxu0 0.0
        %2652 = vmatprep.subr.mxu0 0.0
        %2653 = vmatpush1.msra.mxu0 0.0
        %2654 = vmatprep.subr.mxu0 0.0
        %2655 = vmatpush1.msra.mxu0 0.0
        %2656 = vmatprep.subr.mxu0 0.0
        %2657 = vmatpush1.msra.mxu0 0.0
        %2658 = vmatprep.subr.mxu0 0.0
        %2659 = vmatpush1.msra.mxu0 0.0
        %2660 = vmatprep.subr.mxu0 0.0
        %2661 = vmatpush1.msra.mxu0 0.0
        %2662 = vmatprep.subr.mxu0 0.0
        %2663 = vmatpush1.msra.mxu0 0.0
        %2664 = vmatprep.subr.mxu0 0.0
        %2665 = vmatpush1.msra.mxu0 0.0
        %2666 = vmatprep.subr.mxu0 0.0
        %2667 = vmatpush1.msra.mxu0 0.0
        %2668 = vmatprep.subr.mxu0 0.0
        %2669 = vmatpush1.msra.mxu0 %v2633
        %2670 = vmatprep.subr.mxu0 0.0
        %2671 = vmatpush2.msra.mxu0 0.0
        %2672 = vmatprep.subr.mxu0 0.0
        %2673 = vmatpush2.msra.mxu0 0.0
        %2674 = vmatprep.subr.mxu0 0.0
        %2675 = vmatpush2.msra.mxu0 0.0
        %2676 = vmatprep.subr.mxu0 0.0
        %2677 = vmatpush2.msra.mxu0 0.0
        %2678 = vmatprep.subr.mxu0 0.0
        %2679 = vmatpush2.msra.mxu0 0.0
        %2680 = vmatprep.subr.mxu0 0.0
        %2681 = vmatpush2.msra.mxu0 0.0
        %2682 = vmatprep.subr.mxu0 0.0
        %2683 = vmatpush2.msra.mxu0 0.0
        %2684 = vmatprep.subr.mxu0 0.0
        %2685 = vmatpush2.msra.mxu0 0.0
        %2686 = vmatprep.subr.mxu0 0.0
        %2687 = vmatpush2.msra.mxu0 0.0
        %2688 = vmatprep.subr.mxu0 0.0
        %2689 = vmatpush2.msra.mxu0 0.0
        %2690 = vmatprep.subr.mxu0 0.0
        %2691 = vmatpush2.msra.mxu0 0.0
        %2692 = vmatprep.subr.mxu0 0.0
        %2693 = vmatpush2.msra.mxu0 0.0
        %2694 = vmatprep.subr.mxu0 0.0
        %2695 = vmatpush2.msra.mxu0 0.0
        %2696 = vmatprep.subr.mxu0 0.0
        %2697 = vmatpush2.msra.mxu0 0.0
        %2698 = vmatprep.subr.mxu0 0.0
        %2699 = vmatpush2.msra.mxu0 0.0
        %2700 = vmatprep.subr.mxu0 0.0
        %2701 = vmatpush2.msra.mxu0 0.0
        %2702 = vmatprep.mubr.f32.mxu0 0.0
        %2703 = vmatmul.mubr.f32.gmra.mxu0 %v2636
        %v2704 = vpop.f32.mrf.mxu0
        %v2705 = vadd.f32 0.0, %v2704
        %v2706 = vpop.f32.mrf.mxu0
        %2707 = vdwg.mxu0
        %v2708 = vmul.f32 %v2705, %v2630
        %v2710 = vsel %vm1601, %v2708, 0
        %2712 = vmatprep.subr.mxu0 0.0
        %2713 = vmatpush1.msra.mxu0 0.0
        %2714 = vmatprep.subr.mxu0 0.0
        %2715 = vmatpush1.msra.mxu0 0.0
        %2716 = vmatprep.subr.mxu0 0.0
        %2717 = vmatpush1.msra.mxu0 0.0
        %2718 = vmatprep.subr.mxu0 0.0
        %2719 = vmatpush1.msra.mxu0 0.0
        %2720 = vmatprep.subr.mxu0 0.0
        %2721 = vmatpush1.msra.mxu0 0.0
        %2722 = vmatprep.subr.mxu0 0.0
        %2723 = vmatpush1.msra.mxu0 0.0
        %2724 = vmatprep.subr.mxu0 0.0
        %2725 = vmatpush1.msra.mxu0 0.0
        %2726 = vmatprep.subr.mxu0 0.0
        %2727 = vmatpush1.msra.mxu0 0.0
        %2728 = vmatprep.subr.mxu0 %v1532
        %2729 = vmatpush1.msra.mxu0 %v1531
        %2730 = vmatprep.subr.mxu0 %v1529
        %2731 = vmatpush1.msra.mxu0 %v1528
        %2732 = vmatprep.subr.mxu0 %v1526
        %2733 = vmatpush1.msra.mxu0 %v1525
        %2734 = vmatprep.subr.mxu0 %v1523
        %2735 = vmatpush1.msra.mxu0 %v1522
        %2736 = vmatprep.subr.mxu0 %v1520
        %2737 = vmatpush1.msra.mxu0 %v1519
        %2738 = vmatprep.subr.mxu0 %v1517
        %2739 = vmatpush1.msra.mxu0 %v1516
        %2740 = vmatprep.subr.mxu0 %v1514
        %2741 = vmatpush1.msra.mxu0 %v1513
        %2742 = vmatprep.subr.mxu0 %v1511
        %2743 = vmatpush1.msra.mxu0 %v1510
        %2744 = vmatprep.subr.mxu0 0.0
        %2745 = vmatpush2.msra.mxu0 0.0
        %2746 = vmatprep.subr.mxu0 0.0
        %2747 = vmatpush2.msra.mxu0 0.0
        %2748 = vmatprep.subr.mxu0 0.0
        %2749 = vmatpush2.msra.mxu0 0.0
        %2750 = vmatprep.subr.mxu0 0.0
        %2751 = vmatpush2.msra.mxu0 0.0
        %2752 = vmatprep.subr.mxu0 0.0
        %2753 = vmatpush2.msra.mxu0 0.0
        %2754 = vmatprep.subr.mxu0 0.0
        %2755 = vmatpush2.msra.mxu0 0.0
        %2756 = vmatprep.subr.mxu0 0.0
        %2757 = vmatpush2.msra.mxu0 0.0
        %2758 = vmatprep.subr.mxu0 0.0
        %2759 = vmatpush2.msra.mxu0 0.0
        %2760 = vmatprep.subr.mxu0 0.0
        %2761 = vmatpush2.msra.mxu0 0.0
        %2762 = vmatprep.subr.mxu0 0.0
        %2763 = vmatpush2.msra.mxu0 0.0
        %2764 = vmatprep.subr.mxu0 0.0
        %2765 = vmatpush2.msra.mxu0 0.0
        %2766 = vmatprep.subr.mxu0 0.0
        %2767 = vmatpush2.msra.mxu0 0.0
        %2768 = vmatprep.subr.mxu0 0.0
        %2769 = vmatpush2.msra.mxu0 0.0
        %2770 = vmatprep.subr.mxu0 0.0
        %2771 = vmatpush2.msra.mxu0 0.0
        %2772 = vmatprep.subr.mxu0 0.0
        %2773 = vmatpush2.msra.mxu0 0.0
        %2774 = vmatprep.subr.mxu0 0.0
        %2775 = vmatpush2.msra.mxu0 0.0
        %2776 = vmatprep.mubr.f32.mxu0 0.0
        %2777 = vmatmul.mubr.f32.gmra.mxu0 %v2710
        %v2778 = vpop.f32.mrf.mxu0
        %v2779 = vadd.f32 0.0, %v2778
        %v2780 = vpop.f32.mrf.mxu0
        %v2781 = vadd.f32 0.0, %v2780
        %2782 = vdwg.mxu0
        %2783 = vmatprep.subr.mxu0 0.0
        %2784 = vmatpush1.msra.mxu0 0.0
        %2785 = vmatprep.subr.mxu0 0.0
        %2786 = vmatpush1.msra.mxu0 0.0
        %2787 = vmatprep.subr.mxu0 0.0
        %2788 = vmatpush1.msra.mxu0 0.0
        %2789 = vmatprep.subr.mxu0 0.0
        %2790 = vmatpush1.msra.mxu0 0.0
        %2791 = vmatprep.subr.mxu0 0.0
        %2792 = vmatpush1.msra.mxu0 0.0
        %2793 = vmatprep.subr.mxu0 0.0
        %2794 = vmatpush1.msra.mxu0 0.0
        %2795 = vmatprep.subr.mxu0 0.0
        %2796 = vmatpush1.msra.mxu0 0.0
        %2797 = vmatprep.subr.mxu0 0.0
        %2798 = vmatpush1.msra.mxu0 0.0
        %2799 = vmatprep.subr.mxu0 0.0
        %2800 = vmatpush1.msra.mxu0 %v1533
        %2801 = vmatprep.subr.mxu0 0.0
        %2802 = vmatpush1.msra.mxu0 %v1530
        %2803 = vmatprep.subr.mxu0 0.0
        %2804 = vmatpush1.msra.mxu0 %v1527
        %2805 = vmatprep.subr.mxu0 0.0
        %2806 = vmatpush1.msra.mxu0 %v1524
        %2807 = vmatprep.subr.mxu0 0.0
        %2808 = vmatpush1.msra.mxu0 %v1521
        %2809 = vmatprep.subr.mxu0 0.0
        %2810 = vmatpush1.msra.mxu0 %v1518
        %2811 = vmatprep.subr.mxu0 0.0
        %2812 = vmatpush1.msra.mxu0 %v1515
        %2813 = vmatprep.subr.mxu0 0.0
        %2814 = vmatpush1.msra.mxu0 %v1512
        %2815 = vmatprep.subr.mxu0 0.0
        %2816 = vmatpush2.msra.mxu0 0.0
        %2817 = vmatprep.subr.mxu0 0.0
        %2818 = vmatpush2.msra.mxu0 0.0
        %2819 = vmatprep.subr.mxu0 0.0
        %2820 = vmatpush2.msra.mxu0 0.0
        %2821 = vmatprep.subr.mxu0 0.0
        %2822 = vmatpush2.msra.mxu0 0.0
        %2823 = vmatprep.subr.mxu0 0.0
        %2824 = vmatpush2.msra.mxu0 0.0
        %2825 = vmatprep.subr.mxu0 0.0
        %2826 = vmatpush2.msra.mxu0 0.0
        %2827 = vmatprep.subr.mxu0 0.0
        %2828 = vmatpush2.msra.mxu0 0.0
        %2829 = vmatprep.subr.mxu0 0.0
        %2830 = vmatpush2.msra.mxu0 0.0
        %2831 = vmatprep.subr.mxu0 0.0
        %2832 = vmatpush2.msra.mxu0 0.0
        %2833 = vmatprep.subr.mxu0 0.0
        %2834 = vmatpush2.msra.mxu0 0.0
        %2835 = vmatprep.subr.mxu0 0.0
        %2836 = vmatpush2.msra.mxu0 0.0
        %2837 = vmatprep.subr.mxu0 0.0
        %2838 = vmatpush2.msra.mxu0 0.0
        %2839 = vmatprep.subr.mxu0 0.0
        %2840 = vmatpush2.msra.mxu0 0.0
        %2841 = vmatprep.subr.mxu0 0.0
        %2842 = vmatpush2.msra.mxu0 0.0
        %2843 = vmatprep.subr.mxu0 0.0
        %2844 = vmatpush2.msra.mxu0 0.0
        %2845 = vmatprep.subr.mxu0 0.0
        %2846 = vmatpush2.msra.mxu0 0.0
        %2847 = vmatprep.mubr.f32.mxu0 0.0
        %2848 = vmatmul.mubr.f32.gmra.mxu0 %v2710
        %v2849 = vpop.f32.mrf.mxu0
        %v2850 = vadd.f32 0.0, %v2849
        %v2851 = vpop.f32.mrf.mxu0
        %2852 = vdwg.mxu0
        %v2853 = vadd.f32 %v2537, %v2779
        %v2854 = vadd.f32 %v2538, %v2781
        %v2855 = vadd.f32 %v2539, %v2850
        %v2856 = vmul.f32 %v1010, 0.125
        %v2858 = vsel %vm1601, %v2856, 0
        %v2861 = vsel %vm1601, %v1154, 0
        %2863 = vmatprep.subr.mxu0 0.0
        %2864 = vmatpush1.xpose.msra.mxu0 0.0
        %2865 = vmatprep.subr.mxu0 0.0
        %2866 = vmatpush1.xpose.msra.mxu0 0.0
        %2867 = vmatprep.subr.mxu0 0.0
        %2868 = vmatpush1.xpose.msra.mxu0 0.0
        %2869 = vmatprep.subr.mxu0 0.0
        %2870 = vmatpush1.xpose.msra.mxu0 0.0
        %2871 = vmatprep.subr.mxu0 0.0
        %2872 = vmatpush1.xpose.msra.mxu0 0.0
        %2873 = vmatprep.subr.mxu0 0.0
        %2874 = vmatpush1.xpose.msra.mxu0 0.0
        %2875 = vmatprep.subr.mxu0 0.0
        %2876 = vmatpush1.xpose.msra.mxu0 0.0
        %2877 = vmatprep.subr.mxu0 0.0
        %2878 = vmatpush1.xpose.msra.mxu0 0.0
        %2879 = vmatprep.subr.mxu0 0.0
        %2880 = vmatpush1.xpose.msra.mxu0 0.0
        %2881 = vmatprep.subr.mxu0 0.0
        %2882 = vmatpush1.xpose.msra.mxu0 0.0
        %2883 = vmatprep.subr.mxu0 0.0
        %2884 = vmatpush1.xpose.msra.mxu0 0.0
        %2885 = vmatprep.subr.mxu0 0.0
        %2886 = vmatpush1.xpose.msra.mxu0 0.0
        %2887 = vmatprep.subr.mxu0 0.0
        %2888 = vmatpush1.xpose.msra.mxu0 0.0
        %2889 = vmatprep.subr.mxu0 0.0
        %2890 = vmatpush1.xpose.msra.mxu0 0.0
        %2891 = vmatprep.subr.mxu0 0.0
        %2892 = vmatpush1.xpose.msra.mxu0 0.0
        %2893 = vmatprep.subr.mxu0 0.0
        %2894 = vmatpush1.xpose.msra.mxu0 %v2861
        %2895 = vmatprep.subr.mxu0 0.0
        %2896 = vmatpush2.xpose.msra.mxu0 0.0
        %2897 = vmatprep.subr.mxu0 0.0
        %2898 = vmatpush2.xpose.msra.mxu0 0.0
        %2899 = vmatprep.subr.mxu0 0.0
        %2900 = vmatpush2.xpose.msra.mxu0 0.0
        %2901 = vmatprep.subr.mxu0 0.0
        %2902 = vmatpush2.xpose.msra.mxu0 0.0
        %2903 = vmatprep.subr.mxu0 0.0
        %2904 = vmatpush2.xpose.msra.mxu0 0.0
        %2905 = vmatprep.subr.mxu0 0.0
        %2906 = vmatpush2.xpose.msra.mxu0 0.0
        %2907 = vmatprep.subr.mxu0 0.0
        %2908 = vmatpush2.xpose.msra.mxu0 0.0
        %2909 = vmatprep.subr.mxu0 0.0
        %2910 = vmatpush2.xpose.msra.mxu0 0.0
        %2911 = vmatprep.subr.mxu0 0.0
        %2912 = vmatpush2.xpose.msra.mxu0 0.0
        %2913 = vmatprep.subr.mxu0 0.0
        %2914 = vmatpush2.xpose.msra.mxu0 0.0
        %2915 = vmatprep.subr.mxu0 0.0
        %2916 = vmatpush2.xpose.msra.mxu0 0.0
        %2917 = vmatprep.subr.mxu0 0.0
        %2918 = vmatpush2.xpose.msra.mxu0 0.0
        %2919 = vmatprep.subr.mxu0 0.0
        %2920 = vmatpush2.xpose.msra.mxu0 0.0
        %2921 = vmatprep.subr.mxu0 0.0
        %2922 = vmatpush2.xpose.msra.mxu0 0.0
        %2923 = vmatprep.subr.mxu0 0.0
        %2924 = vmatpush2.xpose.msra.mxu0 0.0
        %2925 = vmatprep.subr.mxu0 0.0
        %2926 = vmatpush2.xpose.msra.mxu0 0.0
        %2927 = vmatprep.mubr.f32.mxu0 0.0
        %2928 = vmatmul.mubr.f32.gmra.mxu0 %v2858
        %v2929 = vpop.f32.mrf.mxu0
        %v2930 = vadd.f32 0.0, %v2929
        %v2931 = vpop.f32.mrf.mxu0
        %2932 = vdwg.mxu0
        %vm2933 = vcmp.ne.f32.partialorder %v2930, 0.0
        %v2934 = vsel %vm2933, %v2930, -inf
        %v2935 = vadd.f32 %v2934, %v1582
        %v2936 = vsel %vm1681, %v2935, -inf
        %2937 = vmax.xlane.f32.xlu0 %v2936
        %v2938 = vpop.xlane.xlu0 %2937
        %v2939 = vsub.f32 %v2935, %v2938
        %v2940 = vmul.f32 %v2939, 1.442695
        %v2941 = vpow.pop %v2940
        %v2942 = vsel %vm1681, %v2941, 0.0
        %2943 = vadd.xlane.f32.xlu0 %v2942
        %v2944 = vpop.xlane.xlu0 %2943
        %v2945 = vrcp.pop %v2944
        %v2947 = vsel %vm1681, %v2941, 0
        %2949 = vmatprep.subr.mxu0 0.0
        %2950 = vmatpush1.msra.mxu0 0.0
        %2951 = vmatprep.subr.mxu0 0.0
        %2952 = vmatpush1.msra.mxu0 0.0
        %2953 = vmatprep.subr.mxu0 0.0
        %2954 = vmatpush1.msra.mxu0 0.0
        %2955 = vmatprep.subr.mxu0 0.0
        %2956 = vmatpush1.msra.mxu0 0.0
        %2957 = vmatprep.subr.mxu0 0.0
        %2958 = vmatpush1.msra.mxu0 0.0
        %2959 = vmatprep.subr.mxu0 0.0
        %2960 = vmatpush1.msra.mxu0 0.0
        %2961 = vmatprep.subr.mxu0 0.0
        %2962 = vmatpush1.msra.mxu0 0.0
        %2963 = vmatprep.subr.mxu0 0.0
        %2964 = vmatpush1.msra.mxu0 0.0
        %2965 = vmatprep.subr.mxu0 0.0
        %2966 = vmatpush1.msra.mxu0 0.0
        %2967 = vmatprep.subr.mxu0 0.0
        %2968 = vmatpush1.msra.mxu0 0.0
        %2969 = vmatprep.subr.mxu0 0.0
        %2970 = vmatpush1.msra.mxu0 0.0
        %2971 = vmatprep.subr.mxu0 0.0
        %2972 = vmatpush1.msra.mxu0 0.0
        %2973 = vmatprep.subr.mxu0 0.0
        %2974 = vmatpush1.msra.mxu0 0.0
        %2975 = vmatprep.subr.mxu0 0.0
        %2976 = vmatpush1.msra.mxu0 0.0
        %2977 = vmatprep.subr.mxu0 0.0
        %2978 = vmatpush1.msra.mxu0 0.0
        %2979 = vmatprep.subr.mxu0 0.0
        %2980 = vmatpush1.msra.mxu0 %v1435
        %2981 = vmatprep.subr.mxu0 0.0
        %2982 = vmatpush2.msra.mxu0 0.0
        %2983 = vmatprep.subr.mxu0 0.0
        %2984 = vmatpush2.msra.mxu0 0.0
        %2985 = vmatprep.subr.mxu0 0.0
        %2986 = vmatpush2.msra.mxu0 0.0
        %2987 = vmatprep.subr.mxu0 0.0
        %2988 = vmatpush2.msra.mxu0 0.0
        %2989 = vmatprep.subr.mxu0 0.0
        %2990 = vmatpush2.msra.mxu0 0.0
        %2991 = vmatprep.subr.mxu0 0.0
        %2992 = vmatpush2.msra.mxu0 0.0
        %2993 = vmatprep.subr.mxu0 0.0
        %2994 = vmatpush2.msra.mxu0 0.0
        %2995 = vmatprep.subr.mxu0 0.0
        %2996 = vmatpush2.msra.mxu0 0.0
        %2997 = vmatprep.subr.mxu0 0.0
        %2998 = vmatpush2.msra.mxu0 0.0
        %2999 = vmatprep.subr.mxu0 0.0
        %3000 = vmatpush2.msra.mxu0 0.0
        %3001 = vmatprep.subr.mxu0 0.0
        %3002 = vmatpush2.msra.mxu0 0.0
        %3003 = vmatprep.subr.mxu0 0.0
        %3004 = vmatpush2.msra.mxu0 0.0
        %3005 = vmatprep.subr.mxu0 0.0
        %3006 = vmatpush2.msra.mxu0 0.0
        %3007 = vmatprep.subr.mxu0 0.0
        %3008 = vmatpush2.msra.mxu0 0.0
        %3009 = vmatprep.subr.mxu0 0.0
        %3010 = vmatpush2.msra.mxu0 0.0
        %3011 = vmatprep.subr.mxu0 0.0
        %3012 = vmatpush2.msra.mxu0 0.0
        %3013 = vmatprep.mubr.f32.mxu0 0.0
        %3014 = vmatmul.mubr.f32.gmra.mxu0 %v2947
        %v3015 = vpop.f32.mrf.mxu0
        %v3016 = vadd.f32 0.0, %v3015
        %v3017 = vpop.f32.mrf.mxu0
        %3018 = vdwg.mxu0
        %v3019 = vmul.f32 %v3016, %v2945
        %v3021 = vsel %vm1601, %v3019, 0
        %3023 = vmatprep.subr.mxu0 0.0
        %3024 = vmatpush1.msra.mxu0 0.0
        %3025 = vmatprep.subr.mxu0 0.0
        %3026 = vmatpush1.msra.mxu0 0.0
        %3027 = vmatprep.subr.mxu0 0.0
        %3028 = vmatpush1.msra.mxu0 0.0
        %3029 = vmatprep.subr.mxu0 0.0
        %3030 = vmatpush1.msra.mxu0 0.0
        %3031 = vmatprep.subr.mxu0 0.0
        %3032 = vmatpush1.msra.mxu0 0.0
        %3033 = vmatprep.subr.mxu0 0.0
        %3034 = vmatpush1.msra.mxu0 0.0
        %3035 = vmatprep.subr.mxu0 0.0
        %3036 = vmatpush1.msra.mxu0 0.0
        %3037 = vmatprep.subr.mxu0 0.0
        %3038 = vmatpush1.msra.mxu0 0.0
        %3039 = vmatprep.subr.mxu0 %v1556
        %3040 = vmatpush1.msra.mxu0 %v1555
        %3041 = vmatprep.subr.mxu0 %v1553
        %3042 = vmatpush1.msra.mxu0 %v1552
        %3043 = vmatprep.subr.mxu0 %v1550
        %3044 = vmatpush1.msra.mxu0 %v1549
        %3045 = vmatprep.subr.mxu0 %v1547
        %3046 = vmatpush1.msra.mxu0 %v1546
        %3047 = vmatprep.subr.mxu0 %v1544
        %3048 = vmatpush1.msra.mxu0 %v1543
        %3049 = vmatprep.subr.mxu0 %v1541
        %3050 = vmatpush1.msra.mxu0 %v1540
        %3051 = vmatprep.subr.mxu0 %v1538
        %3052 = vmatpush1.msra.mxu0 %v1537
        %3053 = vmatprep.subr.mxu0 %v1535
        %3054 = vmatpush1.msra.mxu0 %v1534
        %3055 = vmatprep.subr.mxu0 0.0
        %3056 = vmatpush2.msra.mxu0 0.0
        %3057 = vmatprep.subr.mxu0 0.0
        %3058 = vmatpush2.msra.mxu0 0.0
        %3059 = vmatprep.subr.mxu0 0.0
        %3060 = vmatpush2.msra.mxu0 0.0
        %3061 = vmatprep.subr.mxu0 0.0
        %3062 = vmatpush2.msra.mxu0 0.0
        %3063 = vmatprep.subr.mxu0 0.0
        %3064 = vmatpush2.msra.mxu0 0.0
        %3065 = vmatprep.subr.mxu0 0.0
        %3066 = vmatpush2.msra.mxu0 0.0
        %3067 = vmatprep.subr.mxu0 0.0
        %3068 = vmatpush2.msra.mxu0 0.0
        %3069 = vmatprep.subr.mxu0 0.0
        %3070 = vmatpush2.msra.mxu0 0.0
        %3071 = vmatprep.subr.mxu0 0.0
        %3072 = vmatpush2.msra.mxu0 0.0
        %3073 = vmatprep.subr.mxu0 0.0
        %3074 = vmatpush2.msra.mxu0 0.0
        %3075 = vmatprep.subr.mxu0 0.0
        %3076 = vmatpush2.msra.mxu0 0.0
        %3077 = vmatprep.subr.mxu0 0.0
        %3078 = vmatpush2.msra.mxu0 0.0
        %3079 = vmatprep.subr.mxu0 0.0
        %3080 = vmatpush2.msra.mxu0 0.0
        %3081 = vmatprep.subr.mxu0 0.0
        %3082 = vmatpush2.msra.mxu0 0.0
        %3083 = vmatprep.subr.mxu0 0.0
        %3084 = vmatpush2.msra.mxu0 0.0
        %3085 = vmatprep.subr.mxu0 0.0
        %3086 = vmatpush2.msra.mxu0 0.0
        %3087 = vmatprep.mubr.f32.mxu0 0.0
        %3088 = vmatmul.mubr.f32.gmra.mxu0 %v3021
        %v3089 = vpop.f32.mrf.mxu0
        %v3090 = vadd.f32 0.0, %v3089
        %v3091 = vpop.f32.mrf.mxu0
        %v3092 = vadd.f32 0.0, %v3091
        %3093 = vdwg.mxu0
        %3094 = vmatprep.subr.mxu0 0.0
        %3095 = vmatpush1.msra.mxu0 0.0
        %3096 = vmatprep.subr.mxu0 0.0
        %3097 = vmatpush1.msra.mxu0 0.0
        %3098 = vmatprep.subr.mxu0 0.0
        %3099 = vmatpush1.msra.mxu0 0.0
        %3100 = vmatprep.subr.mxu0 0.0
        %3101 = vmatpush1.msra.mxu0 0.0
        %3102 = vmatprep.subr.mxu0 0.0
        %3103 = vmatpush1.msra.mxu0 0.0
        %3104 = vmatprep.subr.mxu0 0.0
        %3105 = vmatpush1.msra.mxu0 0.0
        %3106 = vmatprep.subr.mxu0 0.0
        %3107 = vmatpush1.msra.mxu0 0.0
        %3108 = vmatprep.subr.mxu0 0.0
        %3109 = vmatpush1.msra.mxu0 0.0
        %3110 = vmatprep.subr.mxu0 0.0
        %3111 = vmatpush1.msra.mxu0 %v1557
        %3112 = vmatprep.subr.mxu0 0.0
        %3113 = vmatpush1.msra.mxu0 %v1554
        %3114 = vmatprep.subr.mxu0 0.0
        %3115 = vmatpush1.msra.mxu0 %v1551
        %3116 = vmatprep.subr.mxu0 0.0
        %3117 = vmatpush1.msra.mxu0 %v1548
        %3118 = vmatprep.subr.mxu0 0.0
        %3119 = vmatpush1.msra.mxu0 %v1545
        %3120 = vmatprep.subr.mxu0 0.0
        %3121 = vmatpush1.msra.mxu0 %v1542
        %3122 = vmatprep.subr.mxu0 0.0
        %3123 = vmatpush1.msra.mxu0 %v1539
        %3124 = vmatprep.subr.mxu0 0.0
        %3125 = vmatpush1.msra.mxu0 %v1536
        %3126 = vmatprep.subr.mxu0 0.0
        %3127 = vmatpush2.msra.mxu0 0.0
        %3128 = vmatprep.subr.mxu0 0.0
        %3129 = vmatpush2.msra.mxu0 0.0
        %3130 = vmatprep.subr.mxu0 0.0
        %3131 = vmatpush2.msra.mxu0 0.0
        %3132 = vmatprep.subr.mxu0 0.0
        %3133 = vmatpush2.msra.mxu0 0.0
        %3134 = vmatprep.subr.mxu0 0.0
        %3135 = vmatpush2.msra.mxu0 0.0
        %3136 = vmatprep.subr.mxu0 0.0
        %3137 = vmatpush2.msra.mxu0 0.0
        %3138 = vmatprep.subr.mxu0 0.0
        %3139 = vmatpush2.msra.mxu0 0.0
        %3140 = vmatprep.subr.mxu0 0.0
        %3141 = vmatpush2.msra.mxu0 0.0
        %3142 = vmatprep.subr.mxu0 0.0
        %3143 = vmatpush2.msra.mxu0 0.0
        %3144 = vmatprep.subr.mxu0 0.0
        %3145 = vmatpush2.msra.mxu0 0.0
        %3146 = vmatprep.subr.mxu0 0.0
        %3147 = vmatpush2.msra.mxu0 0.0
        %3148 = vmatprep.subr.mxu0 0.0
        %3149 = vmatpush2.msra.mxu0 0.0
        %3150 = vmatprep.subr.mxu0 0.0
        %3151 = vmatpush2.msra.mxu0 0.0
        %3152 = vmatprep.subr.mxu0 0.0
        %3153 = vmatpush2.msra.mxu0 0.0
        %3154 = vmatprep.subr.mxu0 0.0
        %3155 = vmatpush2.msra.mxu0 0.0
        %3156 = vmatprep.subr.mxu0 0.0
        %3157 = vmatpush2.msra.mxu0 0.0
        %3158 = vmatprep.mubr.f32.mxu0 0.0
        %3159 = vmatmul.mubr.f32.gmra.mxu0 %v3021
        %v3160 = vpop.f32.mrf.mxu0
        %v3161 = vadd.f32 0.0, %v3160
        %v3162 = vpop.f32.mrf.mxu0
        %3163 = vdwg.mxu0
        %v3164 = vadd.f32 %v2853, %v3090
        %v3165 = vadd.f32 %v2854, %v3092
        %v3166 = vadd.f32 %v2855, %v3161
        %3167 = vrot.lane.b32.xlu0 %v2856, 64
        %v3168 = vpop.permute.xlu0 %3167
        %3169 = vrot.lane.b32.xlu0 %v1154, 64
        %v3170 = vpop.permute.xlu0 %3169
        %v3171 = vsel %vm1601, %v3168, 0
        %v3173 = vsel %vm1601, %v3170, 0
        %3175 = vmatprep.subr.mxu0 0.0
        %3176 = vmatpush1.xpose.msra.mxu0 0.0
        %3177 = vmatprep.subr.mxu0 0.0
        %3178 = vmatpush1.xpose.msra.mxu0 0.0
        %3179 = vmatprep.subr.mxu0 0.0
        %3180 = vmatpush1.xpose.msra.mxu0 0.0
        %3181 = vmatprep.subr.mxu0 0.0
        %3182 = vmatpush1.xpose.msra.mxu0 0.0
        %3183 = vmatprep.subr.mxu0 0.0
        %3184 = vmatpush1.xpose.msra.mxu0 0.0
        %3185 = vmatprep.subr.mxu0 0.0
        %3186 = vmatpush1.xpose.msra.mxu0 0.0
        %3187 = vmatprep.subr.mxu0 0.0
        %3188 = vmatpush1.xpose.msra.mxu0 0.0
        %3189 = vmatprep.subr.mxu0 0.0
        %3190 = vmatpush1.xpose.msra.mxu0 0.0
        %3191 = vmatprep.subr.mxu0 0.0
        %3192 = vmatpush1.xpose.msra.mxu0 0.0
        %3193 = vmatprep.subr.mxu0 0.0
        %3194 = vmatpush1.xpose.msra.mxu0 0.0
        %3195 = vmatprep.subr.mxu0 0.0
        %3196 = vmatpush1.xpose.msra.mxu0 0.0
        %3197 = vmatprep.subr.mxu0 0.0
        %3198 = vmatpush1.xpose.msra.mxu0 0.0
        %3199 = vmatprep.subr.mxu0 0.0
        %3200 = vmatpush1.xpose.msra.mxu0 0.0
        %3201 = vmatprep.subr.mxu0 0.0
        %3202 = vmatpush1.xpose.msra.mxu0 0.0
        %3203 = vmatprep.subr.mxu0 0.0
        %3204 = vmatpush1.xpose.msra.mxu0 0.0
        %3205 = vmatprep.subr.mxu0 0.0
        %3206 = vmatpush1.xpose.msra.mxu0 %v3173
        %3207 = vmatprep.subr.mxu0 0.0
        %3208 = vmatpush2.xpose.msra.mxu0 0.0
        %3209 = vmatprep.subr.mxu0 0.0
        %3210 = vmatpush2.xpose.msra.mxu0 0.0
        %3211 = vmatprep.subr.mxu0 0.0
        %3212 = vmatpush2.xpose.msra.mxu0 0.0
        %3213 = vmatprep.subr.mxu0 0.0
        %3214 = vmatpush2.xpose.msra.mxu0 0.0
        %3215 = vmatprep.subr.mxu0 0.0
        %3216 = vmatpush2.xpose.msra.mxu0 0.0
        %3217 = vmatprep.subr.mxu0 0.0
        %3218 = vmatpush2.xpose.msra.mxu0 0.0
        %3219 = vmatprep.subr.mxu0 0.0
        %3220 = vmatpush2.xpose.msra.mxu0 0.0
        %3221 = vmatprep.subr.mxu0 0.0
        %3222 = vmatpush2.xpose.msra.mxu0 0.0
        %3223 = vmatprep.subr.mxu0 0.0
        %3224 = vmatpush2.xpose.msra.mxu0 0.0
        %3225 = vmatprep.subr.mxu0 0.0
        %3226 = vmatpush2.xpose.msra.mxu0 0.0
        %3227 = vmatprep.subr.mxu0 0.0
        %3228 = vmatpush2.xpose.msra.mxu0 0.0
        %3229 = vmatprep.subr.mxu0 0.0
        %3230 = vmatpush2.xpose.msra.mxu0 0.0
        %3231 = vmatprep.subr.mxu0 0.0
        %3232 = vmatpush2.xpose.msra.mxu0 0.0
        %3233 = vmatprep.subr.mxu0 0.0
        %3234 = vmatpush2.xpose.msra.mxu0 0.0
        %3235 = vmatprep.subr.mxu0 0.0
        %3236 = vmatpush2.xpose.msra.mxu0 0.0
        %3237 = vmatprep.subr.mxu0 0.0
        %3238 = vmatpush2.xpose.msra.mxu0 0.0
        %3239 = vmatprep.mubr.f32.mxu0 0.0
        %3240 = vmatmul.mubr.f32.gmra.mxu0 %v3171
        %v3241 = vpop.f32.mrf.mxu0
        %v3242 = vadd.f32 0.0, %v3241
        %v3243 = vpop.f32.mrf.mxu0
        %3244 = vdwg.mxu0
        %vm3245 = vcmp.ne.f32.partialorder %v3242, 0.0
        %v3246 = vsel %vm3245, %v3242, -inf
        %v3247 = vadd.f32 %v3246, %v1582
        %v3248 = vsel %vm1681, %v3247, -inf
        %3249 = vmax.xlane.f32.xlu0 %v3248
        %v3250 = vpop.xlane.xlu0 %3249
        %v3251 = vsub.f32 %v3247, %v3250
        %v3252 = vmul.f32 %v3251, 1.442695
        %v3253 = vpow.pop %v3252
        %v3254 = vsel %vm1681, %v3253, 0.0
        %3255 = vadd.xlane.f32.xlu0 %v3254
        %v3256 = vpop.xlane.xlu0 %3255
        %v3257 = vrcp.pop %v3256
        %3259 = vrot.lane.b32.xlu0 %v1435, 64
        %v3260 = vpop.permute.xlu0 %3259
        %v3263 = vsel %vm1681, %v3253, 0
        %3265 = vmatprep.subr.mxu0 0.0
        %3266 = vmatpush1.msra.mxu0 0.0
        %3267 = vmatprep.subr.mxu0 0.0
        %3268 = vmatpush1.msra.mxu0 0.0
        %3269 = vmatprep.subr.mxu0 0.0
        %3270 = vmatpush1.msra.mxu0 0.0
        %3271 = vmatprep.subr.mxu0 0.0
        %3272 = vmatpush1.msra.mxu0 0.0
        %3273 = vmatprep.subr.mxu0 0.0
        %3274 = vmatpush1.msra.mxu0 0.0
        %3275 = vmatprep.subr.mxu0 0.0
        %3276 = vmatpush1.msra.mxu0 0.0
        %3277 = vmatprep.subr.mxu0 0.0
        %3278 = vmatpush1.msra.mxu0 0.0
        %3279 = vmatprep.subr.mxu0 0.0
        %3280 = vmatpush1.msra.mxu0 0.0
        %3281 = vmatprep.subr.mxu0 0.0
        %3282 = vmatpush1.msra.mxu0 0.0
        %3283 = vmatprep.subr.mxu0 0.0
        %3284 = vmatpush1.msra.mxu0 0.0
        %3285 = vmatprep.subr.mxu0 0.0
        %3286 = vmatpush1.msra.mxu0 0.0
        %3287 = vmatprep.subr.mxu0 0.0
        %3288 = vmatpush1.msra.mxu0 0.0
        %3289 = vmatprep.subr.mxu0 0.0
        %3290 = vmatpush1.msra.mxu0 0.0
        %3291 = vmatprep.subr.mxu0 0.0
        %3292 = vmatpush1.msra.mxu0 0.0
        %3293 = vmatprep.subr.mxu0 0.0
        %3294 = vmatpush1.msra.mxu0 0.0
        %3295 = vmatprep.subr.mxu0 0.0
        %3296 = vmatpush1.msra.mxu0 %v3260
        %3297 = vmatprep.subr.mxu0 0.0
        %3298 = vmatpush2.msra.mxu0 0.0
        %3299 = vmatprep.subr.mxu0 0.0
        %3300 = vmatpush2.msra.mxu0 0.0
        %3301 = vmatprep.subr.mxu0 0.0
        %3302 = vmatpush2.msra.mxu0 0.0
        %3303 = vmatprep.subr.mxu0 0.0
        %3304 = vmatpush2.msra.mxu0 0.0
        %3305 = vmatprep.subr.mxu0 0.0
        %3306 = vmatpush2.msra.mxu0 0.0
        %3307 = vmatprep.subr.mxu0 0.0
        %3308 = vmatpush2.msra.mxu0 0.0
        %3309 = vmatprep.subr.mxu0 0.0
        %3310 = vmatpush2.msra.mxu0 0.0
        %3311 = vmatprep.subr.mxu0 0.0
        %3312 = vmatpush2.msra.mxu0 0.0
        %3313 = vmatprep.subr.mxu0 0.0
        %3314 = vmatpush2.msra.mxu0 0.0
        %3315 = vmatprep.subr.mxu0 0.0
        %3316 = vmatpush2.msra.mxu0 0.0
        %3317 = vmatprep.subr.mxu0 0.0
        %3318 = vmatpush2.msra.mxu0 0.0
        %3319 = vmatprep.subr.mxu0 0.0
        %3320 = vmatpush2.msra.mxu0 0.0
        %3321 = vmatprep.subr.mxu0 0.0
        %3322 = vmatpush2.msra.mxu0 0.0
        %3323 = vmatprep.subr.mxu0 0.0
        %3324 = vmatpush2.msra.mxu0 0.0
        %3325 = vmatprep.subr.mxu0 0.0
        %3326 = vmatpush2.msra.mxu0 0.0
        %3327 = vmatprep.subr.mxu0 0.0
        %3328 = vmatpush2.msra.mxu0 0.0
        %3329 = vmatprep.mubr.f32.mxu0 0.0
        %3330 = vmatmul.mubr.f32.gmra.mxu0 %v3263
        %v3331 = vpop.f32.mrf.mxu0
        %v3332 = vadd.f32 0.0, %v3331
        %v3333 = vpop.f32.mrf.mxu0
        %3334 = vdwg.mxu0
        %v3335 = vmul.f32 %v3332, %v3257
        %v3337 = vsel %vm1601, %v3335, 0
        %3339 = vmatprep.subr.mxu0 0.0
        %3340 = vmatpush1.msra.mxu0 0.0
        %3341 = vmatprep.subr.mxu0 0.0
        %3342 = vmatpush1.msra.mxu0 0.0
        %3343 = vmatprep.subr.mxu0 0.0
        %3344 = vmatpush1.msra.mxu0 0.0
        %3345 = vmatprep.subr.mxu0 0.0
        %3346 = vmatpush1.msra.mxu0 0.0
        %3347 = vmatprep.subr.mxu0 0.0
        %3348 = vmatpush1.msra.mxu0 0.0
        %3349 = vmatprep.subr.mxu0 0.0
        %3350 = vmatpush1.msra.mxu0 0.0
        %3351 = vmatprep.subr.mxu0 0.0
        %3352 = vmatpush1.msra.mxu0 0.0
        %3353 = vmatprep.subr.mxu0 0.0
        %3354 = vmatpush1.msra.mxu0 0.0
        %3355 = vmatprep.subr.mxu0 %v1580
        %3356 = vmatpush1.msra.mxu0 %v1579
        %3357 = vmatprep.subr.mxu0 %v1577
        %3358 = vmatpush1.msra.mxu0 %v1576
        %3359 = vmatprep.subr.mxu0 %v1574
        %3360 = vmatpush1.msra.mxu0 %v1573
        %3361 = vmatprep.subr.mxu0 %v1571
        %3362 = vmatpush1.msra.mxu0 %v1570
        %3363 = vmatprep.subr.mxu0 %v1568
        %3364 = vmatpush1.msra.mxu0 %v1567
        %3365 = vmatprep.subr.mxu0 %v1565
        %3366 = vmatpush1.msra.mxu0 %v1564
        %3367 = vmatprep.subr.mxu0 %v1562
        %3368 = vmatpush1.msra.mxu0 %v1561
        %3369 = vmatprep.subr.mxu0 %v1559
        %3370 = vmatpush1.msra.mxu0 %v1558
        %3371 = vmatprep.subr.mxu0 0.0
        %3372 = vmatpush2.msra.mxu0 0.0
        %3373 = vmatprep.subr.mxu0 0.0
        %3374 = vmatpush2.msra.mxu0 0.0
        %3375 = vmatprep.subr.mxu0 0.0
        %3376 = vmatpush2.msra.mxu0 0.0
        %3377 = vmatprep.subr.mxu0 0.0
        %3378 = vmatpush2.msra.mxu0 0.0
        %3379 = vmatprep.subr.mxu0 0.0
        %3380 = vmatpush2.msra.mxu0 0.0
        %3381 = vmatprep.subr.mxu0 0.0
        %3382 = vmatpush2.msra.mxu0 0.0
        %3383 = vmatprep.subr.mxu0 0.0
        %3384 = vmatpush2.msra.mxu0 0.0
        %3385 = vmatprep.subr.mxu0 0.0
        %3386 = vmatpush2.msra.mxu0 0.0
        %3387 = vmatprep.subr.mxu0 0.0
        %3388 = vmatpush2.msra.mxu0 0.0
        %3389 = vmatprep.subr.mxu0 0.0
        %3390 = vmatpush2.msra.mxu0 0.0
        %3391 = vmatprep.subr.mxu0 0.0
        %3392 = vmatpush2.msra.mxu0 0.0
        %3393 = vmatprep.subr.mxu0 0.0
        %3394 = vmatpush2.msra.mxu0 0.0
        %3395 = vmatprep.subr.mxu0 0.0
        %3396 = vmatpush2.msra.mxu0 0.0
        %3397 = vmatprep.subr.mxu0 0.0
        %3398 = vmatpush2.msra.mxu0 0.0
        %3399 = vmatprep.subr.mxu0 0.0
        %3400 = vmatpush2.msra.mxu0 0.0
        %3401 = vmatprep.subr.mxu0 0.0
        %3402 = vmatpush2.msra.mxu0 0.0
        %3403 = vmatprep.mubr.f32.mxu0 0.0
        %3404 = vmatmul.mubr.f32.gmra.mxu0 %v3337
        %v3405 = vpop.f32.mrf.mxu0
        %v3406 = vadd.f32 0.0, %v3405
        %v3407 = vpop.f32.mrf.mxu0
        %v3408 = vadd.f32 0.0, %v3407
        %3409 = vdwg.mxu0
        %3410 = vmatprep.subr.mxu0 0.0
        %3411 = vmatpush1.msra.mxu0 0.0
        %3412 = vmatprep.subr.mxu0 0.0
        %3413 = vmatpush1.msra.mxu0 0.0
        %3414 = vmatprep.subr.mxu0 0.0
        %3415 = vmatpush1.msra.mxu0 0.0
        %3416 = vmatprep.subr.mxu0 0.0
        %3417 = vmatpush1.msra.mxu0 0.0
        %3418 = vmatprep.subr.mxu0 0.0
        %3419 = vmatpush1.msra.mxu0 0.0
        %3420 = vmatprep.subr.mxu0 0.0
        %3421 = vmatpush1.msra.mxu0 0.0
        %3422 = vmatprep.subr.mxu0 0.0
        %3423 = vmatpush1.msra.mxu0 0.0
        %3424 = vmatprep.subr.mxu0 0.0
        %3425 = vmatpush1.msra.mxu0 0.0
        %3426 = vmatprep.subr.mxu0 0.0
        %3427 = vmatpush1.msra.mxu0 %v1581
        %3428 = vmatprep.subr.mxu0 0.0
        %3429 = vmatpush1.msra.mxu0 %v1578
        %3430 = vmatprep.subr.mxu0 0.0
        %3431 = vmatpush1.msra.mxu0 %v1575
        %3432 = vmatprep.subr.mxu0 0.0
        %3433 = vmatpush1.msra.mxu0 %v1572
        %3434 = vmatprep.subr.mxu0 0.0
        %3435 = vmatpush1.msra.mxu0 %v1569
        %3436 = vmatprep.subr.mxu0 0.0
        %3437 = vmatpush1.msra.mxu0 %v1566
        %3438 = vmatprep.subr.mxu0 0.0
        %3439 = vmatpush1.msra.mxu0 %v1563
        %3440 = vmatprep.subr.mxu0 0.0
        %3441 = vmatpush1.msra.mxu0 %v1560
        %3442 = vmatprep.subr.mxu0 0.0
        %3443 = vmatpush2.msra.mxu0 0.0
        %3444 = vmatprep.subr.mxu0 0.0
        %3445 = vmatpush2.msra.mxu0 0.0
        %3446 = vmatprep.subr.mxu0 0.0
        %3447 = vmatpush2.msra.mxu0 0.0
        %3448 = vmatprep.subr.mxu0 0.0
        %3449 = vmatpush2.msra.mxu0 0.0
        %3450 = vmatprep.subr.mxu0 0.0
        %3451 = vmatpush2.msra.mxu0 0.0
        %3452 = vmatprep.subr.mxu0 0.0
        %3453 = vmatpush2.msra.mxu0 0.0
        %3454 = vmatprep.subr.mxu0 0.0
        %3455 = vmatpush2.msra.mxu0 0.0
        %3456 = vmatprep.subr.mxu0 0.0
        %3457 = vmatpush2.msra.mxu0 0.0
        %3458 = vmatprep.subr.mxu0 0.0
        %3459 = vmatpush2.msra.mxu0 0.0
        %3460 = vmatprep.subr.mxu0 0.0
        %3461 = vmatpush2.msra.mxu0 0.0
        %3462 = vmatprep.subr.mxu0 0.0
        %3463 = vmatpush2.msra.mxu0 0.0
        %3464 = vmatprep.subr.mxu0 0.0
        %3465 = vmatpush2.msra.mxu0 0.0
        %3466 = vmatprep.subr.mxu0 0.0
        %3467 = vmatpush2.msra.mxu0 0.0
        %3468 = vmatprep.subr.mxu0 0.0
        %3469 = vmatpush2.msra.mxu0 0.0
        %3470 = vmatprep.subr.mxu0 0.0
        %3471 = vmatpush2.msra.mxu0 0.0
        %3472 = vmatprep.subr.mxu0 0.0
        %3473 = vmatpush2.msra.mxu0 0.0
        %3474 = vmatprep.mubr.f32.mxu0 0.0
        %3475 = vmatmul.mubr.f32.gmra.mxu0 %v3337
        %v3476 = vpop.f32.mrf.mxu0
        %v3477 = vadd.f32 0.0, %v3476
        %v3478 = vpop.f32.mrf.mxu0
        %3479 = vdwg.mxu0
        %v3480 = vadd.f32 %v3164, %v3406
        %v3481 = vadd.f32 %v3165, %v3408
        %v3482 = vadd.f32 %v3166, %v3477
        %3483 = vst [vmem:[%s294] sm:$0xff] %v3480
        %3484 = vst [vmem:[%s294 + $0x8] sm:$0xff] %v3481
        %3485 = vst [vmem:[%s294 + $0x10] sm:$0xff] %v3482
        %s3486 = sand.u32 %s142, 1
        %s3487 = scalar_lea.sflag [#allocation4], %s3486
        %s3488 = sand.u32 %s142, 1
        %s3489 = smul.addr %s3488, 24
        %s3490 = scalar_lea.vmem [#allocation11], %s3489
        // Predicated region
        $region61: #{tpu_custom_call.1} parent=39 // pred_check
          %p3491 = pneg %p152
        $region62: #{tpu_custom_call.1} parent=39 // pred_check_branch
          %3493 = sbr.rel (%p3491) target = $region64
        $region63: #{tpu_custom_call.1} parent=39 // pred_region
          %s3495 = ssub.s32 384, 384
          %3496 = vsyncadd %s3487, %s3495
          %s3497 = smul.addr %s24, 3
          %s3498 = smul.addr %s3497, 128
          %s3499 = scalar_lea.hbm %s5, %s3498
          %s3501 = sshll.u32 %s3490, 4
          %s3502 = int_to_ptr.vmem [resolvable:$true] %s3501
          %3504 = dma.vmem_to_hbm [thread:$0]  %s3502, 384, %s3499, %s3487
        $region64: #{tpu_custom_call.1} parent=39 // pred_fallthru
          _
      $region40: #{tpu_custom_call.1} parent=5 // pred_fallthru
        _
      %p3505 = scmp.le.s32.totalorder 2, %s19
      // Predicated region
      $region65: #{tpu_custom_call.1} parent=5 // pred_check
        %p3506 = pneg %p3505
      $region66: #{tpu_custom_call.1} parent=5 // pred_check_branch
        %3508 = sbr.rel (%p3506) target = $region68
      $region67: #{tpu_custom_call.1} parent=5 // pred_region
        %s3509 = ssub.s32 %s19, 2
        // Predicated region
        $region69: #{tpu_custom_call.1} parent=67 // pred_check
          %p3510 = pneg %p158
        $region70: #{tpu_custom_call.1} parent=67 // pred_check_branch
          %3512 = sbr.rel (%p3510) target = $region72
        $region71: #{tpu_custom_call.1} parent=67 // pred_region
          %s3513 = sand.u32 %s143, 1
          %s3514 = scalar_lea.sflag [#allocation4], %s3513
          %s3515 = sand.u32 %s143, 1
          %s3516 = smul.addr %s3515, 24
          %s3517 = scalar_lea.vmem [#allocation11], %s3516
          %3518 = dma.done %s3514, 384
        $region72: #{tpu_custom_call.1} parent=67 // pred_fallthru
          _
      $region68: #{tpu_custom_call.1} parent=5 // pred_fallthru
        _
    $region6: #{tpu_custom_call.1} parent=1 // loop_footer
      %s23 = sadd.s32 1, %s19
    $region7: #{tpu_custom_call.1} parent=1 // loop_footer_branch
      %18 = sbr.rel target = $region3
    $region8: #{tpu_custom_call.1} parent=1 // loop_exit
      _
    %3519 = vsyncpa [#allocation3], 1
    %s3520 = scalar_lea.sflag [#allocation3], 1
    %3521 = vsyncpa %s3520, 1
    %3522 = vsyncpa [#allocation6], 1
    %3523 = vsyncpa [#allocation9], 1
    %3524 = vsyncpa [#allocation4], 1
    %s3525 = scalar_lea.sflag [#allocation4], 1
    %3526 = vsyncpa %s3525, 1

</llo_original>
